<compile_context>
chip_gen: v5e
topology: v5e:2x2
jax: 0.10.0
libtpu: 0.0.40
codegen_flags: <defaults>
</compile_context>

<pallas_src>
import math

import jax
import jax.numpy as jnp
from jax import lax
from jax.experimental import pallas as pl
from jax.experimental.pallas import tpu as pltpu


# ----------------------- small synthetic configuration -----------------------
BATCH = 2
IMG_HW = 64          # input images: (B, 3, 64, 64)
EMBED = 32           # embedding_size
HIDDEN = 32          # hidden_size
VOCAB = 32           # len(vocab)
V_PAD = 128          # fc_out padded to a full 128-lane tile (wrapper slices [:, :, :VOCAB])
CAP_LEN = 8          # captions: (B, CAP_LEN) int32
NUM_LAYERS = 2       # decoder LSTM layers (kernel implements the 2 layers explicitly)

_VMEM = pl.BlockSpec(memory_space=pltpu.MemorySpace.VMEM)


# =============================== Pallas kernel ===============================
def enc_dec_kernel(flat_ref, encw_ref, encb_ref, emb_ref,
                   wih0e_ref, wih0f_ref, whh0_ref, b0_ref,
                   w1cat_ref, b1_ref, wfc_ref, bfc_ref,
                   out_ref, hs_ref):
    """Fused encoder-head + DecoderRNN.forward hot path.

    flat:(B,2048) encw:(2048,E) encb:(1,E)
    emb:(T*B,E)  -- row index t*B + s (caption position t, batch row s)
    layer0: wih0e:(E,4H) wih0f:(E,4H) whh0:(H,4H) b0:(1,4H)   [b = bias_ih + bias_hh]
    layer1 fused: w1cat:(2H,4H) b1:(1,4H)   (x1 = [h0_new, h1_old] @ w1cat)
    fc_out: wfc:(H,Vpad) bfc:(1,Vpad)       (zero-padded beyond VOCAB)
    out:(B,T,Vpad)   hs scratch:(B*T,H)     -- row index s*T + t
    PyTorch gate order [i, f, g, o].
    """
    B, T, Vp = out_ref.shape
    H = whh0_ref.shape[0]

    # ----- encoder head (fused): ReLU(Linear(2048 -> E)) -----
    feats = jnp.maximum(
        jnp.dot(flat_ref[...], encw_ref[...], preferred_element_type=jnp.float32)
        + encb_ref[...], 0.0)                                                    # (B, E)

    whh0 = whh0_ref[...]
    w1cat = w1cat_ref[...]
    b1 = b1_ref[...]

    # features half of the layer-0 input projection is constant across t.
    feat_proj = (jnp.dot(feats, wih0f_ref[...], preferred_element_type=jnp.float32)
                 + b0_ref[...])                                                  # (B, 4H)
    # Hoisted layer-0 input projection for ALL (t, s) pairs: one matmul off the
    # recurrent critical path.  Row t*B + s gets feat_proj[s].
    xp0_all = (jnp.dot(emb_ref[...], wih0e_ref[...], preferred_element_type=jnp.float32)
               + jnp.tile(feat_proj, (T, 1)))                                    # (T*B, 4H)

    z = jnp.zeros((1, H), jnp.float32)
    h0, c0, h1, c1 = z, z, z, z
    # nn.LSTM receives a 2-D (B, 2E) input per caption position => unbatched sequence of
    # length B: sequential scan over batch rows; 2-layer state carried across rows AND
    # across caption positions (cell_state feedback).  Fully unrolled (T*B = 16 static).
    for t in range(T):
        for s in range(B):
            idx = t * B + s
            # ---- layer 0 cell (input projection hoisted; only the hh matmul remains) ----
            g0 = xp0_all[idx:idx + 1, :] + jnp.dot(
                h0, whh0, preferred_element_type=jnp.float32)                    # (1, 4H)
            s0 = jax.nn.sigmoid(g0)          # one EUP push on the full 128-lane vector
            t0 = jnp.tanh(g0)
            c0 = s0[:, H:2 * H] * c0 + s0[:, 0:H] * t0[:, 2 * H:3 * H]
            h0 = s0[:, 3 * H:4 * H] * jnp.tanh(c0)
            # ---- layer 1 cell: ih & hh matmuls fused into one (1,2H)@(2H,4H) ----
            g1 = jnp.dot(jnp.concatenate([h0, h1], axis=1), w1cat,
                         preferred_element_type=jnp.float32) + b1                # (1, 4H)
            s1 = jax.nn.sigmoid(g1)
            t1 = jnp.tanh(g1)
            c1 = s1[:, H:2 * H] * c1 + s1[:, 0:H] * t1[:, 2 * H:3 * H]
            h1 = s1[:, 3 * H:4 * H] * jnp.tanh(c1)
            # Stash the LSTM output row; fc_out is applied once after the recurrence.
            # Index s*T + t so the final reshape is already in (B, T, V) order.
            hs_ref[pl.ds(s * T + t, 1), :] = h1

    # ----- fc_out: one lane-dense matmul + one contiguous store -----
    logits = (jnp.dot(hs_ref[...], wfc_ref[...], preferred_element_type=jnp.float32)
              + bfc_ref[...])                                                    # (B*T, Vp)
    out_ref[...] = logits.reshape(B, T, Vp)


def encoder_decoder_pallas(flat, emb_flat, B, T, p):
    return pl.pallas_call(
        enc_dec_kernel,
        out_shape=jax.ShapeDtypeStruct((B, T, V_PAD), jnp.float32),
        in_specs=[_VMEM] * 12,
        out_specs=_VMEM,
        scratch_shapes=[pltpu.VMEM((B * T, HIDDEN), jnp.float32)],
    )(flat, p["enc_w_t"], p["enc_b"], emb_flat,
      p["wih0e_t"], p["wih0f_t"], p["whh0_t"], p["b0"],
      p["w1cat_t"], p["b1"], p["wfc_pad"], p["bfc_pad"])


# ========================= ResNet-50 backbone (JAX glue) =========================
def _conv(x, w, stride=1, pad=0):
    return lax.conv_general_dilated(
        x, w, (stride, stride), [(pad, pad), (pad, pad)],
        dimension_numbers=("NCHW", "OIHW", "NCHW"))


def _bn(x):
    # eval-mode BatchNorm with synthetic stats gamma=1, beta=0, mean=0, var=1.
    return x * (1.0 / jnp.sqrt(1.0 + 1e-5))


def _maxpool(x):
    return lax.reduce_window(
        x, -jnp.inf, lax.max,
        window_dimensions=(1, 1, 3, 3),
        window_strides=(1, 1, 2, 2),
        padding=[(0, 0), (0, 0), (1, 1), (1, 1)])


def _he(key, shape):
    fan_in = shape[1] * shape[2] * shape[3]
    return jax.random.normal(key, shape, jnp.float32) * (0.5 * math.sqrt(2.0 / fan_in))


def init_resnet50(key):
    keys = iter(jax.random.split(key, 64))
    params = {"conv1": _he(next(keys), (64, 3, 7, 7))}
    layers = []
    inplanes = 64
    for planes, blocks, stride in [(64, 3, 1), (128, 4, 2), (256, 6, 2), (512, 3, 2)]:
        blks = []
        for b in range(blocks):
            s = stride if b == 0 else 1
            blk = {
                "stride": s,
                "w1": _he(next(keys), (planes, inplanes, 1, 1)),
                "w2": _he(next(keys), (planes, planes, 3, 3)),
                "w3": _he(next(keys), (planes * 4, planes, 1, 1)),
            }
            if s != 1 or inplanes != planes * 4:
                blk["wd"] = _he(next(keys), (planes * 4, inplanes, 1, 1))
            blks.append(blk)
            inplanes = planes * 4
        layers.append(blks)
    params["layers"] = layers
    return params


def resnet50_backbone(x, p):
    # TODO(synk): pretrained ResNet50_Weights + BN running stats replaced by deterministic
    # synthetic parameters (checkpoint loads are out of scope for this kernel).
    x = jax.nn.relu(_bn(_conv(x, p["conv1"], stride=2, pad=3)))
    x = _maxpool(x)
    for blks in p["layers"]:
        for blk in blks:
            idt = x
            out = jax.nn.relu(_bn(_conv(x, blk["w1"])))
            out = jax.nn.relu(_bn(_conv(out, blk["w2"], stride=blk["stride"], pad=1)))
            out = _bn(_conv(out, blk["w3"]))
            if "wd" in blk:
                idt = _bn(_conv(x, blk["wd"], stride=blk["stride"]))
            x = jax.nn.relu(out + idt)
    x = jnp.mean(x, axis=(2, 3), keepdims=True)        # AdaptiveAvgPool2d((1,1))
    return x


# =============================== parameter init ===============================
def init_params(key):
    ks = iter(jax.random.split(key, 32))
    p = {"resnet": init_resnet50(next(ks))}

    # Encoder head: Linear(2048 -> EMBED)
    k_lin = 1.0 / math.sqrt(2048.0)
    p["enc_w_t"] = jax.random.uniform(next(ks), (2048, EMBED), jnp.float32, -k_lin, k_lin)
    p["enc_b"] = jax.random.uniform(next(ks), (1, EMBED), jnp.float32, -k_lin, k_lin)

    # Embedding(VOCAB, EMBED)
    p["embed"] = jax.random.normal(next(ks), (VOCAB, EMBED), jnp.float32)

    # 2-layer LSTM (PyTorch layout: weight_ih (4H, in), weight_hh (4H, H), gate order ifgo)
    kH = 1.0 / math.sqrt(HIDDEN)

    def u(kk, shape):
        return jax.random.uniform(kk, shape, jnp.float32, -kH, kH)

    wih0 = u(next(ks), (4 * HIDDEN, 2 * EMBED))
    whh0 = u(next(ks), (4 * HIDDEN, HIDDEN))
    bih0 = u(next(ks), (4 * HIDDEN,))
    bhh0 = u(next(ks), (4 * HIDDEN,))
    wih1 = u(next(ks), (4 * HIDDEN, HIDDEN))
    whh1 = u(next(ks), (4 * HIDDEN, HIDDEN))
    bih1 = u(next(ks), (4 * HIDDEN,))
    bhh1 = u(next(ks), (4 * HIDDEN,))

    wih0_t = wih0.T                                   # (2E, 4H)
    p["wih0e_t"] = wih0_t[:EMBED, :]                  # embedding half of concat input
    p["wih0f_t"] = wih0_t[EMBED:, :]                  # features half of concat input
    p["whh0_t"] = whh0.T
    p["b0"] = (bih0 + bhh0)[None, :]
    # layer-1 ih & hh weights fused: [h0_new, h1_old] @ w1cat == h0@wih1.T + h1@whh1.T
    p["w1cat_t"] = jnp.concatenate([wih1.T, whh1.T], axis=0)   # (2H, 4H)
    p["b1"] = (bih1 + bhh1)[None, :]

    # fc_out: Linear(HIDDEN -> VOCAB), zero-padded to a lane-dense 128-wide tile.
    wfc = u(next(ks), (VOCAB, HIDDEN))
    bfc = u(next(ks), (VOCAB,))
    p["wfc_pad"] = jnp.zeros((HIDDEN, V_PAD), jnp.float32).at[:, :VOCAB].set(wfc.T)
    p["bfc_pad"] = jnp.zeros((1, V_PAD), jnp.float32).at[:, :VOCAB].set(bfc[None, :])
    return p


# =============================== full forward ===============================
def encoder_decoder_forward(images, captions, params):
    # ----- Encoder backbone (plain JAX) -----
    fmap = resnet50_backbone(images, params["resnet"])          # (B, 2048, 1, 1)
    flat = fmap.reshape(images.shape[0], -1)                    # (B, 2048)

    # ----- Teacher-forcing inputs: prepend token 0, use positions 0..Tc-1 -----
    B, Tc = captions.shape
    padded = jnp.concatenate(
        [jnp.zeros((B, 1), dtype=captions.dtype), captions], axis=1)          # (B, Tc+1)
    emb = jnp.take(params["embed"], padded, axis=0)                           # (B, Tc+1, E)
    # Row-major (t, s) layout: row t*B + s  -> matches the hoisted projection in-kernel.
    emb_flat = jnp.transpose(emb[:, :Tc, :], (1, 0, 2)).reshape(Tc * B, EMBED)
    emb_flat = emb_flat.astype(jnp.float32)

    # ----- Fused encoder-head + decoder Pallas kernel (single launch, no grid) -----
    out_pad = encoder_decoder_pallas(flat, emb_flat, B, Tc, params)           # (B, Tc, 128)
    return out_pad[:, :, :VOCAB]                                              # (B, Tc, V)


if __name__ == "__main__":
    root = jax.random.PRNGKey(0)
    k_img, k_cap, k_par = jax.random.split(root, 3)

    images = jax.random.normal(k_img, (BATCH, 3, IMG_HW, IMG_HW), jnp.float32)
    captions = jax.random.randint(k_cap, (BATCH, CAP_LEN), 0, VOCAB, jnp.int32)
    params = init_params(k_par)

    out = encoder_decoder_forward(images, captions, params)
    out = jax.block_until_ready(out)

    assert out.shape == (BATCH, CAP_LEN, VOCAB), out.shape
    assert bool(jnp.all(jnp.isfinite(out)))
    print("KERNEL_OK")
</pallas_src>

<mosaic_0001>
module attributes {stable_mosaic.version = 11 : i64} {
  func.func @enc_dec_kernel(%arg0: memref<2x2048xf32, #tpu.memory_space<vmem>>, %arg1: memref<2048x32xf32, #tpu.memory_space<vmem>>, %arg2: memref<1x32xf32, #tpu.memory_space<vmem>>, %arg3: memref<16x32xf32, #tpu.memory_space<vmem>>, %arg4: memref<32x128xf32, #tpu.memory_space<vmem>>, %arg5: memref<32x128xf32, #tpu.memory_space<vmem>>, %arg6: memref<32x128xf32, #tpu.memory_space<vmem>>, %arg7: memref<1x128xf32, #tpu.memory_space<vmem>>, %arg8: memref<64x128xf32, #tpu.memory_space<vmem>>, %arg9: memref<1x128xf32, #tpu.memory_space<vmem>>, %arg10: memref<32x128xf32, #tpu.memory_space<vmem>>, %arg11: memref<1x128xf32, #tpu.memory_space<vmem>>, %arg12: memref<2x8x128xf32, #tpu.memory_space<vmem>>, %arg13: memref<16x32xf32, #tpu.memory_space<vmem>>) attributes {dimension_semantics = [], scalar_prefetch = 0 : i64, scratch_operands = 1 : i64, tpu.core_type = #tpu.core_type<tc>} {
    %c0 = arith.constant 0 : index
    %c0_0 = arith.constant 0 : index
    %0 = vector.load %arg0[%c0, %c0_0] : memref<2x2048xf32, #tpu.memory_space<vmem>>, vector<2x2048xf32>
    %c0_1 = arith.constant 0 : index
    %c0_2 = arith.constant 0 : index
    %1 = vector.load %arg1[%c0_1, %c0_2] : memref<2048x32xf32, #tpu.memory_space<vmem>>, vector<2048x32xf32>
    %cst = arith.constant dense<0.000000e+00> : vector<2x32xf32>
    %2 = tpu.matmul %0, %1, %cst {dimension_numbers = #tpu.dot_dimension_numbers<[1], [0], [0], [1], [0, 0, 1, 1], [], []>} : vector<2x2048xf32>, vector<2048x32xf32>, vector<2x32xf32> -> vector<2x32xf32>
    %c0_3 = arith.constant 0 : index
    %c0_4 = arith.constant 0 : index
    %3 = vector.load %arg2[%c0_3, %c0_4] : memref<1x32xf32, #tpu.memory_space<vmem>>, vector<1x32xf32>
    %4 = vector.broadcast %3 : vector<1x32xf32> to vector<2x32xf32>
    %5 = arith.addf %2, %4 : vector<2x32xf32>
    %cst_5 = arith.constant 0.000000e+00 : f32
    %6 = vector.broadcast %cst_5 : f32 to vector<2x32xf32>
    %7 = arith.maximumf %5, %6 : vector<2x32xf32>
    %c0_6 = arith.constant 0 : index
    %c0_7 = arith.constant 0 : index
    %8 = vector.load %arg6[%c0_6, %c0_7] : memref<32x128xf32, #tpu.memory_space<vmem>>, vector<32x128xf32>
    %c0_8 = arith.constant 0 : index
    %c0_9 = arith.constant 0 : index
    %9 = vector.load %arg8[%c0_8, %c0_9] : memref<64x128xf32, #tpu.memory_space<vmem>>, vector<64x128xf32>
    %c0_10 = arith.constant 0 : index
    %c0_11 = arith.constant 0 : index
    %10 = vector.load %arg9[%c0_10, %c0_11] : memref<1x128xf32, #tpu.memory_space<vmem>>, vector<1x128xf32>
    %c0_12 = arith.constant 0 : index
    %c0_13 = arith.constant 0 : index
    %11 = vector.load %arg5[%c0_12, %c0_13] : memref<32x128xf32, #tpu.memory_space<vmem>>, vector<32x128xf32>
    %cst_14 = arith.constant dense<0.000000e+00> : vector<2x128xf32>
    %12 = tpu.matmul %7, %11, %cst_14 {dimension_numbers = #tpu.dot_dimension_numbers<[1], [0], [0], [1], [0, 0, 1, 1], [], []>} : vector<2x32xf32>, vector<32x128xf32>, vector<2x128xf32> -> vector<2x128xf32>
    %c0_15 = arith.constant 0 : index
    %c0_16 = arith.constant 0 : index
    %13 = vector.load %arg7[%c0_15, %c0_16] : memref<1x128xf32, #tpu.memory_space<vmem>>, vector<1x128xf32>
    %14 = vector.broadcast %13 : vector<1x128xf32> to vector<2x128xf32>
    %15 = arith.addf %12, %14 : vector<2x128xf32>
    %c0_17 = arith.constant 0 : index
    %c0_18 = arith.constant 0 : index
    %16 = vector.load %arg3[%c0_17, %c0_18] : memref<16x32xf32, #tpu.memory_space<vmem>>, vector<16x32xf32>
    %c0_19 = arith.constant 0 : index
    %c0_20 = arith.constant 0 : index
    %17 = vector.load %arg4[%c0_19, %c0_20] : memref<32x128xf32, #tpu.memory_space<vmem>>, vector<32x128xf32>
    %cst_21 = arith.constant dense<0.000000e+00> : vector<16x128xf32>
    %18 = tpu.matmul %16, %17, %cst_21 {dimension_numbers = #tpu.dot_dimension_numbers<[1], [0], [0], [1], [0, 0, 1, 1], [], []>} : vector<16x32xf32>, vector<32x128xf32>, vector<16x128xf32> -> vector<16x128xf32>
    %19 = tpu.concatenate %15, %15, %15, %15, %15, %15, %15, %15 in 0 : vector<2x128xf32>, vector<2x128xf32>, vector<2x128xf32>, vector<2x128xf32>, vector<2x128xf32>, vector<2x128xf32>, vector<2x128xf32>, vector<2x128xf32> -> vector<16x128xf32>
    %20 = arith.addf %18, %19 : vector<16x128xf32>
    %cst_22 = arith.constant 0.000000e+00 : f32
    %21 = vector.broadcast %cst_22 : f32 to vector<1x32xf32>
    %22 = vector.extract_strided_slice %20 {offsets = [0, 0], sizes = [1, 128], strides = [1, 1]} : vector<16x128xf32> to vector<1x128xf32>
    %cst_23 = arith.constant dense<0.000000e+00> : vector<1x128xf32>
    %23 = tpu.matmul %21, %8, %cst_23 {dimension_numbers = #tpu.dot_dimension_numbers<[1], [0], [0], [1], [0, 0, 1, 1], [], []>} : vector<1x32xf32>, vector<32x128xf32>, vector<1x128xf32> -> vector<1x128xf32>
    %24 = arith.addf %22, %23 : vector<1x128xf32>
    %25 = arith.negf %24 : vector<1x128xf32>
    %26 = math.exp %25 : vector<1x128xf32>
    %cst_24 = arith.constant 1.000000e+00 : f32
    %27 = vector.broadcast %cst_24 : f32 to vector<1x128xf32>
    %28 = arith.addf %27, %26 : vector<1x128xf32>
    %29 = arith.divf %27, %28 : vector<1x128xf32>
    %30 = math.tanh %24 : vector<1x128xf32>
    %31 = vector.extract_strided_slice %29 {offsets = [0, 32], sizes = [1, 32], strides = [1, 1]} : vector<1x128xf32> to vector<1x32xf32>
    %32 = arith.mulf %31, %21 : vector<1x32xf32>
    %33 = vector.extract_strided_slice %29 {offsets = [0, 0], sizes = [1, 32], strides = [1, 1]} : vector<1x128xf32> to vector<1x32xf32>
    %34 = vector.extract_strided_slice %30 {offsets = [0, 64], sizes = [1, 32], strides = [1, 1]} : vector<1x128xf32> to vector<1x32xf32>
    %35 = arith.mulf %33, %34 : vector<1x32xf32>
    %36 = arith.addf %32, %35 : vector<1x32xf32>
    %37 = vector.extract_strided_slice %29 {offsets = [0, 96], sizes = [1, 32], strides = [1, 1]} : vector<1x128xf32> to vector<1x32xf32>
    %38 = math.tanh %36 : vector<1x32xf32>
    %39 = arith.mulf %37, %38 : vector<1x32xf32>
    %40 = tpu.concatenate %39, %21 in 1 : vector<1x32xf32>, vector<1x32xf32> -> vector<1x64xf32>
    %cst_25 = arith.constant dense<0.000000e+00> : vector<1x128xf32>
    %41 = tpu.matmul %40, %9, %cst_25 {dimension_numbers = #tpu.dot_dimension_numbers<[1], [0], [0], [1], [0, 0, 1, 1], [], []>} : vector<1x64xf32>, vector<64x128xf32>, vector<1x128xf32> -> vector<1x128xf32>
    %42 = arith.addf %41, %10 : vector<1x128xf32>
    %43 = arith.negf %42 : vector<1x128xf32>
    %44 = math.exp %43 : vector<1x128xf32>
    %cst_26 = arith.constant 1.000000e+00 : f32
    %45 = vector.broadcast %cst_26 : f32 to vector<1x128xf32>
    %46 = arith.addf %45, %44 : vector<1x128xf32>
    %47 = arith.divf %45, %46 : vector<1x128xf32>
    %48 = math.tanh %42 : vector<1x128xf32>
    %49 = vector.extract_strided_slice %47 {offsets = [0, 32], sizes = [1, 32], strides = [1, 1]} : vector<1x128xf32> to vector<1x32xf32>
    %50 = arith.mulf %49, %21 : vector<1x32xf32>
    %51 = vector.extract_strided_slice %47 {offsets = [0, 0], sizes = [1, 32], strides = [1, 1]} : vector<1x128xf32> to vector<1x32xf32>
    %52 = vector.extract_strided_slice %48 {offsets = [0, 64], sizes = [1, 32], strides = [1, 1]} : vector<1x128xf32> to vector<1x32xf32>
    %53 = arith.mulf %51, %52 : vector<1x32xf32>
    %54 = arith.addf %50, %53 : vector<1x32xf32>
    %55 = vector.extract_strided_slice %47 {offsets = [0, 96], sizes = [1, 32], strides = [1, 1]} : vector<1x128xf32> to vector<1x32xf32>
    %56 = math.tanh %54 : vector<1x32xf32>
    %57 = arith.mulf %55, %56 : vector<1x32xf32>
    %c0_27 = arith.constant 0 : index
    %c0_28 = arith.constant 0 : index
    %58 = vector.load %arg13[%c0_27, %c0_28] : memref<16x32xf32, #tpu.memory_space<vmem>>, vector<1x32xf32>
    tpu.vector_store %arg13[%c0_27, %c0_28], %57 {strides = array<i32>} : memref<16x32xf32, #tpu.memory_space<vmem>>, vector<1x32xf32>,
    %59 = vector.extract_strided_slice %20 {offsets = [1, 0], sizes = [1, 128], strides = [1, 1]} : vector<16x128xf32> to vector<1x128xf32>
    %cst_29 = arith.constant dense<0.000000e+00> : vector<1x128xf32>
    %60 = tpu.matmul %39, %8, %cst_29 {dimension_numbers = #tpu.dot_dimension_numbers<[1], [0], [0], [1], [0, 0, 1, 1], [], []>} : vector<1x32xf32>, vector<32x128xf32>, vector<1x128xf32> -> vector<1x128xf32>
    %61 = arith.addf %59, %60 : vector<1x128xf32>
    %62 = arith.negf %61 : vector<1x128xf32>
    %63 = math.exp %62 : vector<1x128xf32>
    %cst_30 = arith.constant 1.000000e+00 : f32
    %64 = vector.broadcast %cst_30 : f32 to vector<1x128xf32>
    %65 = arith.addf %64, %63 : vector<1x128xf32>
    %66 = arith.divf %64, %65 : vector<1x128xf32>
    %67 = math.tanh %61 : vector<1x128xf32>
    %68 = vector.extract_strided_slice %66 {offsets = [0, 32], sizes = [1, 32], strides = [1, 1]} : vector<1x128xf32> to vector<1x32xf32>
    %69 = arith.mulf %68, %36 : vector<1x32xf32>
    %70 = vector.extract_strided_slice %66 {offsets = [0, 0], sizes = [1, 32], strides = [1, 1]} : vector<1x128xf32> to vector<1x32xf32>
    %71 = vector.extract_strided_slice %67 {offsets = [0, 64], sizes = [1, 32], strides = [1, 1]} : vector<1x128xf32> to vector<1x32xf32>
    %72 = arith.mulf %70, %71 : vector<1x32xf32>
    %73 = arith.addf %69, %72 : vector<1x32xf32>
    %74 = vector.extract_strided_slice %66 {offsets = [0, 96], sizes = [1, 32], strides = [1, 1]} : vector<1x128xf32> to vector<1x32xf32>
    %75 = math.tanh %73 : vector<1x32xf32>
    %76 = arith.mulf %74, %75 : vector<1x32xf32>
    %77 = tpu.concatenate %76, %57 in 1 : vector<1x32xf32>, vector<1x32xf32> -> vector<1x64xf32>
    %cst_31 = arith.constant dense<0.000000e+00> : vector<1x128xf32>
    %78 = tpu.matmul %77, %9, %cst_31 {dimension_numbers = #tpu.dot_dimension_numbers<[1], [0], [0], [1], [0, 0, 1, 1], [], []>} : vector<1x64xf32>, vector<64x128xf32>, vector<1x128xf32> -> vector<1x128xf32>
    %79 = arith.addf %78, %10 : vector<1x128xf32>
    %80 = arith.negf %79 : vector<1x128xf32>
    %81 = math.exp %80 : vector<1x128xf32>
    %cst_32 = arith.constant 1.000000e+00 : f32
    %82 = vector.broadcast %cst_32 : f32 to vector<1x128xf32>
    %83 = arith.addf %82, %81 : vector<1x128xf32>
    %84 = arith.divf %82, %83 : vector<1x128xf32>
    %85 = math.tanh %79 : vector<1x128xf32>
    %86 = vector.extract_strided_slice %84 {offsets = [0, 32], sizes = [1, 32], strides = [1, 1]} : vector<1x128xf32> to vector<1x32xf32>
    %87 = arith.mulf %86, %54 : vector<1x32xf32>
    %88 = vector.extract_strided_slice %84 {offsets = [0, 0], sizes = [1, 32], strides = [1, 1]} : vector<1x128xf32> to vector<1x32xf32>
    %89 = vector.extract_strided_slice %85 {offsets = [0, 64], sizes = [1, 32], strides = [1, 1]} : vector<1x128xf32> to vector<1x32xf32>
    %90 = arith.mulf %88, %89 : vector<1x32xf32>
    %91 = arith.addf %87, %90 : vector<1x32xf32>
    %92 = vector.extract_strided_slice %84 {offsets = [0, 96], sizes = [1, 32], strides = [1, 1]} : vector<1x128xf32> to vector<1x32xf32>
    %93 = math.tanh %91 : vector<1x32xf32>
    %94 = arith.mulf %92, %93 : vector<1x32xf32>
    %c8 = arith.constant 8 : index
    %c0_33 = arith.constant 0 : index
    %95 = vector.load %arg13[%c8, %c0_33] : memref<16x32xf32, #tpu.memory_space<vmem>>, vector<1x32xf32>
    tpu.vector_store %arg13[%c8, %c0_33], %94 {strides = array<i32>} : memref<16x32xf32, #tpu.memory_space<vmem>>, vector<1x32xf32>,
    %96 = vector.extract_strided_slice %20 {offsets = [2, 0], sizes = [1, 128], strides = [1, 1]} : vector<16x128xf32> to vector<1x128xf32>
    %cst_34 = arith.constant dense<0.000000e+00> : vector<1x128xf32>
    %97 = tpu.matmul %76, %8, %cst_34 {dimension_numbers = #tpu.dot_dimension_numbers<[1], [0], [0], [1], [0, 0, 1, 1], [], []>} : vector<1x32xf32>, vector<32x128xf32>, vector<1x128xf32> -> vector<1x128xf32>
    %98 = arith.addf %96, %97 : vector<1x128xf32>
    %99 = arith.negf %98 : vector<1x128xf32>
    %100 = math.exp %99 : vector<1x128xf32>
    %cst_35 = arith.constant 1.000000e+00 : f32
    %101 = vector.broadcast %cst_35 : f32 to vector<1x128xf32>
    %102 = arith.addf %101, %100 : vector<1x128xf32>
    %103 = arith.divf %101, %102 : vector<1x128xf32>
    %104 = math.tanh %98 : vector<1x128xf32>
    %105 = vector.extract_strided_slice %103 {offsets = [0, 32], sizes = [1, 32], strides = [1, 1]} : vector<1x128xf32> to vector<1x32xf32>
    %106 = arith.mulf %105, %73 : vector<1x32xf32>
    %107 = vector.extract_strided_slice %103 {offsets = [0, 0], sizes = [1, 32], strides = [1, 1]} : vector<1x128xf32> to vector<1x32xf32>
    %108 = vector.extract_strided_slice %104 {offsets = [0, 64], sizes = [1, 32], strides = [1, 1]} : vector<1x128xf32> to vector<1x32xf32>
    %109 = arith.mulf %107, %108 : vector<1x32xf32>
    %110 = arith.addf %106, %109 : vector<1x32xf32>
    %111 = vector.extract_strided_slice %103 {offsets = [0, 96], sizes = [1, 32], strides = [1, 1]} : vector<1x128xf32> to vector<1x32xf32>
    %112 = math.tanh %110 : vector<1x32xf32>
    %113 = arith.mulf %111, %112 : vector<1x32xf32>
    %114 = tpu.concatenate %113, %94 in 1 : vector<1x32xf32>, vector<1x32xf32> -> vector<1x64xf32>
    %cst_36 = arith.constant dense<0.000000e+00> : vector<1x128xf32>
    %115 = tpu.matmul %114, %9, %cst_36 {dimension_numbers = #tpu.dot_dimension_numbers<[1], [0], [0], [1], [0, 0, 1, 1], [], []>} : vector<1x64xf32>, vector<64x128xf32>, vector<1x128xf32> -> vector<1x128xf32>
    %116 = arith.addf %115, %10 : vector<1x128xf32>
    %117 = arith.negf %116 : vector<1x128xf32>
    %118 = math.exp %117 : vector<1x128xf32>
    %cst_37 = arith.constant 1.000000e+00 : f32
    %119 = vector.broadcast %cst_37 : f32 to vector<1x128xf32>
    %120 = arith.addf %119, %118 : vector<1x128xf32>
    %121 = arith.divf %119, %120 : vector<1x128xf32>
    %122 = math.tanh %116 : vector<1x128xf32>
    %123 = vector.extract_strided_slice %121 {offsets = [0, 32], sizes = [1, 32], strides = [1, 1]} : vector<1x128xf32> to vector<1x32xf32>
    %124 = arith.mulf %123, %91 : vector<1x32xf32>
    %125 = vector.extract_strided_slice %121 {offsets = [0, 0], sizes = [1, 32], strides = [1, 1]} : vector<1x128xf32> to vector<1x32xf32>
    %126 = vector.extract_strided_slice %122 {offsets = [0, 64], sizes = [1, 32], strides = [1, 1]} : vector<1x128xf32> to vector<1x32xf32>
    %127 = arith.mulf %125, %126 : vector<1x32xf32>
    %128 = arith.addf %124, %127 : vector<1x32xf32>
    %129 = vector.extract_strided_slice %121 {offsets = [0, 96], sizes = [1, 32], strides = [1, 1]} : vector<1x128xf32> to vector<1x32xf32>
    %130 = math.tanh %128 : vector<1x32xf32>
    %131 = arith.mulf %129, %130 : vector<1x32xf32>
    %c1 = arith.constant 1 : index
    %c0_38 = arith.constant 0 : index
    %132 = vector.load %arg13[%c1, %c0_38] : memref<16x32xf32, #tpu.memory_space<vmem>>, vector<1x32xf32>
    tpu.vector_store %arg13[%c1, %c0_38], %131 {strides = array<i32>} : memref<16x32xf32, #tpu.memory_space<vmem>>, vector<1x32xf32>,
    %133 = vector.extract_strided_slice %20 {offsets = [3, 0], sizes = [1, 128], strides = [1, 1]} : vector<16x128xf32> to vector<1x128xf32>
    %cst_39 = arith.constant dense<0.000000e+00> : vector<1x128xf32>
    %134 = tpu.matmul %113, %8, %cst_39 {dimension_numbers = #tpu.dot_dimension_numbers<[1], [0], [0], [1], [0, 0, 1, 1], [], []>} : vector<1x32xf32>, vector<32x128xf32>, vector<1x128xf32> -> vector<1x128xf32>
    %135 = arith.addf %133, %134 : vector<1x128xf32>
    %136 = arith.negf %135 : vector<1x128xf32>
    %137 = math.exp %136 : vector<1x128xf32>
    %cst_40 = arith.constant 1.000000e+00 : f32
    %138 = vector.broadcast %cst_40 : f32 to vector<1x128xf32>
    %139 = arith.addf %138, %137 : vector<1x128xf32>
    %140 = arith.divf %138, %139 : vector<1x128xf32>
    %141 = math.tanh %135 : vector<1x128xf32>
    %142 = vector.extract_strided_slice %140 {offsets = [0, 32], sizes = [1, 32], strides = [1, 1]} : vector<1x128xf32> to vector<1x32xf32>
    %143 = arith.mulf %142, %110 : vector<1x32xf32>
    %144 = vector.extract_strided_slice %140 {offsets = [0, 0], sizes = [1, 32], strides = [1, 1]} : vector<1x128xf32> to vector<1x32xf32>
    %145 = vector.extract_strided_slice %141 {offsets = [0, 64], sizes = [1, 32], strides = [1, 1]} : vector<1x128xf32> to vector<1x32xf32>
    %146 = arith.mulf %144, %145 : vector<1x32xf32>
    %147 = arith.addf %143, %146 : vector<1x32xf32>
    %148 = vector.extract_strided_slice %140 {offsets = [0, 96], sizes = [1, 32], strides = [1, 1]} : vector<1x128xf32> to vector<1x32xf32>
    %149 = math.tanh %147 : vector<1x32xf32>
    %150 = arith.mulf %148, %149 : vector<1x32xf32>
    %151 = tpu.concatenate %150, %131 in 1 : vector<1x32xf32>, vector<1x32xf32> -> vector<1x64xf32>
    %cst_41 = arith.constant dense<0.000000e+00> : vector<1x128xf32>
    %152 = tpu.matmul %151, %9, %cst_41 {dimension_numbers = #tpu.dot_dimension_numbers<[1], [0], [0], [1], [0, 0, 1, 1], [], []>} : vector<1x64xf32>, vector<64x128xf32>, vector<1x128xf32> -> vector<1x128xf32>
    %153 = arith.addf %152, %10 : vector<1x128xf32>
    %154 = arith.negf %153 : vector<1x128xf32>
    %155 = math.exp %154 : vector<1x128xf32>
    %cst_42 = arith.constant 1.000000e+00 : f32
    %156 = vector.broadcast %cst_42 : f32 to vector<1x128xf32>
    %157 = arith.addf %156, %155 : vector<1x128xf32>
    %158 = arith.divf %156, %157 : vector<1x128xf32>
    %159 = math.tanh %153 : vector<1x128xf32>
    %160 = vector.extract_strided_slice %158 {offsets = [0, 32], sizes = [1, 32], strides = [1, 1]} : vector<1x128xf32> to vector<1x32xf32>
    %161 = arith.mulf %160, %128 : vector<1x32xf32>
    %162 = vector.extract_strided_slice %158 {offsets = [0, 0], sizes = [1, 32], strides = [1, 1]} : vector<1x128xf32> to vector<1x32xf32>
    %163 = vector.extract_strided_slice %159 {offsets = [0, 64], sizes = [1, 32], strides = [1, 1]} : vector<1x128xf32> to vector<1x32xf32>
    %164 = arith.mulf %162, %163 : vector<1x32xf32>
    %165 = arith.addf %161, %164 : vector<1x32xf32>
    %166 = vector.extract_strided_slice %158 {offsets = [0, 96], sizes = [1, 32], strides = [1, 1]} : vector<1x128xf32> to vector<1x32xf32>
    %167 = math.tanh %165 : vector<1x32xf32>
    %168 = arith.mulf %166, %167 : vector<1x32xf32>
    %c9 = arith.constant 9 : index
    %c0_43 = arith.constant 0 : index
    %169 = vector.load %arg13[%c9, %c0_43] : memref<16x32xf32, #tpu.memory_space<vmem>>, vector<1x32xf32>
    tpu.vector_store %arg13[%c9, %c0_43], %168 {strides = array<i32>} : memref<16x32xf32, #tpu.memory_space<vmem>>, vector<1x32xf32>,
    %170 = vector.extract_strided_slice %20 {offsets = [4, 0], sizes = [1, 128], strides = [1, 1]} : vector<16x128xf32> to vector<1x128xf32>
    %cst_44 = arith.constant dense<0.000000e+00> : vector<1x128xf32>
    %171 = tpu.matmul %150, %8, %cst_44 {dimension_numbers = #tpu.dot_dimension_numbers<[1], [0], [0], [1], [0, 0, 1, 1], [], []>} : vector<1x32xf32>, vector<32x128xf32>, vector<1x128xf32> -> vector<1x128xf32>
    %172 = arith.addf %170, %171 : vector<1x128xf32>
    %173 = arith.negf %172 : vector<1x128xf32>
    %174 = math.exp %173 : vector<1x128xf32>
    %cst_45 = arith.constant 1.000000e+00 : f32
    %175 = vector.broadcast %cst_45 : f32 to vector<1x128xf32>
    %176 = arith.addf %175, %174 : vector<1x128xf32>
    %177 = arith.divf %175, %176 : vector<1x128xf32>
    %178 = math.tanh %172 : vector<1x128xf32>
    %179 = vector.extract_strided_slice %177 {offsets = [0, 32], sizes = [1, 32], strides = [1, 1]} : vector<1x128xf32> to vector<1x32xf32>
    %180 = arith.mulf %179, %147 : vector<1x32xf32>
    %181 = vector.extract_strided_slice %177 {offsets = [0, 0], sizes = [1, 32], strides = [1, 1]} : vector<1x128xf32> to vector<1x32xf32>
    %182 = vector.extract_strided_slice %178 {offsets = [0, 64], sizes = [1, 32], strides = [1, 1]} : vector<1x128xf32> to vector<1x32xf32>
    %183 = arith.mulf %181, %182 : vector<1x32xf32>
    %184 = arith.addf %180, %183 : vector<1x32xf32>
    %185 = vector.extract_strided_slice %177 {offsets = [0, 96], sizes = [1, 32], strides = [1, 1]} : vector<1x128xf32> to vector<1x32xf32>
    %186 = math.tanh %184 : vector<1x32xf32>
    %187 = arith.mulf %185, %186 : vector<1x32xf32>
    %188 = tpu.concatenate %187, %168 in 1 : vector<1x32xf32>, vector<1x32xf32> -> vector<1x64xf32>
    %cst_46 = arith.constant dense<0.000000e+00> : vector<1x128xf32>
    %189 = tpu.matmul %188, %9, %cst_46 {dimension_numbers = #tpu.dot_dimension_numbers<[1], [0], [0], [1], [0, 0, 1, 1], [], []>} : vector<1x64xf32>, vector<64x128xf32>, vector<1x128xf32> -> vector<1x128xf32>
    %190 = arith.addf %189, %10 : vector<1x128xf32>
    %191 = arith.negf %190 : vector<1x128xf32>
    %192 = math.exp %191 : vector<1x128xf32>
    %cst_47 = arith.constant 1.000000e+00 : f32
    %193 = vector.broadcast %cst_47 : f32 to vector<1x128xf32>
    %194 = arith.addf %193, %192 : vector<1x128xf32>
    %195 = arith.divf %193, %194 : vector<1x128xf32>
    %196 = math.tanh %190 : vector<1x128xf32>
    %197 = vector.extract_strided_slice %195 {offsets = [0, 32], sizes = [1, 32], strides = [1, 1]} : vector<1x128xf32> to vector<1x32xf32>
    %198 = arith.mulf %197, %165 : vector<1x32xf32>
    %199 = vector.extract_strided_slice %195 {offsets = [0, 0], sizes = [1, 32], strides = [1, 1]} : vector<1x128xf32> to vector<1x32xf32>
    %200 = vector.extract_strided_slice %196 {offsets = [0, 64], sizes = [1, 32], strides = [1, 1]} : vector<1x128xf32> to vector<1x32xf32>
    %201 = arith.mulf %199, %200 : vector<1x32xf32>
    %202 = arith.addf %198, %201 : vector<1x32xf32>
    %203 = vector.extract_strided_slice %195 {offsets = [0, 96], sizes = [1, 32], strides = [1, 1]} : vector<1x128xf32> to vector<1x32xf32>
    %204 = math.tanh %202 : vector<1x32xf32>
    %205 = arith.mulf %203, %204 : vector<1x32xf32>
    %c2 = arith.constant 2 : index
    %c0_48 = arith.constant 0 : index
    %206 = vector.load %arg13[%c2, %c0_48] : memref<16x32xf32, #tpu.memory_space<vmem>>, vector<1x32xf32>
    tpu.vector_store %arg13[%c2, %c0_48], %205 {strides = array<i32>} : memref<16x32xf32, #tpu.memory_space<vmem>>, vector<1x32xf32>,
    %207 = vector.extract_strided_slice %20 {offsets = [5, 0], sizes = [1, 128], strides = [1, 1]} : vector<16x128xf32> to vector<1x128xf32>
    %cst_49 = arith.constant dense<0.000000e+00> : vector<1x128xf32>
    %208 = tpu.matmul %187, %8, %cst_49 {dimension_numbers = #tpu.dot_dimension_numbers<[1], [0], [0], [1], [0, 0, 1, 1], [], []>} : vector<1x32xf32>, vector<32x128xf32>, vector<1x128xf32> -> vector<1x128xf32>
    %209 = arith.addf %207, %208 : vector<1x128xf32>
    %210 = arith.negf %209 : vector<1x128xf32>
    %211 = math.exp %210 : vector<1x128xf32>
    %cst_50 = arith.constant 1.000000e+00 : f32
    %212 = vector.broadcast %cst_50 : f32 to vector<1x128xf32>
    %213 = arith.addf %212, %211 : vector<1x128xf32>
    %214 = arith.divf %212, %213 : vector<1x128xf32>
    %215 = math.tanh %209 : vector<1x128xf32>
    %216 = vector.extract_strided_slice %214 {offsets = [0, 32], sizes = [1, 32], strides = [1, 1]} : vector<1x128xf32> to vector<1x32xf32>
    %217 = arith.mulf %216, %184 : vector<1x32xf32>
    %218 = vector.extract_strided_slice %214 {offsets = [0, 0], sizes = [1, 32], strides = [1, 1]} : vector<1x128xf32> to vector<1x32xf32>
    %219 = vector.extract_strided_slice %215 {offsets = [0, 64], sizes = [1, 32], strides = [1, 1]} : vector<1x128xf32> to vector<1x32xf32>
    %220 = arith.mulf %218, %219 : vector<1x32xf32>
    %221 = arith.addf %217, %220 : vector<1x32xf32>
    %222 = vector.extract_strided_slice %214 {offsets = [0, 96], sizes = [1, 32], strides = [1, 1]} : vector<1x128xf32> to vector<1x32xf32>
    %223 = math.tanh %221 : vector<1x32xf32>
    %224 = arith.mulf %222, %223 : vector<1x32xf32>
    %225 = tpu.concatenate %224, %205 in 1 : vector<1x32xf32>, vector<1x32xf32> -> vector<1x64xf32>
    %cst_51 = arith.constant dense<0.000000e+00> : vector<1x128xf32>
    %226 = tpu.matmul %225, %9, %cst_51 {dimension_numbers = #tpu.dot_dimension_numbers<[1], [0], [0], [1], [0, 0, 1, 1], [], []>} : vector<1x64xf32>, vector<64x128xf32>, vector<1x128xf32> -> vector<1x128xf32>
    %227 = arith.addf %226, %10 : vector<1x128xf32>
    %228 = arith.negf %227 : vector<1x128xf32>
    %229 = math.exp %228 : vector<1x128xf32>
    %cst_52 = arith.constant 1.000000e+00 : f32
    %230 = vector.broadcast %cst_52 : f32 to vector<1x128xf32>
    %231 = arith.addf %230, %229 : vector<1x128xf32>
    %232 = arith.divf %230, %231 : vector<1x128xf32>
    %233 = math.tanh %227 : vector<1x128xf32>
    %234 = vector.extract_strided_slice %232 {offsets = [0, 32], sizes = [1, 32], strides = [1, 1]} : vector<1x128xf32> to vector<1x32xf32>
    %235 = arith.mulf %234, %202 : vector<1x32xf32>
    %236 = vector.extract_strided_slice %232 {offsets = [0, 0], sizes = [1, 32], strides = [1, 1]} : vector<1x128xf32> to vector<1x32xf32>
    %237 = vector.extract_strided_slice %233 {offsets = [0, 64], sizes = [1, 32], strides = [1, 1]} : vector<1x128xf32> to vector<1x32xf32>
    %238 = arith.mulf %236, %237 : vector<1x32xf32>
    %239 = arith.addf %235, %238 : vector<1x32xf32>
    %240 = vector.extract_strided_slice %232 {offsets = [0, 96], sizes = [1, 32], strides = [1, 1]} : vector<1x128xf32> to vector<1x32xf32>
    %241 = math.tanh %239 : vector<1x32xf32>
    %242 = arith.mulf %240, %241 : vector<1x32xf32>
    %c10 = arith.constant 10 : index
    %c0_53 = arith.constant 0 : index
    %243 = vector.load %arg13[%c10, %c0_53] : memref<16x32xf32, #tpu.memory_space<vmem>>, vector<1x32xf32>
    tpu.vector_store %arg13[%c10, %c0_53], %242 {strides = array<i32>} : memref<16x32xf32, #tpu.memory_space<vmem>>, vector<1x32xf32>,
    %244 = vector.extract_strided_slice %20 {offsets = [6, 0], sizes = [1, 128], strides = [1, 1]} : vector<16x128xf32> to vector<1x128xf32>
    %cst_54 = arith.constant dense<0.000000e+00> : vector<1x128xf32>
    %245 = tpu.matmul %224, %8, %cst_54 {dimension_numbers = #tpu.dot_dimension_numbers<[1], [0], [0], [1], [0, 0, 1, 1], [], []>} : vector<1x32xf32>, vector<32x128xf32>, vector<1x128xf32> -> vector<1x128xf32>
    %246 = arith.addf %244, %245 : vector<1x128xf32>
    %247 = arith.negf %246 : vector<1x128xf32>
    %248 = math.exp %247 : vector<1x128xf32>
    %cst_55 = arith.constant 1.000000e+00 : f32
    %249 = vector.broadcast %cst_55 : f32 to vector<1x128xf32>
    %250 = arith.addf %249, %248 : vector<1x128xf32>
    %251 = arith.divf %249, %250 : vector<1x128xf32>
    %252 = math.tanh %246 : vector<1x128xf32>
    %253 = vector.extract_strided_slice %251 {offsets = [0, 32], sizes = [1, 32], strides = [1, 1]} : vector<1x128xf32> to vector<1x32xf32>
    %254 = arith.mulf %253, %221 : vector<1x32xf32>
    %255 = vector.extract_strided_slice %251 {offsets = [0, 0], sizes = [1, 32], strides = [1, 1]} : vector<1x128xf32> to vector<1x32xf32>
    %256 = vector.extract_strided_slice %252 {offsets = [0, 64], sizes = [1, 32], strides = [1, 1]} : vector<1x128xf32> to vector<1x32xf32>
    %257 = arith.mulf %255, %256 : vector<1x32xf32>
    %258 = arith.addf %254, %257 : vector<1x32xf32>
    %259 = vector.extract_strided_slice %251 {offsets = [0, 96], sizes = [1, 32], strides = [1, 1]} : vector<1x128xf32> to vector<1x32xf32>
    %260 = math.tanh %258 : vector<1x32xf32>
    %261 = arith.mulf %259, %260 : vector<1x32xf32>
    %262 = tpu.concatenate %261, %242 in 1 : vector<1x32xf32>, vector<1x32xf32> -> vector<1x64xf32>
    %cst_56 = arith.constant dense<0.000000e+00> : vector<1x128xf32>
    %263 = tpu.matmul %262, %9, %cst_56 {dimension_numbers = #tpu.dot_dimension_numbers<[1], [0], [0], [1], [0, 0, 1, 1], [], []>} : vector<1x64xf32>, vector<64x128xf32>, vector<1x128xf32> -> vector<1x128xf32>
    %264 = arith.addf %263, %10 : vector<1x128xf32>
    %265 = arith.negf %264 : vector<1x128xf32>
    %266 = math.exp %265 : vector<1x128xf32>
    %cst_57 = arith.constant 1.000000e+00 : f32
    %267 = vector.broadcast %cst_57 : f32 to vector<1x128xf32>
    %268 = arith.addf %267, %266 : vector<1x128xf32>
    %269 = arith.divf %267, %268 : vector<1x128xf32>
    %270 = math.tanh %264 : vector<1x128xf32>
    %271 = vector.extract_strided_slice %269 {offsets = [0, 32], sizes = [1, 32], strides = [1, 1]} : vector<1x128xf32> to vector<1x32xf32>
    %272 = arith.mulf %271, %239 : vector<1x32xf32>
    %273 = vector.extract_strided_slice %269 {offsets = [0, 0], sizes = [1, 32], strides = [1, 1]} : vector<1x128xf32> to vector<1x32xf32>
    %274 = vector.extract_strided_slice %270 {offsets = [0, 64], sizes = [1, 32], strides = [1, 1]} : vector<1x128xf32> to vector<1x32xf32>
    %275 = arith.mulf %273, %274 : vector<1x32xf32>
    %276 = arith.addf %272, %275 : vector<1x32xf32>
    %277 = vector.extract_strided_slice %269 {offsets = [0, 96], sizes = [1, 32], strides = [1, 1]} : vector<1x128xf32> to vector<1x32xf32>
    %278 = math.tanh %276 : vector<1x32xf32>
    %279 = arith.mulf %277, %278 : vector<1x32xf32>
    %c3 = arith.constant 3 : index
    %c0_58 = arith.constant 0 : index
    %280 = vector.load %arg13[%c3, %c0_58] : memref<16x32xf32, #tpu.memory_space<vmem>>, vector<1x32xf32>
    tpu.vector_store %arg13[%c3, %c0_58], %279 {strides = array<i32>} : memref<16x32xf32, #tpu.memory_space<vmem>>, vector<1x32xf32>,
    %281 = vector.extract_strided_slice %20 {offsets = [7, 0], sizes = [1, 128], strides = [1, 1]} : vector<16x128xf32> to vector<1x128xf32>
    %cst_59 = arith.constant dense<0.000000e+00> : vector<1x128xf32>
    %282 = tpu.matmul %261, %8, %cst_59 {dimension_numbers = #tpu.dot_dimension_numbers<[1], [0], [0], [1], [0, 0, 1, 1], [], []>} : vector<1x32xf32>, vector<32x128xf32>, vector<1x128xf32> -> vector<1x128xf32>
    %283 = arith.addf %281, %282 : vector<1x128xf32>
    %284 = arith.negf %283 : vector<1x128xf32>
    %285 = math.exp %284 : vector<1x128xf32>
    %cst_60 = arith.constant 1.000000e+00 : f32
    %286 = vector.broadcast %cst_60 : f32 to vector<1x128xf32>
    %287 = arith.addf %286, %285 : vector<1x128xf32>
    %288 = arith.divf %286, %287 : vector<1x128xf32>
    %289 = math.tanh %283 : vector<1x128xf32>
    %290 = vector.extract_strided_slice %288 {offsets = [0, 32], sizes = [1, 32], strides = [1, 1]} : vector<1x128xf32> to vector<1x32xf32>
    %291 = arith.mulf %290, %258 : vector<1x32xf32>
    %292 = vector.extract_strided_slice %288 {offsets = [0, 0], sizes = [1, 32], strides = [1, 1]} : vector<1x128xf32> to vector<1x32xf32>
    %293 = vector.extract_strided_slice %289 {offsets = [0, 64], sizes = [1, 32], strides = [1, 1]} : vector<1x128xf32> to vector<1x32xf32>
    %294 = arith.mulf %292, %293 : vector<1x32xf32>
    %295 = arith.addf %291, %294 : vector<1x32xf32>
    %296 = vector.extract_strided_slice %288 {offsets = [0, 96], sizes = [1, 32], strides = [1, 1]} : vector<1x128xf32> to vector<1x32xf32>
    %297 = math.tanh %295 : vector<1x32xf32>
    %298 = arith.mulf %296, %297 : vector<1x32xf32>
    %299 = tpu.concatenate %298, %279 in 1 : vector<1x32xf32>, vector<1x32xf32> -> vector<1x64xf32>
    %cst_61 = arith.constant dense<0.000000e+00> : vector<1x128xf32>
    %300 = tpu.matmul %299, %9, %cst_61 {dimension_numbers = #tpu.dot_dimension_numbers<[1], [0], [0], [1], [0, 0, 1, 1], [], []>} : vector<1x64xf32>, vector<64x128xf32>, vector<1x128xf32> -> vector<1x128xf32>
    %301 = arith.addf %300, %10 : vector<1x128xf32>
    %302 = arith.negf %301 : vector<1x128xf32>
    %303 = math.exp %302 : vector<1x128xf32>
    %cst_62 = arith.constant 1.000000e+00 : f32
    %304 = vector.broadcast %cst_62 : f32 to vector<1x128xf32>
    %305 = arith.addf %304, %303 : vector<1x128xf32>
    %306 = arith.divf %304, %305 : vector<1x128xf32>
    %307 = math.tanh %301 : vector<1x128xf32>
    %308 = vector.extract_strided_slice %306 {offsets = [0, 32], sizes = [1, 32], strides = [1, 1]} : vector<1x128xf32> to vector<1x32xf32>
    %309 = arith.mulf %308, %276 : vector<1x32xf32>
    %310 = vector.extract_strided_slice %306 {offsets = [0, 0], sizes = [1, 32], strides = [1, 1]} : vector<1x128xf32> to vector<1x32xf32>
    %311 = vector.extract_strided_slice %307 {offsets = [0, 64], sizes = [1, 32], strides = [1, 1]} : vector<1x128xf32> to vector<1x32xf32>
    %312 = arith.mulf %310, %311 : vector<1x32xf32>
    %313 = arith.addf %309, %312 : vector<1x32xf32>
    %314 = vector.extract_strided_slice %306 {offsets = [0, 96], sizes = [1, 32], strides = [1, 1]} : vector<1x128xf32> to vector<1x32xf32>
    %315 = math.tanh %313 : vector<1x32xf32>
    %316 = arith.mulf %314, %315 : vector<1x32xf32>
    %c11 = arith.constant 11 : index
    %c0_63 = arith.constant 0 : index
    %317 = vector.load %arg13[%c11, %c0_63] : memref<16x32xf32, #tpu.memory_space<vmem>>, vector<1x32xf32>
    tpu.vector_store %arg13[%c11, %c0_63], %316 {strides = array<i32>} : memref<16x32xf32, #tpu.memory_space<vmem>>, vector<1x32xf32>,
    %318 = vector.extract_strided_slice %20 {offsets = [8, 0], sizes = [1, 128], strides = [1, 1]} : vector<16x128xf32> to vector<1x128xf32>
    %cst_64 = arith.constant dense<0.000000e+00> : vector<1x128xf32>
    %319 = tpu.matmul %298, %8, %cst_64 {dimension_numbers = #tpu.dot_dimension_numbers<[1], [0], [0], [1], [0, 0, 1, 1], [], []>} : vector<1x32xf32>, vector<32x128xf32>, vector<1x128xf32> -> vector<1x128xf32>
    %320 = arith.addf %318, %319 : vector<1x128xf32>
    %321 = arith.negf %320 : vector<1x128xf32>
    %322 = math.exp %321 : vector<1x128xf32>
    %cst_65 = arith.constant 1.000000e+00 : f32
    %323 = vector.broadcast %cst_65 : f32 to vector<1x128xf32>
    %324 = arith.addf %323, %322 : vector<1x128xf32>
    %325 = arith.divf %323, %324 : vector<1x128xf32>
    %326 = math.tanh %320 : vector<1x128xf32>
    %327 = vector.extract_strided_slice %325 {offsets = [0, 32], sizes = [1, 32], strides = [1, 1]} : vector<1x128xf32> to vector<1x32xf32>
    %328 = arith.mulf %327, %295 : vector<1x32xf32>
    %329 = vector.extract_strided_slice %325 {offsets = [0, 0], sizes = [1, 32], strides = [1, 1]} : vector<1x128xf32> to vector<1x32xf32>
    %330 = vector.extract_strided_slice %326 {offsets = [0, 64], sizes = [1, 32], strides = [1, 1]} : vector<1x128xf32> to vector<1x32xf32>
    %331 = arith.mulf %329, %330 : vector<1x32xf32>
    %332 = arith.addf %328, %331 : vector<1x32xf32>
    %333 = vector.extract_strided_slice %325 {offsets = [0, 96], sizes = [1, 32], strides = [1, 1]} : vector<1x128xf32> to vector<1x32xf32>
    %334 = math.tanh %332 : vector<1x32xf32>
    %335 = arith.mulf %333, %334 : vector<1x32xf32>
    %336 = tpu.concatenate %335, %316 in 1 : vector<1x32xf32>, vector<1x32xf32> -> vector<1x64xf32>
    %cst_66 = arith.constant dense<0.000000e+00> : vector<1x128xf32>
    %337 = tpu.matmul %336, %9, %cst_66 {dimension_numbers = #tpu.dot_dimension_numbers<[1], [0], [0], [1], [0, 0, 1, 1], [], []>} : vector<1x64xf32>, vector<64x128xf32>, vector<1x128xf32> -> vector<1x128xf32>
    %338 = arith.addf %337, %10 : vector<1x128xf32>
    %339 = arith.negf %338 : vector<1x128xf32>
    %340 = math.exp %339 : vector<1x128xf32>
    %cst_67 = arith.constant 1.000000e+00 : f32
    %341 = vector.broadcast %cst_67 : f32 to vector<1x128xf32>
    %342 = arith.addf %341, %340 : vector<1x128xf32>
    %343 = arith.divf %341, %342 : vector<1x128xf32>
    %344 = math.tanh %338 : vector<1x128xf32>
    %345 = vector.extract_strided_slice %343 {offsets = [0, 32], sizes = [1, 32], strides = [1, 1]} : vector<1x128xf32> to vector<1x32xf32>
    %346 = arith.mulf %345, %313 : vector<1x32xf32>
    %347 = vector.extract_strided_slice %343 {offsets = [0, 0], sizes = [1, 32], strides = [1, 1]} : vector<1x128xf32> to vector<1x32xf32>
    %348 = vector.extract_strided_slice %344 {offsets = [0, 64], sizes = [1, 32], strides = [1, 1]} : vector<1x128xf32> to vector<1x32xf32>
    %349 = arith.mulf %347, %348 : vector<1x32xf32>
    %350 = arith.addf %346, %349 : vector<1x32xf32>
    %351 = vector.extract_strided_slice %343 {offsets = [0, 96], sizes = [1, 32], strides = [1, 1]} : vector<1x128xf32> to vector<1x32xf32>
    %352 = math.tanh %350 : vector<1x32xf32>
    %353 = arith.mulf %351, %352 : vector<1x32xf32>
    %c4 = arith.constant 4 : index
    %c0_68 = arith.constant 0 : index
    %354 = vector.load %arg13[%c4, %c0_68] : memref<16x32xf32, #tpu.memory_space<vmem>>, vector<1x32xf32>
    tpu.vector_store %arg13[%c4, %c0_68], %353 {strides = array<i32>} : memref<16x32xf32, #tpu.memory_space<vmem>>, vector<1x32xf32>,
    %355 = vector.extract_strided_slice %20 {offsets = [9, 0], sizes = [1, 128], strides = [1, 1]} : vector<16x128xf32> to vector<1x128xf32>
    %cst_69 = arith.constant dense<0.000000e+00> : vector<1x128xf32>
    %356 = tpu.matmul %335, %8, %cst_69 {dimension_numbers = #tpu.dot_dimension_numbers<[1], [0], [0], [1], [0, 0, 1, 1], [], []>} : vector<1x32xf32>, vector<32x128xf32>, vector<1x128xf32> -> vector<1x128xf32>
    %357 = arith.addf %355, %356 : vector<1x128xf32>
    %358 = arith.negf %357 : vector<1x128xf32>
    %359 = math.exp %358 : vector<1x128xf32>
    %cst_70 = arith.constant 1.000000e+00 : f32
    %360 = vector.broadcast %cst_70 : f32 to vector<1x128xf32>
    %361 = arith.addf %360, %359 : vector<1x128xf32>
    %362 = arith.divf %360, %361 : vector<1x128xf32>
    %363 = math.tanh %357 : vector<1x128xf32>
    %364 = vector.extract_strided_slice %362 {offsets = [0, 32], sizes = [1, 32], strides = [1, 1]} : vector<1x128xf32> to vector<1x32xf32>
    %365 = arith.mulf %364, %332 : vector<1x32xf32>
    %366 = vector.extract_strided_slice %362 {offsets = [0, 0], sizes = [1, 32], strides = [1, 1]} : vector<1x128xf32> to vector<1x32xf32>
    %367 = vector.extract_strided_slice %363 {offsets = [0, 64], sizes = [1, 32], strides = [1, 1]} : vector<1x128xf32> to vector<1x32xf32>
    %368 = arith.mulf %366, %367 : vector<1x32xf32>
    %369 = arith.addf %365, %368 : vector<1x32xf32>
    %370 = vector.extract_strided_slice %362 {offsets = [0, 96], sizes = [1, 32], strides = [1, 1]} : vector<1x128xf32> to vector<1x32xf32>
    %371 = math.tanh %369 : vector<1x32xf32>
    %372 = arith.mulf %370, %371 : vector<1x32xf32>
    %373 = tpu.concatenate %372, %353 in 1 : vector<1x32xf32>, vector<1x32xf32> -> vector<1x64xf32>
    %cst_71 = arith.constant dense<0.000000e+00> : vector<1x128xf32>
    %374 = tpu.matmul %373, %9, %cst_71 {dimension_numbers = #tpu.dot_dimension_numbers<[1], [0], [0], [1], [0, 0, 1, 1], [], []>} : vector<1x64xf32>, vector<64x128xf32>, vector<1x128xf32> -> vector<1x128xf32>
    %375 = arith.addf %374, %10 : vector<1x128xf32>
    %376 = arith.negf %375 : vector<1x128xf32>
    %377 = math.exp %376 : vector<1x128xf32>
    %cst_72 = arith.constant 1.000000e+00 : f32
    %378 = vector.broadcast %cst_72 : f32 to vector<1x128xf32>
    %379 = arith.addf %378, %377 : vector<1x128xf32>
    %380 = arith.divf %378, %379 : vector<1x128xf32>
    %381 = math.tanh %375 : vector<1x128xf32>
    %382 = vector.extract_strided_slice %380 {offsets = [0, 32], sizes = [1, 32], strides = [1, 1]} : vector<1x128xf32> to vector<1x32xf32>
    %383 = arith.mulf %382, %350 : vector<1x32xf32>
    %384 = vector.extract_strided_slice %380 {offsets = [0, 0], sizes = [1, 32], strides = [1, 1]} : vector<1x128xf32> to vector<1x32xf32>
    %385 = vector.extract_strided_slice %381 {offsets = [0, 64], sizes = [1, 32], strides = [1, 1]} : vector<1x128xf32> to vector<1x32xf32>
    %386 = arith.mulf %384, %385 : vector<1x32xf32>
    %387 = arith.addf %383, %386 : vector<1x32xf32>
    %388 = vector.extract_strided_slice %380 {offsets = [0, 96], sizes = [1, 32], strides = [1, 1]} : vector<1x128xf32> to vector<1x32xf32>
    %389 = math.tanh %387 : vector<1x32xf32>
    %390 = arith.mulf %388, %389 : vector<1x32xf32>
    %c12 = arith.constant 12 : index
    %c0_73 = arith.constant 0 : index
    %391 = vector.load %arg13[%c12, %c0_73] : memref<16x32xf32, #tpu.memory_space<vmem>>, vector<1x32xf32>
    tpu.vector_store %arg13[%c12, %c0_73], %390 {strides = array<i32>} : memref<16x32xf32, #tpu.memory_space<vmem>>, vector<1x32xf32>,
    %392 = vector.extract_strided_slice %20 {offsets = [10, 0], sizes = [1, 128], strides = [1, 1]} : vector<16x128xf32> to vector<1x128xf32>
    %cst_74 = arith.constant dense<0.000000e+00> : vector<1x128xf32>
    %393 = tpu.matmul %372, %8, %cst_74 {dimension_numbers = #tpu.dot_dimension_numbers<[1], [0], [0], [1], [0, 0, 1, 1], [], []>} : vector<1x32xf32>, vector<32x128xf32>, vector<1x128xf32> -> vector<1x128xf32>
    %394 = arith.addf %392, %393 : vector<1x128xf32>
    %395 = arith.negf %394 : vector<1x128xf32>
    %396 = math.exp %395 : vector<1x128xf32>
    %cst_75 = arith.constant 1.000000e+00 : f32
    %397 = vector.broadcast %cst_75 : f32 to vector<1x128xf32>
    %398 = arith.addf %397, %396 : vector<1x128xf32>
    %399 = arith.divf %397, %398 : vector<1x128xf32>
    %400 = math.tanh %394 : vector<1x128xf32>
    %401 = vector.extract_strided_slice %399 {offsets = [0, 32], sizes = [1, 32], strides = [1, 1]} : vector<1x128xf32> to vector<1x32xf32>
    %402 = arith.mulf %401, %369 : vector<1x32xf32>
    %403 = vector.extract_strided_slice %399 {offsets = [0, 0], sizes = [1, 32], strides = [1, 1]} : vector<1x128xf32> to vector<1x32xf32>
    %404 = vector.extract_strided_slice %400 {offsets = [0, 64], sizes = [1, 32], strides = [1, 1]} : vector<1x128xf32> to vector<1x32xf32>
    %405 = arith.mulf %403, %404 : vector<1x32xf32>
    %406 = arith.addf %402, %405 : vector<1x32xf32>
    %407 = vector.extract_strided_slice %399 {offsets = [0, 96], sizes = [1, 32], strides = [1, 1]} : vector<1x128xf32> to vector<1x32xf32>
    %408 = math.tanh %406 : vector<1x32xf32>
    %409 = arith.mulf %407, %408 : vector<1x32xf32>
    %410 = tpu.concatenate %409, %390 in 1 : vector<1x32xf32>, vector<1x32xf32> -> vector<1x64xf32>
    %cst_76 = arith.constant dense<0.000000e+00> : vector<1x128xf32>
    %411 = tpu.matmul %410, %9, %cst_76 {dimension_numbers = #tpu.dot_dimension_numbers<[1], [0], [0], [1], [0, 0, 1, 1], [], []>} : vector<1x64xf32>, vector<64x128xf32>, vector<1x128xf32> -> vector<1x128xf32>
    %412 = arith.addf %411, %10 : vector<1x128xf32>
    %413 = arith.negf %412 : vector<1x128xf32>
    %414 = math.exp %413 : vector<1x128xf32>
    %cst_77 = arith.constant 1.000000e+00 : f32
    %415 = vector.broadcast %cst_77 : f32 to vector<1x128xf32>
    %416 = arith.addf %415, %414 : vector<1x128xf32>
    %417 = arith.divf %415, %416 : vector<1x128xf32>
    %418 = math.tanh %412 : vector<1x128xf32>
    %419 = vector.extract_strided_slice %417 {offsets = [0, 32], sizes = [1, 32], strides = [1, 1]} : vector<1x128xf32> to vector<1x32xf32>
    %420 = arith.mulf %419, %387 : vector<1x32xf32>
    %421 = vector.extract_strided_slice %417 {offsets = [0, 0], sizes = [1, 32], strides = [1, 1]} : vector<1x128xf32> to vector<1x32xf32>
    %422 = vector.extract_strided_slice %418 {offsets = [0, 64], sizes = [1, 32], strides = [1, 1]} : vector<1x128xf32> to vector<1x32xf32>
    %423 = arith.mulf %421, %422 : vector<1x32xf32>
    %424 = arith.addf %420, %423 : vector<1x32xf32>
    %425 = vector.extract_strided_slice %417 {offsets = [0, 96], sizes = [1, 32], strides = [1, 1]} : vector<1x128xf32> to vector<1x32xf32>
    %426 = math.tanh %424 : vector<1x32xf32>
    %427 = arith.mulf %425, %426 : vector<1x32xf32>
    %c5 = arith.constant 5 : index
    %c0_78 = arith.constant 0 : index
    %428 = vector.load %arg13[%c5, %c0_78] : memref<16x32xf32, #tpu.memory_space<vmem>>, vector<1x32xf32>
    tpu.vector_store %arg13[%c5, %c0_78], %427 {strides = array<i32>} : memref<16x32xf32, #tpu.memory_space<vmem>>, vector<1x32xf32>,
    %429 = vector.extract_strided_slice %20 {offsets = [11, 0], sizes = [1, 128], strides = [1, 1]} : vector<16x128xf32> to vector<1x128xf32>
    %cst_79 = arith.constant dense<0.000000e+00> : vector<1x128xf32>
    %430 = tpu.matmul %409, %8, %cst_79 {dimension_numbers = #tpu.dot_dimension_numbers<[1], [0], [0], [1], [0, 0, 1, 1], [], []>} : vector<1x32xf32>, vector<32x128xf32>, vector<1x128xf32> -> vector<1x128xf32>
    %431 = arith.addf %429, %430 : vector<1x128xf32>
    %432 = arith.negf %431 : vector<1x128xf32>
    %433 = math.exp %432 : vector<1x128xf32>
    %cst_80 = arith.constant 1.000000e+00 : f32
    %434 = vector.broadcast %cst_80 : f32 to vector<1x128xf32>
    %435 = arith.addf %434, %433 : vector<1x128xf32>
    %436 = arith.divf %434, %435 : vector<1x128xf32>
    %437 = math.tanh %431 : vector<1x128xf32>
    %438 = vector.extract_strided_slice %436 {offsets = [0, 32], sizes = [1, 32], strides = [1, 1]} : vector<1x128xf32> to vector<1x32xf32>
    %439 = arith.mulf %438, %406 : vector<1x32xf32>
    %440 = vector.extract_strided_slice %436 {offsets = [0, 0], sizes = [1, 32], strides = [1, 1]} : vector<1x128xf32> to vector<1x32xf32>
    %441 = vector.extract_strided_slice %437 {offsets = [0, 64], sizes = [1, 32], strides = [1, 1]} : vector<1x128xf32> to vector<1x32xf32>
    %442 = arith.mulf %440, %441 : vector<1x32xf32>
    %443 = arith.addf %439, %442 : vector<1x32xf32>
    %444 = vector.extract_strided_slice %436 {offsets = [0, 96], sizes = [1, 32], strides = [1, 1]} : vector<1x128xf32> to vector<1x32xf32>
    %445 = math.tanh %443 : vector<1x32xf32>
    %446 = arith.mulf %444, %445 : vector<1x32xf32>
    %447 = tpu.concatenate %446, %427 in 1 : vector<1x32xf32>, vector<1x32xf32> -> vector<1x64xf32>
    %cst_81 = arith.constant dense<0.000000e+00> : vector<1x128xf32>
    %448 = tpu.matmul %447, %9, %cst_81 {dimension_numbers = #tpu.dot_dimension_numbers<[1], [0], [0], [1], [0, 0, 1, 1], [], []>} : vector<1x64xf32>, vector<64x128xf32>, vector<1x128xf32> -> vector<1x128xf32>
    %449 = arith.addf %448, %10 : vector<1x128xf32>
    %450 = arith.negf %449 : vector<1x128xf32>
    %451 = math.exp %450 : vector<1x128xf32>
    %cst_82 = arith.constant 1.000000e+00 : f32
    %452 = vector.broadcast %cst_82 : f32 to vector<1x128xf32>
    %453 = arith.addf %452, %451 : vector<1x128xf32>
    %454 = arith.divf %452, %453 : vector<1x128xf32>
    %455 = math.tanh %449 : vector<1x128xf32>
    %456 = vector.extract_strided_slice %454 {offsets = [0, 32], sizes = [1, 32], strides = [1, 1]} : vector<1x128xf32> to vector<1x32xf32>
    %457 = arith.mulf %456, %424 : vector<1x32xf32>
    %458 = vector.extract_strided_slice %454 {offsets = [0, 0], sizes = [1, 32], strides = [1, 1]} : vector<1x128xf32> to vector<1x32xf32>
    %459 = vector.extract_strided_slice %455 {offsets = [0, 64], sizes = [1, 32], strides = [1, 1]} : vector<1x128xf32> to vector<1x32xf32>
    %460 = arith.mulf %458, %459 : vector<1x32xf32>
    %461 = arith.addf %457, %460 : vector<1x32xf32>
    %462 = vector.extract_strided_slice %454 {offsets = [0, 96], sizes = [1, 32], strides = [1, 1]} : vector<1x128xf32> to vector<1x32xf32>
    %463 = math.tanh %461 : vector<1x32xf32>
    %464 = arith.mulf %462, %463 : vector<1x32xf32>
    %c13 = arith.constant 13 : index
    %c0_83 = arith.constant 0 : index
    %465 = vector.load %arg13[%c13, %c0_83] : memref<16x32xf32, #tpu.memory_space<vmem>>, vector<1x32xf32>
    tpu.vector_store %arg13[%c13, %c0_83], %464 {strides = array<i32>} : memref<16x32xf32, #tpu.memory_space<vmem>>, vector<1x32xf32>,
    %466 = vector.extract_strided_slice %20 {offsets = [12, 0], sizes = [1, 128], strides = [1, 1]} : vector<16x128xf32> to vector<1x128xf32>
    %cst_84 = arith.constant dense<0.000000e+00> : vector<1x128xf32>
    %467 = tpu.matmul %446, %8, %cst_84 {dimension_numbers = #tpu.dot_dimension_numbers<[1], [0], [0], [1], [0, 0, 1, 1], [], []>} : vector<1x32xf32>, vector<32x128xf32>, vector<1x128xf32> -> vector<1x128xf32>
    %468 = arith.addf %466, %467 : vector<1x128xf32>
    %469 = arith.negf %468 : vector<1x128xf32>
    %470 = math.exp %469 : vector<1x128xf32>
    %cst_85 = arith.constant 1.000000e+00 : f32
    %471 = vector.broadcast %cst_85 : f32 to vector<1x128xf32>
    %472 = arith.addf %471, %470 : vector<1x128xf32>
    %473 = arith.divf %471, %472 : vector<1x128xf32>
    %474 = math.tanh %468 : vector<1x128xf32>
    %475 = vector.extract_strided_slice %473 {offsets = [0, 32], sizes = [1, 32], strides = [1, 1]} : vector<1x128xf32> to vector<1x32xf32>
    %476 = arith.mulf %475, %443 : vector<1x32xf32>
    %477 = vector.extract_strided_slice %473 {offsets = [0, 0], sizes = [1, 32], strides = [1, 1]} : vector<1x128xf32> to vector<1x32xf32>
    %478 = vector.extract_strided_slice %474 {offsets = [0, 64], sizes = [1, 32], strides = [1, 1]} : vector<1x128xf32> to vector<1x32xf32>
    %479 = arith.mulf %477, %478 : vector<1x32xf32>
    %480 = arith.addf %476, %479 : vector<1x32xf32>
    %481 = vector.extract_strided_slice %473 {offsets = [0, 96], sizes = [1, 32], strides = [1, 1]} : vector<1x128xf32> to vector<1x32xf32>
    %482 = math.tanh %480 : vector<1x32xf32>
    %483 = arith.mulf %481, %482 : vector<1x32xf32>
    %484 = tpu.concatenate %483, %464 in 1 : vector<1x32xf32>, vector<1x32xf32> -> vector<1x64xf32>
    %cst_86 = arith.constant dense<0.000000e+00> : vector<1x128xf32>
    %485 = tpu.matmul %484, %9, %cst_86 {dimension_numbers = #tpu.dot_dimension_numbers<[1], [0], [0], [1], [0, 0, 1, 1], [], []>} : vector<1x64xf32>, vector<64x128xf32>, vector<1x128xf32> -> vector<1x128xf32>
    %486 = arith.addf %485, %10 : vector<1x128xf32>
    %487 = arith.negf %486 : vector<1x128xf32>
    %488 = math.exp %487 : vector<1x128xf32>
    %cst_87 = arith.constant 1.000000e+00 : f32
    %489 = vector.broadcast %cst_87 : f32 to vector<1x128xf32>
    %490 = arith.addf %489, %488 : vector<1x128xf32>
    %491 = arith.divf %489, %490 : vector<1x128xf32>
    %492 = math.tanh %486 : vector<1x128xf32>
    %493 = vector.extract_strided_slice %491 {offsets = [0, 32], sizes = [1, 32], strides = [1, 1]} : vector<1x128xf32> to vector<1x32xf32>
    %494 = arith.mulf %493, %461 : vector<1x32xf32>
    %495 = vector.extract_strided_slice %491 {offsets = [0, 0], sizes = [1, 32], strides = [1, 1]} : vector<1x128xf32> to vector<1x32xf32>
    %496 = vector.extract_strided_slice %492 {offsets = [0, 64], sizes = [1, 32], strides = [1, 1]} : vector<1x128xf32> to vector<1x32xf32>
    %497 = arith.mulf %495, %496 : vector<1x32xf32>
    %498 = arith.addf %494, %497 : vector<1x32xf32>
    %499 = vector.extract_strided_slice %491 {offsets = [0, 96], sizes = [1, 32], strides = [1, 1]} : vector<1x128xf32> to vector<1x32xf32>
    %500 = math.tanh %498 : vector<1x32xf32>
    %501 = arith.mulf %499, %500 : vector<1x32xf32>
    %c6 = arith.constant 6 : index
    %c0_88 = arith.constant 0 : index
    %502 = vector.load %arg13[%c6, %c0_88] : memref<16x32xf32, #tpu.memory_space<vmem>>, vector<1x32xf32>
    tpu.vector_store %arg13[%c6, %c0_88], %501 {strides = array<i32>} : memref<16x32xf32, #tpu.memory_space<vmem>>, vector<1x32xf32>,
    %503 = vector.extract_strided_slice %20 {offsets = [13, 0], sizes = [1, 128], strides = [1, 1]} : vector<16x128xf32> to vector<1x128xf32>
    %cst_89 = arith.constant dense<0.000000e+00> : vector<1x128xf32>
    %504 = tpu.matmul %483, %8, %cst_89 {dimension_numbers = #tpu.dot_dimension_numbers<[1], [0], [0], [1], [0, 0, 1, 1], [], []>} : vector<1x32xf32>, vector<32x128xf32>, vector<1x128xf32> -> vector<1x128xf32>
    %505 = arith.addf %503, %504 : vector<1x128xf32>
    %506 = arith.negf %505 : vector<1x128xf32>
    %507 = math.exp %506 : vector<1x128xf32>
    %cst_90 = arith.constant 1.000000e+00 : f32
    %508 = vector.broadcast %cst_90 : f32 to vector<1x128xf32>
    %509 = arith.addf %508, %507 : vector<1x128xf32>
    %510 = arith.divf %508, %509 : vector<1x128xf32>
    %511 = math.tanh %505 : vector<1x128xf32>
    %512 = vector.extract_strided_slice %510 {offsets = [0, 32], sizes = [1, 32], strides = [1, 1]} : vector<1x128xf32> to vector<1x32xf32>
    %513 = arith.mulf %512, %480 : vector<1x32xf32>
    %514 = vector.extract_strided_slice %510 {offsets = [0, 0], sizes = [1, 32], strides = [1, 1]} : vector<1x128xf32> to vector<1x32xf32>
    %515 = vector.extract_strided_slice %511 {offsets = [0, 64], sizes = [1, 32], strides = [1, 1]} : vector<1x128xf32> to vector<1x32xf32>
    %516 = arith.mulf %514, %515 : vector<1x32xf32>
    %517 = arith.addf %513, %516 : vector<1x32xf32>
    %518 = vector.extract_strided_slice %510 {offsets = [0, 96], sizes = [1, 32], strides = [1, 1]} : vector<1x128xf32> to vector<1x32xf32>
    %519 = math.tanh %517 : vector<1x32xf32>
    %520 = arith.mulf %518, %519 : vector<1x32xf32>
    %521 = tpu.concatenate %520, %501 in 1 : vector<1x32xf32>, vector<1x32xf32> -> vector<1x64xf32>
    %cst_91 = arith.constant dense<0.000000e+00> : vector<1x128xf32>
    %522 = tpu.matmul %521, %9, %cst_91 {dimension_numbers = #tpu.dot_dimension_numbers<[1], [0], [0], [1], [0, 0, 1, 1], [], []>} : vector<1x64xf32>, vector<64x128xf32>, vector<1x128xf32> -> vector<1x128xf32>
    %523 = arith.addf %522, %10 : vector<1x128xf32>
    %524 = arith.negf %523 : vector<1x128xf32>
    %525 = math.exp %524 : vector<1x128xf32>
    %cst_92 = arith.constant 1.000000e+00 : f32
    %526 = vector.broadcast %cst_92 : f32 to vector<1x128xf32>
    %527 = arith.addf %526, %525 : vector<1x128xf32>
    %528 = arith.divf %526, %527 : vector<1x128xf32>
    %529 = math.tanh %523 : vector<1x128xf32>
    %530 = vector.extract_strided_slice %528 {offsets = [0, 32], sizes = [1, 32], strides = [1, 1]} : vector<1x128xf32> to vector<1x32xf32>
    %531 = arith.mulf %530, %498 : vector<1x32xf32>
    %532 = vector.extract_strided_slice %528 {offsets = [0, 0], sizes = [1, 32], strides = [1, 1]} : vector<1x128xf32> to vector<1x32xf32>
    %533 = vector.extract_strided_slice %529 {offsets = [0, 64], sizes = [1, 32], strides = [1, 1]} : vector<1x128xf32> to vector<1x32xf32>
    %534 = arith.mulf %532, %533 : vector<1x32xf32>
    %535 = arith.addf %531, %534 : vector<1x32xf32>
    %536 = vector.extract_strided_slice %528 {offsets = [0, 96], sizes = [1, 32], strides = [1, 1]} : vector<1x128xf32> to vector<1x32xf32>
    %537 = math.tanh %535 : vector<1x32xf32>
    %538 = arith.mulf %536, %537 : vector<1x32xf32>
    %c14 = arith.constant 14 : index
    %c0_93 = arith.constant 0 : index
    %539 = vector.load %arg13[%c14, %c0_93] : memref<16x32xf32, #tpu.memory_space<vmem>>, vector<1x32xf32>
    tpu.vector_store %arg13[%c14, %c0_93], %538 {strides = array<i32>} : memref<16x32xf32, #tpu.memory_space<vmem>>, vector<1x32xf32>,
    %540 = vector.extract_strided_slice %20 {offsets = [14, 0], sizes = [1, 128], strides = [1, 1]} : vector<16x128xf32> to vector<1x128xf32>
    %cst_94 = arith.constant dense<0.000000e+00> : vector<1x128xf32>
    %541 = tpu.matmul %520, %8, %cst_94 {dimension_numbers = #tpu.dot_dimension_numbers<[1], [0], [0], [1], [0, 0, 1, 1], [], []>} : vector<1x32xf32>, vector<32x128xf32>, vector<1x128xf32> -> vector<1x128xf32>
    %542 = arith.addf %540, %541 : vector<1x128xf32>
    %543 = arith.negf %542 : vector<1x128xf32>
    %544 = math.exp %543 : vector<1x128xf32>
    %cst_95 = arith.constant 1.000000e+00 : f32
    %545 = vector.broadcast %cst_95 : f32 to vector<1x128xf32>
    %546 = arith.addf %545, %544 : vector<1x128xf32>
    %547 = arith.divf %545, %546 : vector<1x128xf32>
    %548 = math.tanh %542 : vector<1x128xf32>
    %549 = vector.extract_strided_slice %547 {offsets = [0, 32], sizes = [1, 32], strides = [1, 1]} : vector<1x128xf32> to vector<1x32xf32>
    %550 = arith.mulf %549, %517 : vector<1x32xf32>
    %551 = vector.extract_strided_slice %547 {offsets = [0, 0], sizes = [1, 32], strides = [1, 1]} : vector<1x128xf32> to vector<1x32xf32>
    %552 = vector.extract_strided_slice %548 {offsets = [0, 64], sizes = [1, 32], strides = [1, 1]} : vector<1x128xf32> to vector<1x32xf32>
    %553 = arith.mulf %551, %552 : vector<1x32xf32>
    %554 = arith.addf %550, %553 : vector<1x32xf32>
    %555 = vector.extract_strided_slice %547 {offsets = [0, 96], sizes = [1, 32], strides = [1, 1]} : vector<1x128xf32> to vector<1x32xf32>
    %556 = math.tanh %554 : vector<1x32xf32>
    %557 = arith.mulf %555, %556 : vector<1x32xf32>
    %558 = tpu.concatenate %557, %538 in 1 : vector<1x32xf32>, vector<1x32xf32> -> vector<1x64xf32>
    %cst_96 = arith.constant dense<0.000000e+00> : vector<1x128xf32>
    %559 = tpu.matmul %558, %9, %cst_96 {dimension_numbers = #tpu.dot_dimension_numbers<[1], [0], [0], [1], [0, 0, 1, 1], [], []>} : vector<1x64xf32>, vector<64x128xf32>, vector<1x128xf32> -> vector<1x128xf32>
    %560 = arith.addf %559, %10 : vector<1x128xf32>
    %561 = arith.negf %560 : vector<1x128xf32>
    %562 = math.exp %561 : vector<1x128xf32>
    %cst_97 = arith.constant 1.000000e+00 : f32
    %563 = vector.broadcast %cst_97 : f32 to vector<1x128xf32>
    %564 = arith.addf %563, %562 : vector<1x128xf32>
    %565 = arith.divf %563, %564 : vector<1x128xf32>
    %566 = math.tanh %560 : vector<1x128xf32>
    %567 = vector.extract_strided_slice %565 {offsets = [0, 32], sizes = [1, 32], strides = [1, 1]} : vector<1x128xf32> to vector<1x32xf32>
    %568 = arith.mulf %567, %535 : vector<1x32xf32>
    %569 = vector.extract_strided_slice %565 {offsets = [0, 0], sizes = [1, 32], strides = [1, 1]} : vector<1x128xf32> to vector<1x32xf32>
    %570 = vector.extract_strided_slice %566 {offsets = [0, 64], sizes = [1, 32], strides = [1, 1]} : vector<1x128xf32> to vector<1x32xf32>
    %571 = arith.mulf %569, %570 : vector<1x32xf32>
    %572 = arith.addf %568, %571 : vector<1x32xf32>
    %573 = vector.extract_strided_slice %565 {offsets = [0, 96], sizes = [1, 32], strides = [1, 1]} : vector<1x128xf32> to vector<1x32xf32>
    %574 = math.tanh %572 : vector<1x32xf32>
    %575 = arith.mulf %573, %574 : vector<1x32xf32>
    %c7 = arith.constant 7 : index
    %c0_98 = arith.constant 0 : index
    %576 = vector.load %arg13[%c7, %c0_98] : memref<16x32xf32, #tpu.memory_space<vmem>>, vector<1x32xf32>
    tpu.vector_store %arg13[%c7, %c0_98], %575 {strides = array<i32>} : memref<16x32xf32, #tpu.memory_space<vmem>>, vector<1x32xf32>,
    %577 = vector.extract_strided_slice %20 {offsets = [15, 0], sizes = [1, 128], strides = [1, 1]} : vector<16x128xf32> to vector<1x128xf32>
    %cst_99 = arith.constant dense<0.000000e+00> : vector<1x128xf32>
    %578 = tpu.matmul %557, %8, %cst_99 {dimension_numbers = #tpu.dot_dimension_numbers<[1], [0], [0], [1], [0, 0, 1, 1], [], []>} : vector<1x32xf32>, vector<32x128xf32>, vector<1x128xf32> -> vector<1x128xf32>
    %579 = arith.addf %577, %578 : vector<1x128xf32>
    %580 = arith.negf %579 : vector<1x128xf32>
    %581 = math.exp %580 : vector<1x128xf32>
    %cst_100 = arith.constant 1.000000e+00 : f32
    %582 = vector.broadcast %cst_100 : f32 to vector<1x128xf32>
    %583 = arith.addf %582, %581 : vector<1x128xf32>
    %584 = arith.divf %582, %583 : vector<1x128xf32>
    %585 = math.tanh %579 : vector<1x128xf32>
    %586 = vector.extract_strided_slice %584 {offsets = [0, 32], sizes = [1, 32], strides = [1, 1]} : vector<1x128xf32> to vector<1x32xf32>
    %587 = arith.mulf %586, %554 : vector<1x32xf32>
    %588 = vector.extract_strided_slice %584 {offsets = [0, 0], sizes = [1, 32], strides = [1, 1]} : vector<1x128xf32> to vector<1x32xf32>
    %589 = vector.extract_strided_slice %585 {offsets = [0, 64], sizes = [1, 32], strides = [1, 1]} : vector<1x128xf32> to vector<1x32xf32>
    %590 = arith.mulf %588, %589 : vector<1x32xf32>
    %591 = arith.addf %587, %590 : vector<1x32xf32>
    %592 = vector.extract_strided_slice %584 {offsets = [0, 96], sizes = [1, 32], strides = [1, 1]} : vector<1x128xf32> to vector<1x32xf32>
    %593 = math.tanh %591 : vector<1x32xf32>
    %594 = arith.mulf %592, %593 : vector<1x32xf32>
    %595 = tpu.concatenate %594, %575 in 1 : vector<1x32xf32>, vector<1x32xf32> -> vector<1x64xf32>
    %cst_101 = arith.constant dense<0.000000e+00> : vector<1x128xf32>
    %596 = tpu.matmul %595, %9, %cst_101 {dimension_numbers = #tpu.dot_dimension_numbers<[1], [0], [0], [1], [0, 0, 1, 1], [], []>} : vector<1x64xf32>, vector<64x128xf32>, vector<1x128xf32> -> vector<1x128xf32>
    %597 = arith.addf %596, %10 : vector<1x128xf32>
    %598 = arith.negf %597 : vector<1x128xf32>
    %599 = math.exp %598 : vector<1x128xf32>
    %cst_102 = arith.constant 1.000000e+00 : f32
    %600 = vector.broadcast %cst_102 : f32 to vector<1x128xf32>
    %601 = arith.addf %600, %599 : vector<1x128xf32>
    %602 = arith.divf %600, %601 : vector<1x128xf32>
    %603 = math.tanh %597 : vector<1x128xf32>
    %604 = vector.extract_strided_slice %602 {offsets = [0, 32], sizes = [1, 32], strides = [1, 1]} : vector<1x128xf32> to vector<1x32xf32>
    %605 = arith.mulf %604, %572 : vector<1x32xf32>
    %606 = vector.extract_strided_slice %602 {offsets = [0, 0], sizes = [1, 32], strides = [1, 1]} : vector<1x128xf32> to vector<1x32xf32>
    %607 = vector.extract_strided_slice %603 {offsets = [0, 64], sizes = [1, 32], strides = [1, 1]} : vector<1x128xf32> to vector<1x32xf32>
    %608 = arith.mulf %606, %607 : vector<1x32xf32>
    %609 = arith.addf %605, %608 : vector<1x32xf32>
    %610 = vector.extract_strided_slice %602 {offsets = [0, 96], sizes = [1, 32], strides = [1, 1]} : vector<1x128xf32> to vector<1x32xf32>
    %611 = math.tanh %609 : vector<1x32xf32>
    %612 = arith.mulf %610, %611 : vector<1x32xf32>
    %c15 = arith.constant 15 : index
    %c0_103 = arith.constant 0 : index
    %613 = vector.load %arg13[%c15, %c0_103] : memref<16x32xf32, #tpu.memory_space<vmem>>, vector<1x32xf32>
    tpu.vector_store %arg13[%c15, %c0_103], %612 {strides = array<i32>} : memref<16x32xf32, #tpu.memory_space<vmem>>, vector<1x32xf32>,
    %c0_104 = arith.constant 0 : index
    %c0_105 = arith.constant 0 : index
    %614 = vector.load %arg13[%c0_104, %c0_105] : memref<16x32xf32, #tpu.memory_space<vmem>>, vector<16x32xf32>
    %c0_106 = arith.constant 0 : index
    %c0_107 = arith.constant 0 : index
    %615 = vector.load %arg10[%c0_106, %c0_107] : memref<32x128xf32, #tpu.memory_space<vmem>>, vector<32x128xf32>
    %cst_108 = arith.constant dense<0.000000e+00> : vector<16x128xf32>
    %616 = tpu.matmul %614, %615, %cst_108 {dimension_numbers = #tpu.dot_dimension_numbers<[1], [0], [0], [1], [0, 0, 1, 1], [], []>} : vector<16x32xf32>, vector<32x128xf32>, vector<16x128xf32> -> vector<16x128xf32>
    %c0_109 = arith.constant 0 : index
    %c0_110 = arith.constant 0 : index
    %617 = vector.load %arg11[%c0_109, %c0_110] : memref<1x128xf32, #tpu.memory_space<vmem>>, vector<1x128xf32>
    %618 = vector.broadcast %617 : vector<1x128xf32> to vector<16x128xf32>
    %619 = arith.addf %616, %618 : vector<16x128xf32>
    %620 = vector.shape_cast %619 : vector<16x128xf32> to vector<2x8x128xf32>
    %c0_111 = arith.constant 0 : index
    %c0_112 = arith.constant 0 : index
    %c0_113 = arith.constant 0 : index
    %621 = vector.load %arg12[%c0_111, %c0_112, %c0_113] : memref<2x8x128xf32, #tpu.memory_space<vmem>>, vector<2x8x128xf32>
    tpu.vector_store %arg12[%c0_111, %c0_112, %c0_113], %620 {strides = array<i32>} : memref<2x8x128xf32, #tpu.memory_space<vmem>>, vector<2x8x128xf32>,
    return
  }
}

</mosaic_0001>

<llo_original>
// kernel: tpu_custom_call.1
$region0: #{tpu_custom_call.1}
  #allocation0 [shape = 'u32[]', space=smem, size = 0x4, offset = 0x4, fixed_abs, tag = 'smem constant byte address 0x4 - core index']
  #allocation1 [shape = 'u32[72,128]{1,0:T(1,128)}', space=vmem, size = 0x9000, scoped, tag = 'internal scratch']
  #allocation2 [shape = 'f32[16,32]{1,0:T(8,128)}', space=vmem, size = 0x2000, scoped, tag = 'scratch operand']
  %s0 = inlined_call_operand.vmem [shape: f32[2,2048], index: 0, kind: input, shape index: {}]
  %s1 = inlined_call_operand.vmem [shape: f32[2048,32], index: 1, kind: input, shape index: {}]
  %s2 = inlined_call_operand.vmem [shape: f32[1,32], index: 2, kind: input, shape index: {}]
  %s3 = inlined_call_operand.vmem [shape: f32[16,32], index: 3, kind: input, shape index: {}]
  %s4 = inlined_call_operand.vmem [shape: f32[32,128], index: 4, kind: input, shape index: {}]
  %s5 = inlined_call_operand.vmem [shape: f32[32,128], index: 5, kind: input, shape index: {}]
  %s6 = inlined_call_operand.vmem [shape: f32[32,128], index: 6, kind: input, shape index: {}]
  %s7 = inlined_call_operand.vmem [shape: f32[1,128], index: 7, kind: input, shape index: {}]
  %s8 = inlined_call_operand.vmem [shape: f32[64,128], index: 8, kind: input, shape index: {}]
  %s9 = inlined_call_operand.vmem [shape: f32[1,128], index: 9, kind: input, shape index: {}]
  %s10 = inlined_call_operand.vmem [shape: f32[32,128], index: 10, kind: input, shape index: {}]
  %s11 = inlined_call_operand.vmem [shape: f32[1,128], index: 11, kind: input, shape index: {}]
  %s12 = inlined_call_operand.hbm [shape: f32[2,8,128], index: 12, kind: output, shape index: {}]
  %s13 = sld [smem:[#allocation0]]
  $region58: #{tpu_custom_call.1} parent=0
    _
  %s15 = ssub.s32 1, %s13
  %s16 = scalar_select 0, %s15, %s13
  $region1: #{tpu_custom_call.1} parent=0
    #allocation3 [shape = 'u8[8192]{0}', space=vmem, size = 0x2000, scoped, tag = 'output window, operand 0, single buffered']
    #allocation4 [shape = 's32[1]{0}', space=sflag, size = 0x4, scoped, tag = 'scoped memory for tpu_custom_call.1']
    %17 = vsyncpa [#allocation4], 0
    // Predicated region
    $region2: #{tpu_custom_call.1} parent=1 // pred_check
      _
    $region3: #{tpu_custom_call.1} parent=1 // pred_check_branch
      %19 = sbr.rel (0) target = $region5
    $region4: #{tpu_custom_call.1} parent=1 // pred_region
      _
    $region5: #{tpu_custom_call.1} parent=1 // pred_fallthru
      _
    // Predicated region
    $region6: #{tpu_custom_call.1} parent=1 // pred_check
      _
    $region7: #{tpu_custom_call.1} parent=1 // pred_check_branch
      %21 = sbr.rel (0) target = $region9
    $region8: #{tpu_custom_call.1} parent=1 // pred_region
      _
    $region9: #{tpu_custom_call.1} parent=1 // pred_fallthru
      _
    // Predicated region
    $region10: #{tpu_custom_call.1} parent=1 // pred_check
      _
    $region11: #{tpu_custom_call.1} parent=1 // pred_check_branch
      %23 = sbr.rel (0) target = $region13
    $region12: #{tpu_custom_call.1} parent=1 // pred_region
      _
    $region13: #{tpu_custom_call.1} parent=1 // pred_fallthru
      _
    // Predicated region
    $region14: #{tpu_custom_call.1} parent=1 // pred_check
      _
    $region15: #{tpu_custom_call.1} parent=1 // pred_check_branch
      %25 = sbr.rel (0) target = $region17
    $region16: #{tpu_custom_call.1} parent=1 // pred_region
      _
    $region17: #{tpu_custom_call.1} parent=1 // pred_fallthru
      _
    // Predicated region
    $region18: #{tpu_custom_call.1} parent=1 // pred_check
      _
    $region19: #{tpu_custom_call.1} parent=1 // pred_check_branch
      %27 = sbr.rel (0) target = $region21
    $region20: #{tpu_custom_call.1} parent=1 // pred_region
      _
    $region21: #{tpu_custom_call.1} parent=1 // pred_fallthru
      _
    // Predicated region
    $region22: #{tpu_custom_call.1} parent=1 // pred_check
      _
    $region23: #{tpu_custom_call.1} parent=1 // pred_check_branch
      %29 = sbr.rel (0) target = $region25
    $region24: #{tpu_custom_call.1} parent=1 // pred_region
      _
    $region25: #{tpu_custom_call.1} parent=1 // pred_fallthru
      _
    // Predicated region
    $region26: #{tpu_custom_call.1} parent=1 // pred_check
      _
    $region27: #{tpu_custom_call.1} parent=1 // pred_check_branch
      %31 = sbr.rel (0) target = $region29
    $region28: #{tpu_custom_call.1} parent=1 // pred_region
      _
    $region29: #{tpu_custom_call.1} parent=1 // pred_fallthru
      _
    // Predicated region
    $region30: #{tpu_custom_call.1} parent=1 // pred_check
      _
    $region31: #{tpu_custom_call.1} parent=1 // pred_check_branch
      %33 = sbr.rel (0) target = $region33
    $region32: #{tpu_custom_call.1} parent=1 // pred_region
      _
    $region33: #{tpu_custom_call.1} parent=1 // pred_fallthru
      _
    // Predicated region
    $region34: #{tpu_custom_call.1} parent=1 // pred_check
      _
    $region35: #{tpu_custom_call.1} parent=1 // pred_check_branch
      %35 = sbr.rel (0) target = $region37
    $region36: #{tpu_custom_call.1} parent=1 // pred_region
      _
    $region37: #{tpu_custom_call.1} parent=1 // pred_fallthru
      _
    // Predicated region
    $region38: #{tpu_custom_call.1} parent=1 // pred_check
      _
    $region39: #{tpu_custom_call.1} parent=1 // pred_check_branch
      %37 = sbr.rel (0) target = $region41
    $region40: #{tpu_custom_call.1} parent=1 // pred_region
      _
    $region41: #{tpu_custom_call.1} parent=1 // pred_fallthru
      _
    // Predicated region
    $region42: #{tpu_custom_call.1} parent=1 // pred_check
      _
    $region43: #{tpu_custom_call.1} parent=1 // pred_check_branch
      %39 = sbr.rel (0) target = $region45
    $region44: #{tpu_custom_call.1} parent=1 // pred_region
      _
    $region45: #{tpu_custom_call.1} parent=1 // pred_fallthru
      _
    // Predicated region
    $region46: #{tpu_custom_call.1} parent=1 // pred_check
      _
    $region47: #{tpu_custom_call.1} parent=1 // pred_check_branch
      %41 = sbr.rel (0) target = $region49
    $region48: #{tpu_custom_call.1} parent=1 // pred_region
      _
    $region49: #{tpu_custom_call.1} parent=1 // pred_fallthru
      _
    %v42 = vld [vmem:[%s0] sm:$0xff]
    %v43 = vld [vmem:[%s0 + $0x8] sm:$0xff]
    %v44 = vld [vmem:[%s0 + $0x10] sm:$0xff]
    %v45 = vld [vmem:[%s0 + $0x18] sm:$0xff]
    %v46 = vld [vmem:[%s1] sm:$0xff]
    %v47 = vld [vmem:[%s1 + $0x8] sm:$0xff]
    %v48 = vld [vmem:[%s1 + $0x10] sm:$0xff]
    %v49 = vld [vmem:[%s1 + $0x18] sm:$0xff]
    %v50 = vld [vmem:[%s1 + $0x20] sm:$0xff]
    %v51 = vld [vmem:[%s1 + $0x28] sm:$0xff]
    %v52 = vld [vmem:[%s1 + $0x30] sm:$0xff]
    %v53 = vld [vmem:[%s1 + $0x38] sm:$0xff]
    %v54 = vld [vmem:[%s1 + $0x40] sm:$0xff]
    %v55 = vld [vmem:[%s1 + $0x48] sm:$0xff]
    %v56 = vld [vmem:[%s1 + $0x50] sm:$0xff]
    %v57 = vld [vmem:[%s1 + $0x58] sm:$0xff]
    %v58 = vld [vmem:[%s1 + $0x60] sm:$0xff]
    %v59 = vld [vmem:[%s1 + $0x68] sm:$0xff]
    %v60 = vld [vmem:[%s1 + $0x70] sm:$0xff]
    %v61 = vld [vmem:[%s1 + $0x78] sm:$0xff]
    %v62 = vld [vmem:[%s1 + $0x80] sm:$0xff]
    %v63 = vld [vmem:[%s1 + $0x88] sm:$0xff]
    %v64 = vld [vmem:[%s1 + $0x90] sm:$0xff]
    %v65 = vld [vmem:[%s1 + $0x98] sm:$0xff]
    %v66 = vld [vmem:[%s1 + $0xa0] sm:$0xff]
    %v67 = vld [vmem:[%s1 + $0xa8] sm:$0xff]
    %v68 = vld [vmem:[%s1 + $0xb0] sm:$0xff]
    %v69 = vld [vmem:[%s1 + $0xb8] sm:$0xff]
    %v70 = vld [vmem:[%s1 + $0xc0] sm:$0xff]
    %v71 = vld [vmem:[%s1 + $0xc8] sm:$0xff]
    %v72 = vld [vmem:[%s1 + $0xd0] sm:$0xff]
    %v73 = vld [vmem:[%s1 + $0xd8] sm:$0xff]
    %v74 = vld [vmem:[%s1 + $0xe0] sm:$0xff]
    %v75 = vld [vmem:[%s1 + $0xe8] sm:$0xff]
    %v76 = vld [vmem:[%s1 + $0xf0] sm:$0xff]
    %v77 = vld [vmem:[%s1 + $0xf8] sm:$0xff]
    %v78 = vld [vmem:[%s1 + $0x100] sm:$0xff]
    %v79 = vld [vmem:[%s1 + $0x108] sm:$0xff]
    %v80 = vld [vmem:[%s1 + $0x110] sm:$0xff]
    %v81 = vld [vmem:[%s1 + $0x118] sm:$0xff]
    %v82 = vld [vmem:[%s1 + $0x120] sm:$0xff]
    %v83 = vld [vmem:[%s1 + $0x128] sm:$0xff]
    %v84 = vld [vmem:[%s1 + $0x130] sm:$0xff]
    %v85 = vld [vmem:[%s1 + $0x138] sm:$0xff]
    %v86 = vld [vmem:[%s1 + $0x140] sm:$0xff]
    %v87 = vld [vmem:[%s1 + $0x148] sm:$0xff]
    %v88 = vld [vmem:[%s1 + $0x150] sm:$0xff]
    %v89 = vld [vmem:[%s1 + $0x158] sm:$0xff]
    %v90 = vld [vmem:[%s1 + $0x160] sm:$0xff]
    %v91 = vld [vmem:[%s1 + $0x168] sm:$0xff]
    %v92 = vld [vmem:[%s1 + $0x170] sm:$0xff]
    %v93 = vld [vmem:[%s1 + $0x178] sm:$0xff]
    %v94 = vld [vmem:[%s1 + $0x180] sm:$0xff]
    %v95 = vld [vmem:[%s1 + $0x188] sm:$0xff]
    %v96 = vld [vmem:[%s1 + $0x190] sm:$0xff]
    %v97 = vld [vmem:[%s1 + $0x198] sm:$0xff]
    %v98 = vld [vmem:[%s1 + $0x1a0] sm:$0xff]
    %v99 = vld [vmem:[%s1 + $0x1a8] sm:$0xff]
    %v100 = vld [vmem:[%s1 + $0x1b0] sm:$0xff]
    %v101 = vld [vmem:[%s1 + $0x1b8] sm:$0xff]
    %v102 = vld [vmem:[%s1 + $0x1c0] sm:$0xff]
    %v103 = vld [vmem:[%s1 + $0x1c8] sm:$0xff]
    %v104 = vld [vmem:[%s1 + $0x1d0] sm:$0xff]
    %v105 = vld [vmem:[%s1 + $0x1d8] sm:$0xff]
    %v106 = vld [vmem:[%s1 + $0x1e0] sm:$0xff]
    %v107 = vld [vmem:[%s1 + $0x1e8] sm:$0xff]
    %v108 = vld [vmem:[%s1 + $0x1f0] sm:$0xff]
    %v109 = vld [vmem:[%s1 + $0x1f8] sm:$0xff]
    %v110 = vld [vmem:[%s1 + $0x200] sm:$0xff]
    %v111 = vld [vmem:[%s1 + $0x208] sm:$0xff]
    %v112 = vld [vmem:[%s1 + $0x210] sm:$0xff]
    %v113 = vld [vmem:[%s1 + $0x218] sm:$0xff]
    %v114 = vld [vmem:[%s1 + $0x220] sm:$0xff]
    %v115 = vld [vmem:[%s1 + $0x228] sm:$0xff]
    %v116 = vld [vmem:[%s1 + $0x230] sm:$0xff]
    %v117 = vld [vmem:[%s1 + $0x238] sm:$0xff]
    %v118 = vld [vmem:[%s1 + $0x240] sm:$0xff]
    %v119 = vld [vmem:[%s1 + $0x248] sm:$0xff]
    %v120 = vld [vmem:[%s1 + $0x250] sm:$0xff]
    %v121 = vld [vmem:[%s1 + $0x258] sm:$0xff]
    %v122 = vld [vmem:[%s1 + $0x260] sm:$0xff]
    %v123 = vld [vmem:[%s1 + $0x268] sm:$0xff]
    %v124 = vld [vmem:[%s1 + $0x270] sm:$0xff]
    %v125 = vld [vmem:[%s1 + $0x278] sm:$0xff]
    %v126 = vld [vmem:[%s1 + $0x280] sm:$0xff]
    %v127 = vld [vmem:[%s1 + $0x288] sm:$0xff]
    %v128 = vld [vmem:[%s1 + $0x290] sm:$0xff]
    %v129 = vld [vmem:[%s1 + $0x298] sm:$0xff]
    %v130 = vld [vmem:[%s1 + $0x2a0] sm:$0xff]
    %v131 = vld [vmem:[%s1 + $0x2a8] sm:$0xff]
    %v132 = vld [vmem:[%s1 + $0x2b0] sm:$0xff]
    %v133 = vld [vmem:[%s1 + $0x2b8] sm:$0xff]
    %v134 = vld [vmem:[%s1 + $0x2c0] sm:$0xff]
    %v135 = vld [vmem:[%s1 + $0x2c8] sm:$0xff]
    %v136 = vld [vmem:[%s1 + $0x2d0] sm:$0xff]
    %v137 = vld [vmem:[%s1 + $0x2d8] sm:$0xff]
    %v138 = vld [vmem:[%s1 + $0x2e0] sm:$0xff]
    %v139 = vld [vmem:[%s1 + $0x2e8] sm:$0xff]
    %v140 = vld [vmem:[%s1 + $0x2f0] sm:$0xff]
    %v141 = vld [vmem:[%s1 + $0x2f8] sm:$0xff]
    %v142 = vld [vmem:[%s1 + $0x300] sm:$0xff]
    %v143 = vld [vmem:[%s1 + $0x308] sm:$0xff]
    %v144 = vld [vmem:[%s1 + $0x310] sm:$0xff]
    %v145 = vld [vmem:[%s1 + $0x318] sm:$0xff]
    %v146 = vld [vmem:[%s1 + $0x320] sm:$0xff]
    %v147 = vld [vmem:[%s1 + $0x328] sm:$0xff]
    %v148 = vld [vmem:[%s1 + $0x330] sm:$0xff]
    %v149 = vld [vmem:[%s1 + $0x338] sm:$0xff]
    %v150 = vld [vmem:[%s1 + $0x340] sm:$0xff]
    %v151 = vld [vmem:[%s1 + $0x348] sm:$0xff]
    %v152 = vld [vmem:[%s1 + $0x350] sm:$0xff]
    %v153 = vld [vmem:[%s1 + $0x358] sm:$0xff]
    %v154 = vld [vmem:[%s1 + $0x360] sm:$0xff]
    %v155 = vld [vmem:[%s1 + $0x368] sm:$0xff]
    %v156 = vld [vmem:[%s1 + $0x370] sm:$0xff]
    %v157 = vld [vmem:[%s1 + $0x378] sm:$0xff]
    %v158 = vld [vmem:[%s1 + $0x380] sm:$0xff]
    %v159 = vld [vmem:[%s1 + $0x388] sm:$0xff]
    %v160 = vld [vmem:[%s1 + $0x390] sm:$0xff]
    %v161 = vld [vmem:[%s1 + $0x398] sm:$0xff]
    %v162 = vld [vmem:[%s1 + $0x3a0] sm:$0xff]
    %v163 = vld [vmem:[%s1 + $0x3a8] sm:$0xff]
    %v164 = vld [vmem:[%s1 + $0x3b0] sm:$0xff]
    %v165 = vld [vmem:[%s1 + $0x3b8] sm:$0xff]
    %v166 = vld [vmem:[%s1 + $0x3c0] sm:$0xff]
    %v167 = vld [vmem:[%s1 + $0x3c8] sm:$0xff]
    %v168 = vld [vmem:[%s1 + $0x3d0] sm:$0xff]
    %v169 = vld [vmem:[%s1 + $0x3d8] sm:$0xff]
    %v170 = vld [vmem:[%s1 + $0x3e0] sm:$0xff]
    %v171 = vld [vmem:[%s1 + $0x3e8] sm:$0xff]
    %v172 = vld [vmem:[%s1 + $0x3f0] sm:$0xff]
    %v173 = vld [vmem:[%s1 + $0x3f8] sm:$0xff]
    %v174 = vld [vmem:[%s1 + $0x400] sm:$0xff]
    %v175 = vld [vmem:[%s1 + $0x408] sm:$0xff]
    %v176 = vld [vmem:[%s1 + $0x410] sm:$0xff]
    %v177 = vld [vmem:[%s1 + $0x418] sm:$0xff]
    %v178 = vld [vmem:[%s1 + $0x420] sm:$0xff]
    %v179 = vld [vmem:[%s1 + $0x428] sm:$0xff]
    %v180 = vld [vmem:[%s1 + $0x430] sm:$0xff]
    %v181 = vld [vmem:[%s1 + $0x438] sm:$0xff]
    %v182 = vld [vmem:[%s1 + $0x440] sm:$0xff]
    %v183 = vld [vmem:[%s1 + $0x448] sm:$0xff]
    %v184 = vld [vmem:[%s1 + $0x450] sm:$0xff]
    %v185 = vld [vmem:[%s1 + $0x458] sm:$0xff]
    %v186 = vld [vmem:[%s1 + $0x460] sm:$0xff]
    %v187 = vld [vmem:[%s1 + $0x468] sm:$0xff]
    %v188 = vld [vmem:[%s1 + $0x470] sm:$0xff]
    %v189 = vld [vmem:[%s1 + $0x478] sm:$0xff]
    %v190 = vld [vmem:[%s1 + $0x480] sm:$0xff]
    %v191 = vld [vmem:[%s1 + $0x488] sm:$0xff]
    %v192 = vld [vmem:[%s1 + $0x490] sm:$0xff]
    %v193 = vld [vmem:[%s1 + $0x498] sm:$0xff]
    %v194 = vld [vmem:[%s1 + $0x4a0] sm:$0xff]
    %v195 = vld [vmem:[%s1 + $0x4a8] sm:$0xff]
    %v196 = vld [vmem:[%s1 + $0x4b0] sm:$0xff]
    %v197 = vld [vmem:[%s1 + $0x4b8] sm:$0xff]
    %v198 = vld [vmem:[%s1 + $0x4c0] sm:$0xff]
    %v199 = vld [vmem:[%s1 + $0x4c8] sm:$0xff]
    %v200 = vld [vmem:[%s1 + $0x4d0] sm:$0xff]
    %v201 = vld [vmem:[%s1 + $0x4d8] sm:$0xff]
    %v202 = vld [vmem:[%s1 + $0x4e0] sm:$0xff]
    %v203 = vld [vmem:[%s1 + $0x4e8] sm:$0xff]
    %v204 = vld [vmem:[%s1 + $0x4f0] sm:$0xff]
    %v205 = vld [vmem:[%s1 + $0x4f8] sm:$0xff]
    %v206 = vld [vmem:[%s1 + $0x500] sm:$0xff]
    %v207 = vld [vmem:[%s1 + $0x508] sm:$0xff]
    %v208 = vld [vmem:[%s1 + $0x510] sm:$0xff]
    %v209 = vld [vmem:[%s1 + $0x518] sm:$0xff]
    %v210 = vld [vmem:[%s1 + $0x520] sm:$0xff]
    %v211 = vld [vmem:[%s1 + $0x528] sm:$0xff]
    %v212 = vld [vmem:[%s1 + $0x530] sm:$0xff]
    %v213 = vld [vmem:[%s1 + $0x538] sm:$0xff]
    %v214 = vld [vmem:[%s1 + $0x540] sm:$0xff]
    %v215 = vld [vmem:[%s1 + $0x548] sm:$0xff]
    %v216 = vld [vmem:[%s1 + $0x550] sm:$0xff]
    %v217 = vld [vmem:[%s1 + $0x558] sm:$0xff]
    %v218 = vld [vmem:[%s1 + $0x560] sm:$0xff]
    %v219 = vld [vmem:[%s1 + $0x568] sm:$0xff]
    %v220 = vld [vmem:[%s1 + $0x570] sm:$0xff]
    %v221 = vld [vmem:[%s1 + $0x578] sm:$0xff]
    %v222 = vld [vmem:[%s1 + $0x580] sm:$0xff]
    %v223 = vld [vmem:[%s1 + $0x588] sm:$0xff]
    %v224 = vld [vmem:[%s1 + $0x590] sm:$0xff]
    %v225 = vld [vmem:[%s1 + $0x598] sm:$0xff]
    %v226 = vld [vmem:[%s1 + $0x5a0] sm:$0xff]
    %v227 = vld [vmem:[%s1 + $0x5a8] sm:$0xff]
    %v228 = vld [vmem:[%s1 + $0x5b0] sm:$0xff]
    %v229 = vld [vmem:[%s1 + $0x5b8] sm:$0xff]
    %v230 = vld [vmem:[%s1 + $0x5c0] sm:$0xff]
    %v231 = vld [vmem:[%s1 + $0x5c8] sm:$0xff]
    %v232 = vld [vmem:[%s1 + $0x5d0] sm:$0xff]
    %v233 = vld [vmem:[%s1 + $0x5d8] sm:$0xff]
    %v234 = vld [vmem:[%s1 + $0x5e0] sm:$0xff]
    %v235 = vld [vmem:[%s1 + $0x5e8] sm:$0xff]
    %v236 = vld [vmem:[%s1 + $0x5f0] sm:$0xff]
    %v237 = vld [vmem:[%s1 + $0x5f8] sm:$0xff]
    %v238 = vld [vmem:[%s1 + $0x600] sm:$0xff]
    %v239 = vld [vmem:[%s1 + $0x608] sm:$0xff]
    %v240 = vld [vmem:[%s1 + $0x610] sm:$0xff]
    %v241 = vld [vmem:[%s1 + $0x618] sm:$0xff]
    %v242 = vld [vmem:[%s1 + $0x620] sm:$0xff]
    %v243 = vld [vmem:[%s1 + $0x628] sm:$0xff]
    %v244 = vld [vmem:[%s1 + $0x630] sm:$0xff]
    %v245 = vld [vmem:[%s1 + $0x638] sm:$0xff]
    %v246 = vld [vmem:[%s1 + $0x640] sm:$0xff]
    %v247 = vld [vmem:[%s1 + $0x648] sm:$0xff]
    %v248 = vld [vmem:[%s1 + $0x650] sm:$0xff]
    %v249 = vld [vmem:[%s1 + $0x658] sm:$0xff]
    %v250 = vld [vmem:[%s1 + $0x660] sm:$0xff]
    %v251 = vld [vmem:[%s1 + $0x668] sm:$0xff]
    %v252 = vld [vmem:[%s1 + $0x670] sm:$0xff]
    %v253 = vld [vmem:[%s1 + $0x678] sm:$0xff]
    %v254 = vld [vmem:[%s1 + $0x680] sm:$0xff]
    %v255 = vld [vmem:[%s1 + $0x688] sm:$0xff]
    %v256 = vld [vmem:[%s1 + $0x690] sm:$0xff]
    %v257 = vld [vmem:[%s1 + $0x698] sm:$0xff]
    %v258 = vld [vmem:[%s1 + $0x6a0] sm:$0xff]
    %v259 = vld [vmem:[%s1 + $0x6a8] sm:$0xff]
    %v260 = vld [vmem:[%s1 + $0x6b0] sm:$0xff]
    %v261 = vld [vmem:[%s1 + $0x6b8] sm:$0xff]
    %v262 = vld [vmem:[%s1 + $0x6c0] sm:$0xff]
    %v263 = vld [vmem:[%s1 + $0x6c8] sm:$0xff]
    %v264 = vld [vmem:[%s1 + $0x6d0] sm:$0xff]
    %v265 = vld [vmem:[%s1 + $0x6d8] sm:$0xff]
    %v266 = vld [vmem:[%s1 + $0x6e0] sm:$0xff]
    %v267 = vld [vmem:[%s1 + $0x6e8] sm:$0xff]
    %v268 = vld [vmem:[%s1 + $0x6f0] sm:$0xff]
    %v269 = vld [vmem:[%s1 + $0x6f8] sm:$0xff]
    %v270 = vld [vmem:[%s1 + $0x700] sm:$0xff]
    %v271 = vld [vmem:[%s1 + $0x708] sm:$0xff]
    %v272 = vld [vmem:[%s1 + $0x710] sm:$0xff]
    %v273 = vld [vmem:[%s1 + $0x718] sm:$0xff]
    %v274 = vld [vmem:[%s1 + $0x720] sm:$0xff]
    %v275 = vld [vmem:[%s1 + $0x728] sm:$0xff]
    %v276 = vld [vmem:[%s1 + $0x730] sm:$0xff]
    %v277 = vld [vmem:[%s1 + $0x738] sm:$0xff]
    %v278 = vld [vmem:[%s1 + $0x740] sm:$0xff]
    %v279 = vld [vmem:[%s1 + $0x748] sm:$0xff]
    %v280 = vld [vmem:[%s1 + $0x750] sm:$0xff]
    %v281 = vld [vmem:[%s1 + $0x758] sm:$0xff]
    %v282 = vld [vmem:[%s1 + $0x760] sm:$0xff]
    %v283 = vld [vmem:[%s1 + $0x768] sm:$0xff]
    %v284 = vld [vmem:[%s1 + $0x770] sm:$0xff]
    %v285 = vld [vmem:[%s1 + $0x778] sm:$0xff]
    %v286 = vld [vmem:[%s1 + $0x780] sm:$0xff]
    %v287 = vld [vmem:[%s1 + $0x788] sm:$0xff]
    %v288 = vld [vmem:[%s1 + $0x790] sm:$0xff]
    %v289 = vld [vmem:[%s1 + $0x798] sm:$0xff]
    %v290 = vld [vmem:[%s1 + $0x7a0] sm:$0xff]
    %v291 = vld [vmem:[%s1 + $0x7a8] sm:$0xff]
    %v292 = vld [vmem:[%s1 + $0x7b0] sm:$0xff]
    %v293 = vld [vmem:[%s1 + $0x7b8] sm:$0xff]
    %v294 = vld [vmem:[%s1 + $0x7c0] sm:$0xff]
    %v295 = vld [vmem:[%s1 + $0x7c8] sm:$0xff]
    %v296 = vld [vmem:[%s1 + $0x7d0] sm:$0xff]
    %v297 = vld [vmem:[%s1 + $0x7d8] sm:$0xff]
    %v298 = vld [vmem:[%s1 + $0x7e0] sm:$0xff]
    %v299 = vld [vmem:[%s1 + $0x7e8] sm:$0xff]
    %v300 = vld [vmem:[%s1 + $0x7f0] sm:$0xff]
    %v301 = vld [vmem:[%s1 + $0x7f8] sm:$0xff]
    %v302 = vld [vmem:[%s2] sm:$0x1]
    %v304 = vperm.slane %v302, 0
    %310 = vst [vmem:[#allocation1] ss:$4 sm:$0xff] %v42
    %s311 = scalar_lea.vmem [#allocation1], 32
    %312 = vst [vmem:[%s311] ss:$4 sm:$0xff] %v43
    %v313 = vld.sshfl [vmem:[#allocation1] sm:$0xff pattern:$0x73625140]
    %v314 = vld.sshfl [vmem:[#allocation1 + $0x8] sm:$0xff pattern:$0x73625140]
    %v315 = vld.sshfl [vmem:[#allocation1 + $0x10] sm:$0xff pattern:$0x73625140]
    %v316 = vld.sshfl [vmem:[#allocation1 + $0x18] sm:$0xff pattern:$0x73625140]
    %v317 = vld.sshfl [vmem:[#allocation1 + $0x20] sm:$0xff pattern:$0x73625140]
    %v318 = vld.sshfl [vmem:[#allocation1 + $0x28] sm:$0xff pattern:$0x73625140]
    %v319 = vld.sshfl [vmem:[#allocation1 + $0x30] sm:$0xff pattern:$0x73625140]
    %v320 = vld.sshfl [vmem:[#allocation1 + $0x38] sm:$0xff pattern:$0x73625140]
    %321 = vst [vmem:[#allocation1] ss:$4 sm:$0xff] %v44
    %322 = vst [vmem:[%s311] ss:$4 sm:$0xff] %v45
    %v323 = vld.sshfl [vmem:[#allocation1] sm:$0xff pattern:$0x73625140]
    %v324 = vld.sshfl [vmem:[#allocation1 + $0x8] sm:$0xff pattern:$0x73625140]
    %v325 = vld.sshfl [vmem:[#allocation1 + $0x10] sm:$0xff pattern:$0x73625140]
    %v326 = vld.sshfl [vmem:[#allocation1 + $0x18] sm:$0xff pattern:$0x73625140]
    %v327 = vld.sshfl [vmem:[#allocation1 + $0x20] sm:$0xff pattern:$0x73625140]
    %v328 = vld.sshfl [vmem:[#allocation1 + $0x28] sm:$0xff pattern:$0x73625140]
    %v329 = vld.sshfl [vmem:[#allocation1 + $0x30] sm:$0xff pattern:$0x73625140]
    %v330 = vld.sshfl [vmem:[#allocation1 + $0x38] sm:$0xff pattern:$0x73625140]
    %347 = vmatpush.msra.mxu0 %v61
    %348 = vmatpush.msra.mxu0 %v60
    %349 = vmatpush.msra.mxu0 %v59
    %350 = vmatpush.msra.mxu0 %v58
    %351 = vmatpush.msra.mxu0 %v57
    %352 = vmatpush.msra.mxu0 %v56
    %353 = vmatpush.msra.mxu0 %v55
    %354 = vmatpush.msra.mxu0 %v54
    %355 = vmatpush.msra.mxu0 %v53
    %356 = vmatpush.msra.mxu0 %v52
    %357 = vmatpush.msra.mxu0 %v51
    %358 = vmatpush.msra.mxu0 %v50
    %359 = vmatpush.msra.mxu0 %v49
    %360 = vmatpush.msra.mxu0 %v48
    %361 = vmatpush.msra.mxu0 %v47
    %362 = vmatpush.msra.mxu0 %v46
    %363 = vmatmul.f32.gmra.mxu0 %v313
    %v364 = vpop.f32.mrf.mxu0
    %v365 = vadd.f32 %v304, %v364
    %366 = vdwg.mxu0
    %367 = vmatpush.msra.mxu0 %v77
    %368 = vmatpush.msra.mxu0 %v76
    %369 = vmatpush.msra.mxu0 %v75
    %370 = vmatpush.msra.mxu0 %v74
    %371 = vmatpush.msra.mxu0 %v73
    %372 = vmatpush.msra.mxu0 %v72
    %373 = vmatpush.msra.mxu0 %v71
    %374 = vmatpush.msra.mxu0 %v70
    %375 = vmatpush.msra.mxu0 %v69
    %376 = vmatpush.msra.mxu0 %v68
    %377 = vmatpush.msra.mxu0 %v67
    %378 = vmatpush.msra.mxu0 %v66
    %379 = vmatpush.msra.mxu0 %v65
    %380 = vmatpush.msra.mxu0 %v64
    %381 = vmatpush.msra.mxu0 %v63
    %382 = vmatpush.msra.mxu0 %v62
    %383 = vmatmul.f32.gmra.mxu0 %v314
    %v384 = vpop.f32.mrf.mxu0
    %v385 = vadd.f32 %v365, %v384
    %386 = vdwg.mxu0
    %387 = vmatpush.msra.mxu0 %v93
    %388 = vmatpush.msra.mxu0 %v92
    %389 = vmatpush.msra.mxu0 %v91
    %390 = vmatpush.msra.mxu0 %v90
    %391 = vmatpush.msra.mxu0 %v89
    %392 = vmatpush.msra.mxu0 %v88
    %393 = vmatpush.msra.mxu0 %v87
    %394 = vmatpush.msra.mxu0 %v86
    %395 = vmatpush.msra.mxu0 %v85
    %396 = vmatpush.msra.mxu0 %v84
    %397 = vmatpush.msra.mxu0 %v83
    %398 = vmatpush.msra.mxu0 %v82
    %399 = vmatpush.msra.mxu0 %v81
    %400 = vmatpush.msra.mxu0 %v80
    %401 = vmatpush.msra.mxu0 %v79
    %402 = vmatpush.msra.mxu0 %v78
    %403 = vmatmul.f32.gmra.mxu0 %v315
    %v404 = vpop.f32.mrf.mxu0
    %v405 = vadd.f32 %v385, %v404
    %406 = vdwg.mxu0
    %407 = vmatpush.msra.mxu0 %v109
    %408 = vmatpush.msra.mxu0 %v108
    %409 = vmatpush.msra.mxu0 %v107
    %410 = vmatpush.msra.mxu0 %v106
    %411 = vmatpush.msra.mxu0 %v105
    %412 = vmatpush.msra.mxu0 %v104
    %413 = vmatpush.msra.mxu0 %v103
    %414 = vmatpush.msra.mxu0 %v102
    %415 = vmatpush.msra.mxu0 %v101
    %416 = vmatpush.msra.mxu0 %v100
    %417 = vmatpush.msra.mxu0 %v99
    %418 = vmatpush.msra.mxu0 %v98
    %419 = vmatpush.msra.mxu0 %v97
    %420 = vmatpush.msra.mxu0 %v96
    %421 = vmatpush.msra.mxu0 %v95
    %422 = vmatpush.msra.mxu0 %v94
    %423 = vmatmul.f32.gmra.mxu0 %v316
    %v424 = vpop.f32.mrf.mxu0
    %v425 = vadd.f32 %v405, %v424
    %426 = vdwg.mxu0
    %427 = vmatpush.msra.mxu0 %v125
    %428 = vmatpush.msra.mxu0 %v124
    %429 = vmatpush.msra.mxu0 %v123
    %430 = vmatpush.msra.mxu0 %v122
    %431 = vmatpush.msra.mxu0 %v121
    %432 = vmatpush.msra.mxu0 %v120
    %433 = vmatpush.msra.mxu0 %v119
    %434 = vmatpush.msra.mxu0 %v118
    %435 = vmatpush.msra.mxu0 %v117
    %436 = vmatpush.msra.mxu0 %v116
    %437 = vmatpush.msra.mxu0 %v115
    %438 = vmatpush.msra.mxu0 %v114
    %439 = vmatpush.msra.mxu0 %v113
    %440 = vmatpush.msra.mxu0 %v112
    %441 = vmatpush.msra.mxu0 %v111
    %442 = vmatpush.msra.mxu0 %v110
    %443 = vmatmul.f32.gmra.mxu0 %v317
    %v444 = vpop.f32.mrf.mxu0
    %v445 = vadd.f32 %v425, %v444
    %446 = vdwg.mxu0
    %447 = vmatpush.msra.mxu0 %v141
    %448 = vmatpush.msra.mxu0 %v140
    %449 = vmatpush.msra.mxu0 %v139
    %450 = vmatpush.msra.mxu0 %v138
    %451 = vmatpush.msra.mxu0 %v137
    %452 = vmatpush.msra.mxu0 %v136
    %453 = vmatpush.msra.mxu0 %v135
    %454 = vmatpush.msra.mxu0 %v134
    %455 = vmatpush.msra.mxu0 %v133
    %456 = vmatpush.msra.mxu0 %v132
    %457 = vmatpush.msra.mxu0 %v131
    %458 = vmatpush.msra.mxu0 %v130
    %459 = vmatpush.msra.mxu0 %v129
    %460 = vmatpush.msra.mxu0 %v128
    %461 = vmatpush.msra.mxu0 %v127
    %462 = vmatpush.msra.mxu0 %v126
    %463 = vmatmul.f32.gmra.mxu0 %v318
    %v464 = vpop.f32.mrf.mxu0
    %v465 = vadd.f32 %v445, %v464
    %466 = vdwg.mxu0
    %467 = vmatpush.msra.mxu0 %v157
    %468 = vmatpush.msra.mxu0 %v156
    %469 = vmatpush.msra.mxu0 %v155
    %470 = vmatpush.msra.mxu0 %v154
    %471 = vmatpush.msra.mxu0 %v153
    %472 = vmatpush.msra.mxu0 %v152
    %473 = vmatpush.msra.mxu0 %v151
    %474 = vmatpush.msra.mxu0 %v150
    %475 = vmatpush.msra.mxu0 %v149
    %476 = vmatpush.msra.mxu0 %v148
    %477 = vmatpush.msra.mxu0 %v147
    %478 = vmatpush.msra.mxu0 %v146
    %479 = vmatpush.msra.mxu0 %v145
    %480 = vmatpush.msra.mxu0 %v144
    %481 = vmatpush.msra.mxu0 %v143
    %482 = vmatpush.msra.mxu0 %v142
    %483 = vmatmul.f32.gmra.mxu0 %v319
    %v484 = vpop.f32.mrf.mxu0
    %v485 = vadd.f32 %v465, %v484
    %486 = vdwg.mxu0
    %487 = vmatpush.msra.mxu0 %v173
    %488 = vmatpush.msra.mxu0 %v172
    %489 = vmatpush.msra.mxu0 %v171
    %490 = vmatpush.msra.mxu0 %v170
    %491 = vmatpush.msra.mxu0 %v169
    %492 = vmatpush.msra.mxu0 %v168
    %493 = vmatpush.msra.mxu0 %v167
    %494 = vmatpush.msra.mxu0 %v166
    %495 = vmatpush.msra.mxu0 %v165
    %496 = vmatpush.msra.mxu0 %v164
    %497 = vmatpush.msra.mxu0 %v163
    %498 = vmatpush.msra.mxu0 %v162
    %499 = vmatpush.msra.mxu0 %v161
    %500 = vmatpush.msra.mxu0 %v160
    %501 = vmatpush.msra.mxu0 %v159
    %502 = vmatpush.msra.mxu0 %v158
    %503 = vmatmul.f32.gmra.mxu0 %v320
    %v504 = vpop.f32.mrf.mxu0
    %v505 = vadd.f32 %v485, %v504
    %506 = vdwg.mxu0
    %507 = vmatpush.msra.mxu0 %v189
    %508 = vmatpush.msra.mxu0 %v188
    %509 = vmatpush.msra.mxu0 %v187
    %510 = vmatpush.msra.mxu0 %v186
    %511 = vmatpush.msra.mxu0 %v185
    %512 = vmatpush.msra.mxu0 %v184
    %513 = vmatpush.msra.mxu0 %v183
    %514 = vmatpush.msra.mxu0 %v182
    %515 = vmatpush.msra.mxu0 %v181
    %516 = vmatpush.msra.mxu0 %v180
    %517 = vmatpush.msra.mxu0 %v179
    %518 = vmatpush.msra.mxu0 %v178
    %519 = vmatpush.msra.mxu0 %v177
    %520 = vmatpush.msra.mxu0 %v176
    %521 = vmatpush.msra.mxu0 %v175
    %522 = vmatpush.msra.mxu0 %v174
    %523 = vmatmul.f32.gmra.mxu0 %v323
    %v524 = vpop.f32.mrf.mxu0
    %v525 = vadd.f32 %v505, %v524
    %526 = vdwg.mxu0
    %527 = vmatpush.msra.mxu0 %v205
    %528 = vmatpush.msra.mxu0 %v204
    %529 = vmatpush.msra.mxu0 %v203
    %530 = vmatpush.msra.mxu0 %v202
    %531 = vmatpush.msra.mxu0 %v201
    %532 = vmatpush.msra.mxu0 %v200
    %533 = vmatpush.msra.mxu0 %v199
    %534 = vmatpush.msra.mxu0 %v198
    %535 = vmatpush.msra.mxu0 %v197
    %536 = vmatpush.msra.mxu0 %v196
    %537 = vmatpush.msra.mxu0 %v195
    %538 = vmatpush.msra.mxu0 %v194
    %539 = vmatpush.msra.mxu0 %v193
    %540 = vmatpush.msra.mxu0 %v192
    %541 = vmatpush.msra.mxu0 %v191
    %542 = vmatpush.msra.mxu0 %v190
    %543 = vmatmul.f32.gmra.mxu0 %v324
    %v544 = vpop.f32.mrf.mxu0
    %v545 = vadd.f32 %v525, %v544
    %546 = vdwg.mxu0
    %547 = vmatpush.msra.mxu0 %v221
    %548 = vmatpush.msra.mxu0 %v220
    %549 = vmatpush.msra.mxu0 %v219
    %550 = vmatpush.msra.mxu0 %v218
    %551 = vmatpush.msra.mxu0 %v217
    %552 = vmatpush.msra.mxu0 %v216
    %553 = vmatpush.msra.mxu0 %v215
    %554 = vmatpush.msra.mxu0 %v214
    %555 = vmatpush.msra.mxu0 %v213
    %556 = vmatpush.msra.mxu0 %v212
    %557 = vmatpush.msra.mxu0 %v211
    %558 = vmatpush.msra.mxu0 %v210
    %559 = vmatpush.msra.mxu0 %v209
    %560 = vmatpush.msra.mxu0 %v208
    %561 = vmatpush.msra.mxu0 %v207
    %562 = vmatpush.msra.mxu0 %v206
    %563 = vmatmul.f32.gmra.mxu0 %v325
    %v564 = vpop.f32.mrf.mxu0
    %v565 = vadd.f32 %v545, %v564
    %566 = vdwg.mxu0
    %567 = vmatpush.msra.mxu0 %v237
    %568 = vmatpush.msra.mxu0 %v236
    %569 = vmatpush.msra.mxu0 %v235
    %570 = vmatpush.msra.mxu0 %v234
    %571 = vmatpush.msra.mxu0 %v233
    %572 = vmatpush.msra.mxu0 %v232
    %573 = vmatpush.msra.mxu0 %v231
    %574 = vmatpush.msra.mxu0 %v230
    %575 = vmatpush.msra.mxu0 %v229
    %576 = vmatpush.msra.mxu0 %v228
    %577 = vmatpush.msra.mxu0 %v227
    %578 = vmatpush.msra.mxu0 %v226
    %579 = vmatpush.msra.mxu0 %v225
    %580 = vmatpush.msra.mxu0 %v224
    %581 = vmatpush.msra.mxu0 %v223
    %582 = vmatpush.msra.mxu0 %v222
    %583 = vmatmul.f32.gmra.mxu0 %v326
    %v584 = vpop.f32.mrf.mxu0
    %v585 = vadd.f32 %v565, %v584
    %586 = vdwg.mxu0
    %587 = vmatpush.msra.mxu0 %v253
    %588 = vmatpush.msra.mxu0 %v252
    %589 = vmatpush.msra.mxu0 %v251
    %590 = vmatpush.msra.mxu0 %v250
    %591 = vmatpush.msra.mxu0 %v249
    %592 = vmatpush.msra.mxu0 %v248
    %593 = vmatpush.msra.mxu0 %v247
    %594 = vmatpush.msra.mxu0 %v246
    %595 = vmatpush.msra.mxu0 %v245
    %596 = vmatpush.msra.mxu0 %v244
    %597 = vmatpush.msra.mxu0 %v243
    %598 = vmatpush.msra.mxu0 %v242
    %599 = vmatpush.msra.mxu0 %v241
    %600 = vmatpush.msra.mxu0 %v240
    %601 = vmatpush.msra.mxu0 %v239
    %602 = vmatpush.msra.mxu0 %v238
    %603 = vmatmul.f32.gmra.mxu0 %v327
    %v604 = vpop.f32.mrf.mxu0
    %v605 = vadd.f32 %v585, %v604
    %606 = vdwg.mxu0
    %607 = vmatpush.msra.mxu0 %v269
    %608 = vmatpush.msra.mxu0 %v268
    %609 = vmatpush.msra.mxu0 %v267
    %610 = vmatpush.msra.mxu0 %v266
    %611 = vmatpush.msra.mxu0 %v265
    %612 = vmatpush.msra.mxu0 %v264
    %613 = vmatpush.msra.mxu0 %v263
    %614 = vmatpush.msra.mxu0 %v262
    %615 = vmatpush.msra.mxu0 %v261
    %616 = vmatpush.msra.mxu0 %v260
    %617 = vmatpush.msra.mxu0 %v259
    %618 = vmatpush.msra.mxu0 %v258
    %619 = vmatpush.msra.mxu0 %v257
    %620 = vmatpush.msra.mxu0 %v256
    %621 = vmatpush.msra.mxu0 %v255
    %622 = vmatpush.msra.mxu0 %v254
    %623 = vmatmul.f32.gmra.mxu0 %v328
    %v624 = vpop.f32.mrf.mxu0
    %v625 = vadd.f32 %v605, %v624
    %626 = vdwg.mxu0
    %627 = vmatpush.msra.mxu0 %v285
    %628 = vmatpush.msra.mxu0 %v284
    %629 = vmatpush.msra.mxu0 %v283
    %630 = vmatpush.msra.mxu0 %v282
    %631 = vmatpush.msra.mxu0 %v281
    %632 = vmatpush.msra.mxu0 %v280
    %633 = vmatpush.msra.mxu0 %v279
    %634 = vmatpush.msra.mxu0 %v278
    %635 = vmatpush.msra.mxu0 %v277
    %636 = vmatpush.msra.mxu0 %v276
    %637 = vmatpush.msra.mxu0 %v275
    %638 = vmatpush.msra.mxu0 %v274
    %639 = vmatpush.msra.mxu0 %v273
    %640 = vmatpush.msra.mxu0 %v272
    %641 = vmatpush.msra.mxu0 %v271
    %642 = vmatpush.msra.mxu0 %v270
    %643 = vmatmul.f32.gmra.mxu0 %v329
    %v644 = vpop.f32.mrf.mxu0
    %v645 = vadd.f32 %v625, %v644
    %646 = vdwg.mxu0
    %647 = vmatpush.msra.mxu0 %v301
    %648 = vmatpush.msra.mxu0 %v300
    %649 = vmatpush.msra.mxu0 %v299
    %650 = vmatpush.msra.mxu0 %v298
    %651 = vmatpush.msra.mxu0 %v297
    %652 = vmatpush.msra.mxu0 %v296
    %653 = vmatpush.msra.mxu0 %v295
    %654 = vmatpush.msra.mxu0 %v294
    %655 = vmatpush.msra.mxu0 %v293
    %656 = vmatpush.msra.mxu0 %v292
    %657 = vmatpush.msra.mxu0 %v291
    %658 = vmatpush.msra.mxu0 %v290
    %659 = vmatpush.msra.mxu0 %v289
    %660 = vmatpush.msra.mxu0 %v288
    %661 = vmatpush.msra.mxu0 %v287
    %662 = vmatpush.msra.mxu0 %v286
    %663 = vmatmul.f32.gmra.mxu0 %v330
    %v664 = vpop.f32.mrf.mxu0
    %v665 = vadd.f32 %v645, %v664
    %666 = vdwg.mxu0
    %v667 = vmax.f32 %v665, 0.0
    %v668 = vld [vmem:[%s6] sm:$0xff]
    %v669 = vld [vmem:[%s6 + $0x8] sm:$0xff]
    %v670 = vld [vmem:[%s6 + $0x10] sm:$0xff]
    %v671 = vld [vmem:[%s6 + $0x18] sm:$0xff]
    %v672 = vld [vmem:[%s8] sm:$0xff]
    %v673 = vld [vmem:[%s8 + $0x8] sm:$0xff]
    %v674 = vld [vmem:[%s8 + $0x10] sm:$0xff]
    %v675 = vld [vmem:[%s8 + $0x18] sm:$0xff]
    %v676 = vld [vmem:[%s8 + $0x20] sm:$0xff]
    %v677 = vld [vmem:[%s8 + $0x28] sm:$0xff]
    %v678 = vld [vmem:[%s8 + $0x30] sm:$0xff]
    %v679 = vld [vmem:[%s8 + $0x38] sm:$0xff]
    %v680 = vld [vmem:[%s9] sm:$0x1]
    %v681 = vld [vmem:[%s5] sm:$0xff]
    %v682 = vld [vmem:[%s5 + $0x8] sm:$0xff]
    %v683 = vld [vmem:[%s5 + $0x10] sm:$0xff]
    %v684 = vld [vmem:[%s5 + $0x18] sm:$0xff]
    %v685 = vld [vmem:[%s7] sm:$0x1]
    %v687 = vperm.slane %v685, 0
    %vm689 = vcmask 261120
    %v691 = vsel %vm689, %v667, 0
    %693 = vmatpush.msra.mxu0 0.0
    %694 = vmatpush.msra.mxu0 0.0
    %695 = vmatpush.msra.mxu0 0.0
    %696 = vmatpush.msra.mxu0 0.0
    %697 = vmatpush.msra.mxu0 0.0
    %698 = vmatpush.msra.mxu0 0.0
    %699 = vmatpush.msra.mxu0 0.0
    %700 = vmatpush.msra.mxu0 0.0
    %701 = vmatpush.msra.mxu0 0.0
    %702 = vmatpush.msra.mxu0 0.0
    %703 = vmatpush.msra.mxu0 0.0
    %704 = vmatpush.msra.mxu0 0.0
    %705 = vmatpush.msra.mxu0 %v684
    %706 = vmatpush.msra.mxu0 %v683
    %707 = vmatpush.msra.mxu0 %v682
    %708 = vmatpush.msra.mxu0 %v681
    %709 = vmatmul.f32.gmra.mxu0 %v691
    %v710 = vpop.f32.mrf.mxu0
    %v711 = vadd.f32 %v687, %v710
    %712 = vdwg.mxu0
    %v713 = vld [vmem:[%s3] sm:$0xff]
    %v714 = vld [vmem:[%s3 + $0x8] sm:$0xff]
    %v715 = vld [vmem:[%s4] sm:$0xff]
    %v716 = vld [vmem:[%s4 + $0x8] sm:$0xff]
    %v717 = vld [vmem:[%s4 + $0x10] sm:$0xff]
    %v718 = vld [vmem:[%s4 + $0x18] sm:$0xff]
    %v720 = vrot.slane %v711, 6
    %v722 = vrot.slane %v711, 4
    %v724 = vrot.slane %v711, 2
    %vm726 = vcmask 1041408
    %v727 = vsel %vm726, %v711, %v720
    %vm728 = vcmask 1043456
    %v729 = vsel %vm728, %v727, %v722
    %vm730 = vcmask 1045504
    %v731 = vsel %vm730, %v729, %v724
    %v733 = vsel %vm689, %v713, 0
    %v736 = vsel %vm689, %v714, 0
    %738 = vmatpush.msra.mxu0 0.0
    %739 = vmatpush.msra.mxu0 0.0
    %740 = vmatpush.msra.mxu0 0.0
    %741 = vmatpush.msra.mxu0 0.0
    %742 = vmatpush.msra.mxu0 0.0
    %743 = vmatpush.msra.mxu0 0.0
    %744 = vmatpush.msra.mxu0 0.0
    %745 = vmatpush.msra.mxu0 0.0
    %746 = vmatpush.msra.mxu0 0.0
    %747 = vmatpush.msra.mxu0 0.0
    %748 = vmatpush.msra.mxu0 0.0
    %749 = vmatpush.msra.mxu0 0.0
    %750 = vmatpush.msra.mxu0 %v718
    %751 = vmatpush.msra.mxu0 %v717
    %752 = vmatpush.msra.mxu0 %v716
    %753 = vmatpush.msra.mxu0 %v715
    %754 = vmatmul.f32.gmra.mxu0 %v733
    %v755 = vpop.f32.mrf.mxu0
    %v756 = vadd.f32 %v731, %v755
    %757 = vmatmul.f32.gmra.mxu0 %v736
    %v758 = vpop.f32.mrf.mxu0
    %v759 = vadd.f32 %v731, %v758
    %760 = vdwg.mxu0
    %v762 = vsel %vm689, 0.0, 0
    %764 = vmatpush.msra.mxu0 0.0
    %765 = vmatpush.msra.mxu0 0.0
    %766 = vmatpush.msra.mxu0 0.0
    %767 = vmatpush.msra.mxu0 0.0
    %768 = vmatpush.msra.mxu0 0.0
    %769 = vmatpush.msra.mxu0 0.0
    %770 = vmatpush.msra.mxu0 0.0
    %771 = vmatpush.msra.mxu0 0.0
    %772 = vmatpush.msra.mxu0 0.0
    %773 = vmatpush.msra.mxu0 0.0
    %774 = vmatpush.msra.mxu0 0.0
    %775 = vmatpush.msra.mxu0 0.0
    %776 = vmatpush.msra.mxu0 %v671
    %777 = vmatpush.msra.mxu0 %v670
    %778 = vmatpush.msra.mxu0 %v669
    %779 = vmatpush.msra.mxu0 %v668
    %780 = vmatmul.f32.gmra.mxu0 %v762
    %v781 = vpop.f32.mrf.mxu0
    %v782 = vadd.f32 0.0, %v781
    %783 = vdwg.mxu0
    %v784 = vadd.f32 %v756, %v782
    %v785 = vxor.u32 %v784, 2147483648
    %v786 = vmul.f32 %v785, 1.442695
    %v787 = vpow.pop %v786
    %v788 = vadd.f32 %v787, 1.0
    %v789 = vrcp.pop %v788
    %v790 = vmul.f32 %v788, %v789
    %v791 = vsub.f32 1.0, %v790
    %v792 = vmul.f32 %v789, %v791
    %v793 = vadd.f32 %v789, %v792
    %vm794 = vweird.f32 %v788
    %vm795 = vweird.f32 %v789
    %vm796 = vmor %vm794, %vm795
    %v797 = vsel %vm796, %v789, %v793
    %v798 = vand.u32 2147483647, %v788
    %vm799 = vcmp.eq.f32.partialorder %v798, 8.507059e+37
    %v800 = vand.u32 %v788, 2147483648
    %v801 = vor.u32 1.1754944e-38, %v800
    %v802 = vsel %vm799, %v801, %v797
    %v803 = vmul.f32 1.0, %v802
    %v804 = vtanh.pop %v784
    %v805 = vmul.f32 %v803, 0.0
    %807 = vrot.lane.b32.xlu0 %v804, 64
    %v808 = vpop.permute.xlu0 %807
    %v810 = vmul.f32 %v803, %v808
    %812 = vrot.lane.b32.xlu0 %v810, 32
    %v813 = vpop.permute.xlu0 %812
    %v815 = vadd.f32 %v805, %v813
    %v816 = vtanh.pop %v815
    %818 = vrot.lane.b32.xlu0 %v816, 64
    %v819 = vpop.permute.xlu0 %818
    %v821 = vmul.f32 %v803, %v819
    %823 = vrot.lane.b32.xlu0 %v821, 32
    %v824 = vpop.permute.xlu0 %823
    %v826 = vsel %vm689, %v824, 0.0
    %vm827 = vcmask 523264
    %v829 = vsel %vm827, %v826, 0
    %831 = vmatpush.msra.mxu0 0.0
    %832 = vmatpush.msra.mxu0 0.0
    %833 = vmatpush.msra.mxu0 0.0
    %834 = vmatpush.msra.mxu0 0.0
    %835 = vmatpush.msra.mxu0 0.0
    %836 = vmatpush.msra.mxu0 0.0
    %837 = vmatpush.msra.mxu0 0.0
    %838 = vmatpush.msra.mxu0 0.0
    %839 = vmatpush.msra.mxu0 %v679
    %840 = vmatpush.msra.mxu0 %v678
    %841 = vmatpush.msra.mxu0 %v677
    %842 = vmatpush.msra.mxu0 %v676
    %843 = vmatpush.msra.mxu0 %v675
    %844 = vmatpush.msra.mxu0 %v674
    %845 = vmatpush.msra.mxu0 %v673
    %846 = vmatpush.msra.mxu0 %v672
    %847 = vmatmul.f32.gmra.mxu0 %v829
    %v848 = vpop.f32.mrf.mxu0
    %v849 = vadd.f32 %v680, %v848
    %850 = vdwg.mxu0
    %v851 = vxor.u32 %v849, 2147483648
    %v852 = vmul.f32 %v851, 1.442695
    %v853 = vpow.pop %v852
    %v854 = vadd.f32 %v853, 1.0
    %v855 = vrcp.pop %v854
    %v856 = vmul.f32 %v854, %v855
    %v857 = vsub.f32 1.0, %v856
    %v858 = vmul.f32 %v855, %v857
    %v859 = vadd.f32 %v855, %v858
    %vm860 = vweird.f32 %v854
    %vm861 = vweird.f32 %v855
    %vm862 = vmor %vm860, %vm861
    %v863 = vsel %vm862, %v855, %v859
    %v864 = vand.u32 2147483647, %v854
    %vm865 = vcmp.eq.f32.partialorder %v864, 8.507059e+37
    %v866 = vand.u32 %v854, 2147483648
    %v867 = vor.u32 1.1754944e-38, %v866
    %v868 = vsel %vm865, %v867, %v863
    %v869 = vmul.f32 1.0, %v868
    %v870 = vtanh.pop %v849
    %v871 = vmul.f32 %v869, 0.0
    %873 = vrot.lane.b32.xlu0 %v870, 64
    %v874 = vpop.permute.xlu0 %873
    %v876 = vmul.f32 %v869, %v874
    %878 = vrot.lane.b32.xlu0 %v876, 32
    %v879 = vpop.permute.xlu0 %878
    %v881 = vadd.f32 %v871, %v879
    %v882 = vtanh.pop %v881
    %884 = vrot.lane.b32.xlu0 %v882, 64
    %v885 = vpop.permute.xlu0 %884
    %v887 = vmul.f32 %v869, %v885
    %889 = vrot.lane.b32.xlu0 %v887, 32
    %v890 = vpop.permute.xlu0 %889
    %vm892 = vcmask 253952
    %893 = vst.msk [vmem:[#allocation2] sm:$0x1] %vm892, %v890
    %v894 = vsel %vm689, %v824, 0
    %896 = vmatpush.msra.mxu0 0.0
    %897 = vmatpush.msra.mxu0 0.0
    %898 = vmatpush.msra.mxu0 0.0
    %899 = vmatpush.msra.mxu0 0.0
    %900 = vmatpush.msra.mxu0 0.0
    %901 = vmatpush.msra.mxu0 0.0
    %902 = vmatpush.msra.mxu0 0.0
    %903 = vmatpush.msra.mxu0 0.0
    %904 = vmatpush.msra.mxu0 0.0
    %905 = vmatpush.msra.mxu0 0.0
    %906 = vmatpush.msra.mxu0 0.0
    %907 = vmatpush.msra.mxu0 0.0
    %908 = vmatpush.msra.mxu0 %v671
    %909 = vmatpush.msra.mxu0 %v670
    %910 = vmatpush.msra.mxu0 %v669
    %911 = vmatpush.msra.mxu0 %v668
    %912 = vmatmul.f32.gmra.mxu0 %v894
    %v913 = vpop.f32.mrf.mxu0
    %v914 = vadd.f32 0.0, %v913
    %915 = vdwg.mxu0
    %v917 = vrot.slane %v914, 7
    %v919 = vadd.f32 %v756, %v917
    %v920 = vxor.u32 %v919, 2147483648
    %v921 = vmul.f32 %v920, 1.442695
    %v922 = vpow.pop %v921
    %v923 = vadd.f32 %v922, 1.0
    %v924 = vrcp.pop %v923
    %v925 = vmul.f32 %v923, %v924
    %v926 = vsub.f32 1.0, %v925
    %v927 = vmul.f32 %v924, %v926
    %v928 = vadd.f32 %v924, %v927
    %vm929 = vweird.f32 %v923
    %vm930 = vweird.f32 %v924
    %vm931 = vmor %vm929, %vm930
    %v932 = vsel %vm931, %v924, %v928
    %v933 = vand.u32 2147483647, %v923
    %vm934 = vcmp.eq.f32.partialorder %v933, 8.507059e+37
    %v935 = vand.u32 %v923, 2147483648
    %v936 = vor.u32 1.1754944e-38, %v935
    %v937 = vsel %vm934, %v936, %v932
    %v938 = vmul.f32 1.0, %v937
    %v939 = vtanh.pop %v919
    %v941 = vrot.slane %v815, 7
    %v943 = vmul.f32 %v938, %v941
    %945 = vrot.lane.b32.xlu0 %v939, 64
    %v946 = vpop.permute.xlu0 %945
    %v948 = vmul.f32 %v938, %v946
    %950 = vrot.lane.b32.xlu0 %v948, 32
    %v951 = vpop.permute.xlu0 %950
    %v953 = vadd.f32 %v943, %v951
    %v954 = vtanh.pop %v953
    %956 = vrot.lane.b32.xlu0 %v954, 64
    %v957 = vpop.permute.xlu0 %956
    %v959 = vmul.f32 %v938, %v957
    %961 = vrot.lane.b32.xlu0 %v959, 32
    %v962 = vpop.permute.xlu0 %961
    %v964 = vrot.slane %v887, 7
    %965 = vrot.lane.b32.xlu0 %v964, 64
    %v966 = vpop.permute.xlu0 %965
    %v968 = vsel %vm689, %v962, %v966
    %v970 = vrot.slane %v968, 1
    %v971 = vsel %vm827, %v970, 0
    %973 = vmatpush.msra.mxu0 0.0
    %974 = vmatpush.msra.mxu0 0.0
    %975 = vmatpush.msra.mxu0 0.0
    %976 = vmatpush.msra.mxu0 0.0
    %977 = vmatpush.msra.mxu0 0.0
    %978 = vmatpush.msra.mxu0 0.0
    %979 = vmatpush.msra.mxu0 0.0
    %980 = vmatpush.msra.mxu0 0.0
    %981 = vmatpush.msra.mxu0 %v679
    %982 = vmatpush.msra.mxu0 %v678
    %983 = vmatpush.msra.mxu0 %v677
    %984 = vmatpush.msra.mxu0 %v676
    %985 = vmatpush.msra.mxu0 %v675
    %986 = vmatpush.msra.mxu0 %v674
    %987 = vmatpush.msra.mxu0 %v673
    %988 = vmatpush.msra.mxu0 %v672
    %989 = vmatmul.f32.gmra.mxu0 %v971
    %v990 = vpop.f32.mrf.mxu0
    %v991 = vadd.f32 %v680, %v990
    %992 = vdwg.mxu0
    %v993 = vxor.u32 %v991, 2147483648
    %v994 = vmul.f32 %v993, 1.442695
    %v995 = vpow.pop %v994
    %v996 = vadd.f32 %v995, 1.0
    %v997 = vrcp.pop %v996
    %v998 = vmul.f32 %v996, %v997
    %v999 = vsub.f32 1.0, %v998
    %v1000 = vmul.f32 %v997, %v999
    %v1001 = vadd.f32 %v997, %v1000
    %vm1002 = vweird.f32 %v996
    %vm1003 = vweird.f32 %v997
    %vm1004 = vmor %vm1002, %vm1003
    %v1005 = vsel %vm1004, %v997, %v1001
    %v1006 = vand.u32 2147483647, %v996
    %vm1007 = vcmp.eq.f32.partialorder %v1006, 8.507059e+37
    %v1008 = vand.u32 %v996, 2147483648
    %v1009 = vor.u32 1.1754944e-38, %v1008
    %v1010 = vsel %vm1007, %v1009, %v1005
    %v1011 = vmul.f32 1.0, %v1010
    %v1012 = vtanh.pop %v991
    %v1013 = vmul.f32 %v1011, %v881
    %1015 = vrot.lane.b32.xlu0 %v1012, 64
    %v1016 = vpop.permute.xlu0 %1015
    %v1018 = vmul.f32 %v1011, %v1016
    %1020 = vrot.lane.b32.xlu0 %v1018, 32
    %v1021 = vpop.permute.xlu0 %1020
    %v1023 = vadd.f32 %v1013, %v1021
    %v1024 = vtanh.pop %v1023
    %1026 = vrot.lane.b32.xlu0 %v1024, 64
    %v1027 = vpop.permute.xlu0 %1026
    %v1029 = vmul.f32 %v1011, %v1027
    %1031 = vrot.lane.b32.xlu0 %v1029, 32
    %v1032 = vpop.permute.xlu0 %1031
    %1034 = vst.msk [vmem:[#allocation2 + $0x8] sm:$0x1] %vm892, %v1032
    %v1035 = vrot.slane %v959, 1
    %1036 = vrot.lane.b32.xlu0 %v1035, 32
    %v1037 = vpop.permute.xlu0 %1036
    %v1038 = vsel %vm689, %v1037, 0
    %1040 = vmatpush.msra.mxu0 0.0
    %1041 = vmatpush.msra.mxu0 0.0
    %1042 = vmatpush.msra.mxu0 0.0
    %1043 = vmatpush.msra.mxu0 0.0
    %1044 = vmatpush.msra.mxu0 0.0
    %1045 = vmatpush.msra.mxu0 0.0
    %1046 = vmatpush.msra.mxu0 0.0
    %1047 = vmatpush.msra.mxu0 0.0
    %1048 = vmatpush.msra.mxu0 0.0
    %1049 = vmatpush.msra.mxu0 0.0
    %1050 = vmatpush.msra.mxu0 0.0
    %1051 = vmatpush.msra.mxu0 0.0
    %1052 = vmatpush.msra.mxu0 %v671
    %1053 = vmatpush.msra.mxu0 %v670
    %1054 = vmatpush.msra.mxu0 %v669
    %1055 = vmatpush.msra.mxu0 %v668
    %1056 = vmatmul.f32.gmra.mxu0 %v1038
    %v1057 = vpop.f32.mrf.mxu0
    %v1058 = vadd.f32 0.0, %v1057
    %1059 = vdwg.mxu0
    %v1061 = vrot.slane %v1058, 6
    %v1063 = vadd.f32 %v756, %v1061
    %v1064 = vxor.u32 %v1063, 2147483648
    %v1065 = vmul.f32 %v1064, 1.442695
    %v1066 = vpow.pop %v1065
    %v1067 = vadd.f32 %v1066, 1.0
    %v1068 = vrcp.pop %v1067
    %v1069 = vmul.f32 %v1067, %v1068
    %v1070 = vsub.f32 1.0, %v1069
    %v1071 = vmul.f32 %v1068, %v1070
    %v1072 = vadd.f32 %v1068, %v1071
    %vm1073 = vweird.f32 %v1067
    %vm1074 = vweird.f32 %v1068
    %vm1075 = vmor %vm1073, %vm1074
    %v1076 = vsel %vm1075, %v1068, %v1072
    %v1077 = vand.u32 2147483647, %v1067
    %vm1078 = vcmp.eq.f32.partialorder %v1077, 8.507059e+37
    %v1079 = vand.u32 %v1067, 2147483648
    %v1080 = vor.u32 1.1754944e-38, %v1079
    %v1081 = vsel %vm1078, %v1080, %v1076
    %v1082 = vmul.f32 1.0, %v1081
    %v1083 = vtanh.pop %v1063
    %v1085 = vrot.slane %v953, 7
    %v1087 = vmul.f32 %v1082, %v1085
    %1089 = vrot.lane.b32.xlu0 %v1083, 64
    %v1090 = vpop.permute.xlu0 %1089
    %v1092 = vmul.f32 %v1082, %v1090
    %1094 = vrot.lane.b32.xlu0 %v1092, 32
    %v1095 = vpop.permute.xlu0 %1094
    %v1097 = vadd.f32 %v1087, %v1095
    %v1098 = vtanh.pop %v1097
    %1100 = vrot.lane.b32.xlu0 %v1098, 64
    %v1101 = vpop.permute.xlu0 %1100
    %v1103 = vmul.f32 %v1082, %v1101
    %1105 = vrot.lane.b32.xlu0 %v1103, 32
    %v1106 = vpop.permute.xlu0 %1105
    %v1108 = vrot.slane %v1029, 6
    %1109 = vrot.lane.b32.xlu0 %v1108, 64
    %v1110 = vpop.permute.xlu0 %1109
    %v1112 = vsel %vm689, %v1106, %v1110
    %v1114 = vrot.slane %v1112, 2
    %v1115 = vsel %vm827, %v1114, 0
    %1117 = vmatpush.msra.mxu0 0.0
    %1118 = vmatpush.msra.mxu0 0.0
    %1119 = vmatpush.msra.mxu0 0.0
    %1120 = vmatpush.msra.mxu0 0.0
    %1121 = vmatpush.msra.mxu0 0.0
    %1122 = vmatpush.msra.mxu0 0.0
    %1123 = vmatpush.msra.mxu0 0.0
    %1124 = vmatpush.msra.mxu0 0.0
    %1125 = vmatpush.msra.mxu0 %v679
    %1126 = vmatpush.msra.mxu0 %v678
    %1127 = vmatpush.msra.mxu0 %v677
    %1128 = vmatpush.msra.mxu0 %v676
    %1129 = vmatpush.msra.mxu0 %v675
    %1130 = vmatpush.msra.mxu0 %v674
    %1131 = vmatpush.msra.mxu0 %v673
    %1132 = vmatpush.msra.mxu0 %v672
    %1133 = vmatmul.f32.gmra.mxu0 %v1115
    %v1134 = vpop.f32.mrf.mxu0
    %v1135 = vadd.f32 %v680, %v1134
    %1136 = vdwg.mxu0
    %v1137 = vxor.u32 %v1135, 2147483648
    %v1138 = vmul.f32 %v1137, 1.442695
    %v1139 = vpow.pop %v1138
    %v1140 = vadd.f32 %v1139, 1.0
    %v1141 = vrcp.pop %v1140
    %v1142 = vmul.f32 %v1140, %v1141
    %v1143 = vsub.f32 1.0, %v1142
    %v1144 = vmul.f32 %v1141, %v1143
    %v1145 = vadd.f32 %v1141, %v1144
    %vm1146 = vweird.f32 %v1140
    %vm1147 = vweird.f32 %v1141
    %vm1148 = vmor %vm1146, %vm1147
    %v1149 = vsel %vm1148, %v1141, %v1145
    %v1150 = vand.u32 2147483647, %v1140
    %vm1151 = vcmp.eq.f32.partialorder %v1150, 8.507059e+37
    %v1152 = vand.u32 %v1140, 2147483648
    %v1153 = vor.u32 1.1754944e-38, %v1152
    %v1154 = vsel %vm1151, %v1153, %v1149
    %v1155 = vmul.f32 1.0, %v1154
    %v1156 = vtanh.pop %v1135
    %v1157 = vmul.f32 %v1155, %v1023
    %1159 = vrot.lane.b32.xlu0 %v1156, 64
    %v1160 = vpop.permute.xlu0 %1159
    %v1162 = vmul.f32 %v1155, %v1160
    %1164 = vrot.lane.b32.xlu0 %v1162, 32
    %v1165 = vpop.permute.xlu0 %1164
    %v1167 = vadd.f32 %v1157, %v1165
    %v1168 = vtanh.pop %v1167
    %1170 = vrot.lane.b32.xlu0 %v1168, 64
    %v1171 = vpop.permute.xlu0 %1170
    %v1173 = vmul.f32 %v1155, %v1171
    %1175 = vrot.lane.b32.xlu0 %v1173, 32
    %v1176 = vpop.permute.xlu0 %1175
    %1178 = vst.msk [vmem:[#allocation2 + $0x1] sm:$0x1] %vm892, %v1176
    %v1179 = vrot.slane %v1103, 2
    %1180 = vrot.lane.b32.xlu0 %v1179, 32
    %v1181 = vpop.permute.xlu0 %1180
    %v1182 = vsel %vm689, %v1181, 0
    %1184 = vmatpush.msra.mxu0 0.0
    %1185 = vmatpush.msra.mxu0 0.0
    %1186 = vmatpush.msra.mxu0 0.0
    %1187 = vmatpush.msra.mxu0 0.0
    %1188 = vmatpush.msra.mxu0 0.0
    %1189 = vmatpush.msra.mxu0 0.0
    %1190 = vmatpush.msra.mxu0 0.0
    %1191 = vmatpush.msra.mxu0 0.0
    %1192 = vmatpush.msra.mxu0 0.0
    %1193 = vmatpush.msra.mxu0 0.0
    %1194 = vmatpush.msra.mxu0 0.0
    %1195 = vmatpush.msra.mxu0 0.0
    %1196 = vmatpush.msra.mxu0 %v671
    %1197 = vmatpush.msra.mxu0 %v670
    %1198 = vmatpush.msra.mxu0 %v669
    %1199 = vmatpush.msra.mxu0 %v668
    %1200 = vmatmul.f32.gmra.mxu0 %v1182
    %v1201 = vpop.f32.mrf.mxu0
    %v1202 = vadd.f32 0.0, %v1201
    %1203 = vdwg.mxu0
    %v1205 = vrot.slane %v1202, 5
    %v1207 = vadd.f32 %v756, %v1205
    %v1208 = vxor.u32 %v1207, 2147483648
    %v1209 = vmul.f32 %v1208, 1.442695
    %v1210 = vpow.pop %v1209
    %v1211 = vadd.f32 %v1210, 1.0
    %v1212 = vrcp.pop %v1211
    %v1213 = vmul.f32 %v1211, %v1212
    %v1214 = vsub.f32 1.0, %v1213
    %v1215 = vmul.f32 %v1212, %v1214
    %v1216 = vadd.f32 %v1212, %v1215
    %vm1217 = vweird.f32 %v1211
    %vm1218 = vweird.f32 %v1212
    %vm1219 = vmor %vm1217, %vm1218
    %v1220 = vsel %vm1219, %v1212, %v1216
    %v1221 = vand.u32 2147483647, %v1211
    %vm1222 = vcmp.eq.f32.partialorder %v1221, 8.507059e+37
    %v1223 = vand.u32 %v1211, 2147483648
    %v1224 = vor.u32 1.1754944e-38, %v1223
    %v1225 = vsel %vm1222, %v1224, %v1220
    %v1226 = vmul.f32 1.0, %v1225
    %v1227 = vtanh.pop %v1207
    %v1229 = vrot.slane %v1097, 7
    %v1231 = vmul.f32 %v1226, %v1229
    %1233 = vrot.lane.b32.xlu0 %v1227, 64
    %v1234 = vpop.permute.xlu0 %1233
    %v1236 = vmul.f32 %v1226, %v1234
    %1238 = vrot.lane.b32.xlu0 %v1236, 32
    %v1239 = vpop.permute.xlu0 %1238
    %v1241 = vadd.f32 %v1231, %v1239
    %v1242 = vtanh.pop %v1241
    %1244 = vrot.lane.b32.xlu0 %v1242, 64
    %v1245 = vpop.permute.xlu0 %1244
    %v1247 = vmul.f32 %v1226, %v1245
    %1249 = vrot.lane.b32.xlu0 %v1247, 32
    %v1250 = vpop.permute.xlu0 %1249
    %v1252 = vrot.slane %v1173, 5
    %1253 = vrot.lane.b32.xlu0 %v1252, 64
    %v1254 = vpop.permute.xlu0 %1253
    %v1256 = vsel %vm689, %v1250, %v1254
    %v1258 = vrot.slane %v1256, 3
    %v1259 = vsel %vm827, %v1258, 0
    %1261 = vmatpush.msra.mxu0 0.0
    %1262 = vmatpush.msra.mxu0 0.0
    %1263 = vmatpush.msra.mxu0 0.0
    %1264 = vmatpush.msra.mxu0 0.0
    %1265 = vmatpush.msra.mxu0 0.0
    %1266 = vmatpush.msra.mxu0 0.0
    %1267 = vmatpush.msra.mxu0 0.0
    %1268 = vmatpush.msra.mxu0 0.0
    %1269 = vmatpush.msra.mxu0 %v679
    %1270 = vmatpush.msra.mxu0 %v678
    %1271 = vmatpush.msra.mxu0 %v677
    %1272 = vmatpush.msra.mxu0 %v676
    %1273 = vmatpush.msra.mxu0 %v675
    %1274 = vmatpush.msra.mxu0 %v674
    %1275 = vmatpush.msra.mxu0 %v673
    %1276 = vmatpush.msra.mxu0 %v672
    %1277 = vmatmul.f32.gmra.mxu0 %v1259
    %v1278 = vpop.f32.mrf.mxu0
    %v1279 = vadd.f32 %v680, %v1278
    %1280 = vdwg.mxu0
    %v1281 = vxor.u32 %v1279, 2147483648
    %v1282 = vmul.f32 %v1281, 1.442695
    %v1283 = vpow.pop %v1282
    %v1284 = vadd.f32 %v1283, 1.0
    %v1285 = vrcp.pop %v1284
    %v1286 = vmul.f32 %v1284, %v1285
    %v1287 = vsub.f32 1.0, %v1286
    %v1288 = vmul.f32 %v1285, %v1287
    %v1289 = vadd.f32 %v1285, %v1288
    %vm1290 = vweird.f32 %v1284
    %vm1291 = vweird.f32 %v1285
    %vm1292 = vmor %vm1290, %vm1291
    %v1293 = vsel %vm1292, %v1285, %v1289
    %v1294 = vand.u32 2147483647, %v1284
    %vm1295 = vcmp.eq.f32.partialorder %v1294, 8.507059e+37
    %v1296 = vand.u32 %v1284, 2147483648
    %v1297 = vor.u32 1.1754944e-38, %v1296
    %v1298 = vsel %vm1295, %v1297, %v1293
    %v1299 = vmul.f32 1.0, %v1298
    %v1300 = vtanh.pop %v1279
    %v1301 = vmul.f32 %v1299, %v1167
    %1303 = vrot.lane.b32.xlu0 %v1300, 64
    %v1304 = vpop.permute.xlu0 %1303
    %v1306 = vmul.f32 %v1299, %v1304
    %1308 = vrot.lane.b32.xlu0 %v1306, 32
    %v1309 = vpop.permute.xlu0 %1308
    %v1311 = vadd.f32 %v1301, %v1309
    %v1312 = vtanh.pop %v1311
    %1314 = vrot.lane.b32.xlu0 %v1312, 64
    %v1315 = vpop.permute.xlu0 %1314
    %v1317 = vmul.f32 %v1299, %v1315
    %1319 = vrot.lane.b32.xlu0 %v1317, 32
    %v1320 = vpop.permute.xlu0 %1319
    %1322 = vst.msk [vmem:[#allocation2 + $0x9] sm:$0x1] %vm892, %v1320
    %v1323 = vrot.slane %v1247, 3
    %1324 = vrot.lane.b32.xlu0 %v1323, 32
    %v1325 = vpop.permute.xlu0 %1324
    %v1326 = vsel %vm689, %v1325, 0
    %1328 = vmatpush.msra.mxu0 0.0
    %1329 = vmatpush.msra.mxu0 0.0
    %1330 = vmatpush.msra.mxu0 0.0
    %1331 = vmatpush.msra.mxu0 0.0
    %1332 = vmatpush.msra.mxu0 0.0
    %1333 = vmatpush.msra.mxu0 0.0
    %1334 = vmatpush.msra.mxu0 0.0
    %1335 = vmatpush.msra.mxu0 0.0
    %1336 = vmatpush.msra.mxu0 0.0
    %1337 = vmatpush.msra.mxu0 0.0
    %1338 = vmatpush.msra.mxu0 0.0
    %1339 = vmatpush.msra.mxu0 0.0
    %1340 = vmatpush.msra.mxu0 %v671
    %1341 = vmatpush.msra.mxu0 %v670
    %1342 = vmatpush.msra.mxu0 %v669
    %1343 = vmatpush.msra.mxu0 %v668
    %1344 = vmatmul.f32.gmra.mxu0 %v1326
    %v1345 = vpop.f32.mrf.mxu0
    %v1346 = vadd.f32 0.0, %v1345
    %1347 = vdwg.mxu0
    %v1349 = vrot.slane %v1346, 4
    %v1351 = vadd.f32 %v756, %v1349
    %v1352 = vxor.u32 %v1351, 2147483648
    %v1353 = vmul.f32 %v1352, 1.442695
    %v1354 = vpow.pop %v1353
    %v1355 = vadd.f32 %v1354, 1.0
    %v1356 = vrcp.pop %v1355
    %v1357 = vmul.f32 %v1355, %v1356
    %v1358 = vsub.f32 1.0, %v1357
    %v1359 = vmul.f32 %v1356, %v1358
    %v1360 = vadd.f32 %v1356, %v1359
    %vm1361 = vweird.f32 %v1355
    %vm1362 = vweird.f32 %v1356
    %vm1363 = vmor %vm1361, %vm1362
    %v1364 = vsel %vm1363, %v1356, %v1360
    %v1365 = vand.u32 2147483647, %v1355
    %vm1366 = vcmp.eq.f32.partialorder %v1365, 8.507059e+37
    %v1367 = vand.u32 %v1355, 2147483648
    %v1368 = vor.u32 1.1754944e-38, %v1367
    %v1369 = vsel %vm1366, %v1368, %v1364
    %v1370 = vmul.f32 1.0, %v1369
    %v1371 = vtanh.pop %v1351
    %v1373 = vrot.slane %v1241, 7
    %v1375 = vmul.f32 %v1370, %v1373
    %1377 = vrot.lane.b32.xlu0 %v1371, 64
    %v1378 = vpop.permute.xlu0 %1377
    %v1380 = vmul.f32 %v1370, %v1378
    %1382 = vrot.lane.b32.xlu0 %v1380, 32
    %v1383 = vpop.permute.xlu0 %1382
    %v1385 = vadd.f32 %v1375, %v1383
    %v1386 = vtanh.pop %v1385
    %1388 = vrot.lane.b32.xlu0 %v1386, 64
    %v1389 = vpop.permute.xlu0 %1388
    %v1391 = vmul.f32 %v1370, %v1389
    %1393 = vrot.lane.b32.xlu0 %v1391, 32
    %v1394 = vpop.permute.xlu0 %1393
    %v1396 = vrot.slane %v1317, 4
    %1397 = vrot.lane.b32.xlu0 %v1396, 64
    %v1398 = vpop.permute.xlu0 %1397
    %v1400 = vsel %vm689, %v1394, %v1398
    %v1402 = vrot.slane %v1400, 4
    %v1403 = vsel %vm827, %v1402, 0
    %1405 = vmatpush.msra.mxu0 0.0
    %1406 = vmatpush.msra.mxu0 0.0
    %1407 = vmatpush.msra.mxu0 0.0
    %1408 = vmatpush.msra.mxu0 0.0
    %1409 = vmatpush.msra.mxu0 0.0
    %1410 = vmatpush.msra.mxu0 0.0
    %1411 = vmatpush.msra.mxu0 0.0
    %1412 = vmatpush.msra.mxu0 0.0
    %1413 = vmatpush.msra.mxu0 %v679
    %1414 = vmatpush.msra.mxu0 %v678
    %1415 = vmatpush.msra.mxu0 %v677
    %1416 = vmatpush.msra.mxu0 %v676
    %1417 = vmatpush.msra.mxu0 %v675
    %1418 = vmatpush.msra.mxu0 %v674
    %1419 = vmatpush.msra.mxu0 %v673
    %1420 = vmatpush.msra.mxu0 %v672
    %1421 = vmatmul.f32.gmra.mxu0 %v1403
    %v1422 = vpop.f32.mrf.mxu0
    %v1423 = vadd.f32 %v680, %v1422
    %1424 = vdwg.mxu0
    %v1425 = vxor.u32 %v1423, 2147483648
    %v1426 = vmul.f32 %v1425, 1.442695
    %v1427 = vpow.pop %v1426
    %v1428 = vadd.f32 %v1427, 1.0
    %v1429 = vrcp.pop %v1428
    %v1430 = vmul.f32 %v1428, %v1429
    %v1431 = vsub.f32 1.0, %v1430
    %v1432 = vmul.f32 %v1429, %v1431
    %v1433 = vadd.f32 %v1429, %v1432
    %vm1434 = vweird.f32 %v1428
    %vm1435 = vweird.f32 %v1429
    %vm1436 = vmor %vm1434, %vm1435
    %v1437 = vsel %vm1436, %v1429, %v1433
    %v1438 = vand.u32 2147483647, %v1428
    %vm1439 = vcmp.eq.f32.partialorder %v1438, 8.507059e+37
    %v1440 = vand.u32 %v1428, 2147483648
    %v1441 = vor.u32 1.1754944e-38, %v1440
    %v1442 = vsel %vm1439, %v1441, %v1437
    %v1443 = vmul.f32 1.0, %v1442
    %v1444 = vtanh.pop %v1423
    %v1445 = vmul.f32 %v1443, %v1311
    %1447 = vrot.lane.b32.xlu0 %v1444, 64
    %v1448 = vpop.permute.xlu0 %1447
    %v1450 = vmul.f32 %v1443, %v1448
    %1452 = vrot.lane.b32.xlu0 %v1450, 32
    %v1453 = vpop.permute.xlu0 %1452
    %v1455 = vadd.f32 %v1445, %v1453
    %v1456 = vtanh.pop %v1455
    %1458 = vrot.lane.b32.xlu0 %v1456, 64
    %v1459 = vpop.permute.xlu0 %1458
    %v1461 = vmul.f32 %v1443, %v1459
    %1463 = vrot.lane.b32.xlu0 %v1461, 32
    %v1464 = vpop.permute.xlu0 %1463
    %1466 = vst.msk [vmem:[#allocation2 + $0x2] sm:$0x1] %vm892, %v1464
    %v1467 = vrot.slane %v1391, 4
    %1468 = vrot.lane.b32.xlu0 %v1467, 32
    %v1469 = vpop.permute.xlu0 %1468
    %v1470 = vsel %vm689, %v1469, 0
    %1472 = vmatpush.msra.mxu0 0.0
    %1473 = vmatpush.msra.mxu0 0.0
    %1474 = vmatpush.msra.mxu0 0.0
    %1475 = vmatpush.msra.mxu0 0.0
    %1476 = vmatpush.msra.mxu0 0.0
    %1477 = vmatpush.msra.mxu0 0.0
    %1478 = vmatpush.msra.mxu0 0.0
    %1479 = vmatpush.msra.mxu0 0.0
    %1480 = vmatpush.msra.mxu0 0.0
    %1481 = vmatpush.msra.mxu0 0.0
    %1482 = vmatpush.msra.mxu0 0.0
    %1483 = vmatpush.msra.mxu0 0.0
    %1484 = vmatpush.msra.mxu0 %v671
    %1485 = vmatpush.msra.mxu0 %v670
    %1486 = vmatpush.msra.mxu0 %v669
    %1487 = vmatpush.msra.mxu0 %v668
    %1488 = vmatmul.f32.gmra.mxu0 %v1470
    %v1489 = vpop.f32.mrf.mxu0
    %v1490 = vadd.f32 0.0, %v1489
    %1491 = vdwg.mxu0
    %v1493 = vrot.slane %v1490, 3
    %v1495 = vadd.f32 %v756, %v1493
    %v1496 = vxor.u32 %v1495, 2147483648
    %v1497 = vmul.f32 %v1496, 1.442695
    %v1498 = vpow.pop %v1497
    %v1499 = vadd.f32 %v1498, 1.0
    %v1500 = vrcp.pop %v1499
    %v1501 = vmul.f32 %v1499, %v1500
    %v1502 = vsub.f32 1.0, %v1501
    %v1503 = vmul.f32 %v1500, %v1502
    %v1504 = vadd.f32 %v1500, %v1503
    %vm1505 = vweird.f32 %v1499
    %vm1506 = vweird.f32 %v1500
    %vm1507 = vmor %vm1505, %vm1506
    %v1508 = vsel %vm1507, %v1500, %v1504
    %v1509 = vand.u32 2147483647, %v1499
    %vm1510 = vcmp.eq.f32.partialorder %v1509, 8.507059e+37
    %v1511 = vand.u32 %v1499, 2147483648
    %v1512 = vor.u32 1.1754944e-38, %v1511
    %v1513 = vsel %vm1510, %v1512, %v1508
    %v1514 = vmul.f32 1.0, %v1513
    %v1515 = vtanh.pop %v1495
    %v1517 = vrot.slane %v1385, 7
    %v1519 = vmul.f32 %v1514, %v1517
    %1521 = vrot.lane.b32.xlu0 %v1515, 64
    %v1522 = vpop.permute.xlu0 %1521
    %v1524 = vmul.f32 %v1514, %v1522
    %1526 = vrot.lane.b32.xlu0 %v1524, 32
    %v1527 = vpop.permute.xlu0 %1526
    %v1529 = vadd.f32 %v1519, %v1527
    %v1530 = vtanh.pop %v1529
    %1532 = vrot.lane.b32.xlu0 %v1530, 64
    %v1533 = vpop.permute.xlu0 %1532
    %v1535 = vmul.f32 %v1514, %v1533
    %1537 = vrot.lane.b32.xlu0 %v1535, 32
    %v1538 = vpop.permute.xlu0 %1537
    %v1540 = vrot.slane %v1461, 3
    %1541 = vrot.lane.b32.xlu0 %v1540, 64
    %v1542 = vpop.permute.xlu0 %1541
    %v1544 = vsel %vm689, %v1538, %v1542
    %v1546 = vrot.slane %v1544, 5
    %v1547 = vsel %vm827, %v1546, 0
    %1549 = vmatpush.msra.mxu0 0.0
    %1550 = vmatpush.msra.mxu0 0.0
    %1551 = vmatpush.msra.mxu0 0.0
    %1552 = vmatpush.msra.mxu0 0.0
    %1553 = vmatpush.msra.mxu0 0.0
    %1554 = vmatpush.msra.mxu0 0.0
    %1555 = vmatpush.msra.mxu0 0.0
    %1556 = vmatpush.msra.mxu0 0.0
    %1557 = vmatpush.msra.mxu0 %v679
    %1558 = vmatpush.msra.mxu0 %v678
    %1559 = vmatpush.msra.mxu0 %v677
    %1560 = vmatpush.msra.mxu0 %v676
    %1561 = vmatpush.msra.mxu0 %v675
    %1562 = vmatpush.msra.mxu0 %v674
    %1563 = vmatpush.msra.mxu0 %v673
    %1564 = vmatpush.msra.mxu0 %v672
    %1565 = vmatmul.f32.gmra.mxu0 %v1547
    %v1566 = vpop.f32.mrf.mxu0
    %v1567 = vadd.f32 %v680, %v1566
    %1568 = vdwg.mxu0
    %v1569 = vxor.u32 %v1567, 2147483648
    %v1570 = vmul.f32 %v1569, 1.442695
    %v1571 = vpow.pop %v1570
    %v1572 = vadd.f32 %v1571, 1.0
    %v1573 = vrcp.pop %v1572
    %v1574 = vmul.f32 %v1572, %v1573
    %v1575 = vsub.f32 1.0, %v1574
    %v1576 = vmul.f32 %v1573, %v1575
    %v1577 = vadd.f32 %v1573, %v1576
    %vm1578 = vweird.f32 %v1572
    %vm1579 = vweird.f32 %v1573
    %vm1580 = vmor %vm1578, %vm1579
    %v1581 = vsel %vm1580, %v1573, %v1577
    %v1582 = vand.u32 2147483647, %v1572
    %vm1583 = vcmp.eq.f32.partialorder %v1582, 8.507059e+37
    %v1584 = vand.u32 %v1572, 2147483648
    %v1585 = vor.u32 1.1754944e-38, %v1584
    %v1586 = vsel %vm1583, %v1585, %v1581
    %v1587 = vmul.f32 1.0, %v1586
    %v1588 = vtanh.pop %v1567
    %v1589 = vmul.f32 %v1587, %v1455
    %1591 = vrot.lane.b32.xlu0 %v1588, 64
    %v1592 = vpop.permute.xlu0 %1591
    %v1594 = vmul.f32 %v1587, %v1592
    %1596 = vrot.lane.b32.xlu0 %v1594, 32
    %v1597 = vpop.permute.xlu0 %1596
    %v1599 = vadd.f32 %v1589, %v1597
    %v1600 = vtanh.pop %v1599
    %1602 = vrot.lane.b32.xlu0 %v1600, 64
    %v1603 = vpop.permute.xlu0 %1602
    %v1605 = vmul.f32 %v1587, %v1603
    %1607 = vrot.lane.b32.xlu0 %v1605, 32
    %v1608 = vpop.permute.xlu0 %1607
    %1610 = vst.msk [vmem:[#allocation2 + $0xa] sm:$0x1] %vm892, %v1608
    %v1611 = vrot.slane %v1535, 5
    %1612 = vrot.lane.b32.xlu0 %v1611, 32
    %v1613 = vpop.permute.xlu0 %1612
    %v1614 = vsel %vm689, %v1613, 0
    %1616 = vmatpush.msra.mxu0 0.0
    %1617 = vmatpush.msra.mxu0 0.0
    %1618 = vmatpush.msra.mxu0 0.0
    %1619 = vmatpush.msra.mxu0 0.0
    %1620 = vmatpush.msra.mxu0 0.0
    %1621 = vmatpush.msra.mxu0 0.0
    %1622 = vmatpush.msra.mxu0 0.0
    %1623 = vmatpush.msra.mxu0 0.0
    %1624 = vmatpush.msra.mxu0 0.0
    %1625 = vmatpush.msra.mxu0 0.0
    %1626 = vmatpush.msra.mxu0 0.0
    %1627 = vmatpush.msra.mxu0 0.0
    %1628 = vmatpush.msra.mxu0 %v671
    %1629 = vmatpush.msra.mxu0 %v670
    %1630 = vmatpush.msra.mxu0 %v669
    %1631 = vmatpush.msra.mxu0 %v668
    %1632 = vmatmul.f32.gmra.mxu0 %v1614
    %v1633 = vpop.f32.mrf.mxu0
    %v1634 = vadd.f32 0.0, %v1633
    %1635 = vdwg.mxu0
    %v1637 = vrot.slane %v1634, 2
    %v1639 = vadd.f32 %v756, %v1637
    %v1640 = vxor.u32 %v1639, 2147483648
    %v1641 = vmul.f32 %v1640, 1.442695
    %v1642 = vpow.pop %v1641
    %v1643 = vadd.f32 %v1642, 1.0
    %v1644 = vrcp.pop %v1643
    %v1645 = vmul.f32 %v1643, %v1644
    %v1646 = vsub.f32 1.0, %v1645
    %v1647 = vmul.f32 %v1644, %v1646
    %v1648 = vadd.f32 %v1644, %v1647
    %vm1649 = vweird.f32 %v1643
    %vm1650 = vweird.f32 %v1644
    %vm1651 = vmor %vm1649, %vm1650
    %v1652 = vsel %vm1651, %v1644, %v1648
    %v1653 = vand.u32 2147483647, %v1643
    %vm1654 = vcmp.eq.f32.partialorder %v1653, 8.507059e+37
    %v1655 = vand.u32 %v1643, 2147483648
    %v1656 = vor.u32 1.1754944e-38, %v1655
    %v1657 = vsel %vm1654, %v1656, %v1652
    %v1658 = vmul.f32 1.0, %v1657
    %v1659 = vtanh.pop %v1639
    %v1661 = vrot.slane %v1529, 7
    %v1663 = vmul.f32 %v1658, %v1661
    %1665 = vrot.lane.b32.xlu0 %v1659, 64
    %v1666 = vpop.permute.xlu0 %1665
    %v1668 = vmul.f32 %v1658, %v1666
    %1670 = vrot.lane.b32.xlu0 %v1668, 32
    %v1671 = vpop.permute.xlu0 %1670
    %v1673 = vadd.f32 %v1663, %v1671
    %v1674 = vtanh.pop %v1673
    %1676 = vrot.lane.b32.xlu0 %v1674, 64
    %v1677 = vpop.permute.xlu0 %1676
    %v1679 = vmul.f32 %v1658, %v1677
    %1681 = vrot.lane.b32.xlu0 %v1679, 32
    %v1682 = vpop.permute.xlu0 %1681
    %v1684 = vrot.slane %v1605, 2
    %1685 = vrot.lane.b32.xlu0 %v1684, 64
    %v1686 = vpop.permute.xlu0 %1685
    %v1688 = vsel %vm689, %v1682, %v1686
    %v1690 = vrot.slane %v1688, 6
    %v1691 = vsel %vm827, %v1690, 0
    %1693 = vmatpush.msra.mxu0 0.0
    %1694 = vmatpush.msra.mxu0 0.0
    %1695 = vmatpush.msra.mxu0 0.0
    %1696 = vmatpush.msra.mxu0 0.0
    %1697 = vmatpush.msra.mxu0 0.0
    %1698 = vmatpush.msra.mxu0 0.0
    %1699 = vmatpush.msra.mxu0 0.0
    %1700 = vmatpush.msra.mxu0 0.0
    %1701 = vmatpush.msra.mxu0 %v679
    %1702 = vmatpush.msra.mxu0 %v678
    %1703 = vmatpush.msra.mxu0 %v677
    %1704 = vmatpush.msra.mxu0 %v676
    %1705 = vmatpush.msra.mxu0 %v675
    %1706 = vmatpush.msra.mxu0 %v674
    %1707 = vmatpush.msra.mxu0 %v673
    %1708 = vmatpush.msra.mxu0 %v672
    %1709 = vmatmul.f32.gmra.mxu0 %v1691
    %v1710 = vpop.f32.mrf.mxu0
    %v1711 = vadd.f32 %v680, %v1710
    %1712 = vdwg.mxu0
    %v1713 = vxor.u32 %v1711, 2147483648
    %v1714 = vmul.f32 %v1713, 1.442695
    %v1715 = vpow.pop %v1714
    %v1716 = vadd.f32 %v1715, 1.0
    %v1717 = vrcp.pop %v1716
    %v1718 = vmul.f32 %v1716, %v1717
    %v1719 = vsub.f32 1.0, %v1718
    %v1720 = vmul.f32 %v1717, %v1719
    %v1721 = vadd.f32 %v1717, %v1720
    %vm1722 = vweird.f32 %v1716
    %vm1723 = vweird.f32 %v1717
    %vm1724 = vmor %vm1722, %vm1723
    %v1725 = vsel %vm1724, %v1717, %v1721
    %v1726 = vand.u32 2147483647, %v1716
    %vm1727 = vcmp.eq.f32.partialorder %v1726, 8.507059e+37
    %v1728 = vand.u32 %v1716, 2147483648
    %v1729 = vor.u32 1.1754944e-38, %v1728
    %v1730 = vsel %vm1727, %v1729, %v1725
    %v1731 = vmul.f32 1.0, %v1730
    %v1732 = vtanh.pop %v1711
    %v1733 = vmul.f32 %v1731, %v1599
    %1735 = vrot.lane.b32.xlu0 %v1732, 64
    %v1736 = vpop.permute.xlu0 %1735
    %v1738 = vmul.f32 %v1731, %v1736
    %1740 = vrot.lane.b32.xlu0 %v1738, 32
    %v1741 = vpop.permute.xlu0 %1740
    %v1743 = vadd.f32 %v1733, %v1741
    %v1744 = vtanh.pop %v1743
    %1746 = vrot.lane.b32.xlu0 %v1744, 64
    %v1747 = vpop.permute.xlu0 %1746
    %v1749 = vmul.f32 %v1731, %v1747
    %1751 = vrot.lane.b32.xlu0 %v1749, 32
    %v1752 = vpop.permute.xlu0 %1751
    %1754 = vst.msk [vmem:[#allocation2 + $0x3] sm:$0x1] %vm892, %v1752
    %v1755 = vrot.slane %v1679, 6
    %1756 = vrot.lane.b32.xlu0 %v1755, 32
    %v1757 = vpop.permute.xlu0 %1756
    %v1758 = vsel %vm689, %v1757, 0
    %1760 = vmatpush.msra.mxu0 0.0
    %1761 = vmatpush.msra.mxu0 0.0
    %1762 = vmatpush.msra.mxu0 0.0
    %1763 = vmatpush.msra.mxu0 0.0
    %1764 = vmatpush.msra.mxu0 0.0
    %1765 = vmatpush.msra.mxu0 0.0
    %1766 = vmatpush.msra.mxu0 0.0
    %1767 = vmatpush.msra.mxu0 0.0
    %1768 = vmatpush.msra.mxu0 0.0
    %1769 = vmatpush.msra.mxu0 0.0
    %1770 = vmatpush.msra.mxu0 0.0
    %1771 = vmatpush.msra.mxu0 0.0
    %1772 = vmatpush.msra.mxu0 %v671
    %1773 = vmatpush.msra.mxu0 %v670
    %1774 = vmatpush.msra.mxu0 %v669
    %1775 = vmatpush.msra.mxu0 %v668
    %1776 = vmatmul.f32.gmra.mxu0 %v1758
    %v1777 = vpop.f32.mrf.mxu0
    %v1778 = vadd.f32 0.0, %v1777
    %1779 = vdwg.mxu0
    %v1781 = vrot.slane %v1778, 1
    %v1783 = vadd.f32 %v756, %v1781
    %v1784 = vxor.u32 %v1783, 2147483648
    %v1785 = vmul.f32 %v1784, 1.442695
    %v1786 = vpow.pop %v1785
    %v1787 = vadd.f32 %v1786, 1.0
    %v1788 = vrcp.pop %v1787
    %v1789 = vmul.f32 %v1787, %v1788
    %v1790 = vsub.f32 1.0, %v1789
    %v1791 = vmul.f32 %v1788, %v1790
    %v1792 = vadd.f32 %v1788, %v1791
    %vm1793 = vweird.f32 %v1787
    %vm1794 = vweird.f32 %v1788
    %vm1795 = vmor %vm1793, %vm1794
    %v1796 = vsel %vm1795, %v1788, %v1792
    %v1797 = vand.u32 2147483647, %v1787
    %vm1798 = vcmp.eq.f32.partialorder %v1797, 8.507059e+37
    %v1799 = vand.u32 %v1787, 2147483648
    %v1800 = vor.u32 1.1754944e-38, %v1799
    %v1801 = vsel %vm1798, %v1800, %v1796
    %v1802 = vmul.f32 1.0, %v1801
    %v1803 = vtanh.pop %v1783
    %v1805 = vrot.slane %v1673, 7
    %v1807 = vmul.f32 %v1802, %v1805
    %1809 = vrot.lane.b32.xlu0 %v1803, 64
    %v1810 = vpop.permute.xlu0 %1809
    %v1812 = vmul.f32 %v1802, %v1810
    %1814 = vrot.lane.b32.xlu0 %v1812, 32
    %v1815 = vpop.permute.xlu0 %1814
    %v1817 = vadd.f32 %v1807, %v1815
    %v1818 = vtanh.pop %v1817
    %1820 = vrot.lane.b32.xlu0 %v1818, 64
    %v1821 = vpop.permute.xlu0 %1820
    %v1823 = vmul.f32 %v1802, %v1821
    %1825 = vrot.lane.b32.xlu0 %v1823, 32
    %v1826 = vpop.permute.xlu0 %1825
    %v1828 = vrot.slane %v1749, 1
    %1829 = vrot.lane.b32.xlu0 %v1828, 64
    %v1830 = vpop.permute.xlu0 %1829
    %v1832 = vsel %vm689, %v1826, %v1830
    %v1834 = vrot.slane %v1832, 7
    %v1835 = vsel %vm827, %v1834, 0
    %1837 = vmatpush.msra.mxu0 0.0
    %1838 = vmatpush.msra.mxu0 0.0
    %1839 = vmatpush.msra.mxu0 0.0
    %1840 = vmatpush.msra.mxu0 0.0
    %1841 = vmatpush.msra.mxu0 0.0
    %1842 = vmatpush.msra.mxu0 0.0
    %1843 = vmatpush.msra.mxu0 0.0
    %1844 = vmatpush.msra.mxu0 0.0
    %1845 = vmatpush.msra.mxu0 %v679
    %1846 = vmatpush.msra.mxu0 %v678
    %1847 = vmatpush.msra.mxu0 %v677
    %1848 = vmatpush.msra.mxu0 %v676
    %1849 = vmatpush.msra.mxu0 %v675
    %1850 = vmatpush.msra.mxu0 %v674
    %1851 = vmatpush.msra.mxu0 %v673
    %1852 = vmatpush.msra.mxu0 %v672
    %1853 = vmatmul.f32.gmra.mxu0 %v1835
    %v1854 = vpop.f32.mrf.mxu0
    %v1855 = vadd.f32 %v680, %v1854
    %1856 = vdwg.mxu0
    %v1857 = vxor.u32 %v1855, 2147483648
    %v1858 = vmul.f32 %v1857, 1.442695
    %v1859 = vpow.pop %v1858
    %v1860 = vadd.f32 %v1859, 1.0
    %v1861 = vrcp.pop %v1860
    %v1862 = vmul.f32 %v1860, %v1861
    %v1863 = vsub.f32 1.0, %v1862
    %v1864 = vmul.f32 %v1861, %v1863
    %v1865 = vadd.f32 %v1861, %v1864
    %vm1866 = vweird.f32 %v1860
    %vm1867 = vweird.f32 %v1861
    %vm1868 = vmor %vm1866, %vm1867
    %v1869 = vsel %vm1868, %v1861, %v1865
    %v1870 = vand.u32 2147483647, %v1860
    %vm1871 = vcmp.eq.f32.partialorder %v1870, 8.507059e+37
    %v1872 = vand.u32 %v1860, 2147483648
    %v1873 = vor.u32 1.1754944e-38, %v1872
    %v1874 = vsel %vm1871, %v1873, %v1869
    %v1875 = vmul.f32 1.0, %v1874
    %v1876 = vtanh.pop %v1855
    %v1877 = vmul.f32 %v1875, %v1743
    %1879 = vrot.lane.b32.xlu0 %v1876, 64
    %v1880 = vpop.permute.xlu0 %1879
    %v1882 = vmul.f32 %v1875, %v1880
    %1884 = vrot.lane.b32.xlu0 %v1882, 32
    %v1885 = vpop.permute.xlu0 %1884
    %v1887 = vadd.f32 %v1877, %v1885
    %v1888 = vtanh.pop %v1887
    %1890 = vrot.lane.b32.xlu0 %v1888, 64
    %v1891 = vpop.permute.xlu0 %1890
    %v1893 = vmul.f32 %v1875, %v1891
    %1895 = vrot.lane.b32.xlu0 %v1893, 32
    %v1896 = vpop.permute.xlu0 %1895
    %1898 = vst.msk [vmem:[#allocation2 + $0xb] sm:$0x1] %vm892, %v1896
    %v1899 = vrot.slane %v1823, 7
    %1900 = vrot.lane.b32.xlu0 %v1899, 32
    %v1901 = vpop.permute.xlu0 %1900
    %v1902 = vsel %vm689, %v1901, 0
    %1904 = vmatpush.msra.mxu0 0.0
    %1905 = vmatpush.msra.mxu0 0.0
    %1906 = vmatpush.msra.mxu0 0.0
    %1907 = vmatpush.msra.mxu0 0.0
    %1908 = vmatpush.msra.mxu0 0.0
    %1909 = vmatpush.msra.mxu0 0.0
    %1910 = vmatpush.msra.mxu0 0.0
    %1911 = vmatpush.msra.mxu0 0.0
    %1912 = vmatpush.msra.mxu0 0.0
    %1913 = vmatpush.msra.mxu0 0.0
    %1914 = vmatpush.msra.mxu0 0.0
    %1915 = vmatpush.msra.mxu0 0.0
    %1916 = vmatpush.msra.mxu0 %v671
    %1917 = vmatpush.msra.mxu0 %v670
    %1918 = vmatpush.msra.mxu0 %v669
    %1919 = vmatpush.msra.mxu0 %v668
    %1920 = vmatmul.f32.gmra.mxu0 %v1902
    %v1921 = vpop.f32.mrf.mxu0
    %v1922 = vadd.f32 0.0, %v1921
    %1923 = vdwg.mxu0
    %v1924 = vadd.f32 %v759, %v1922
    %v1925 = vxor.u32 %v1924, 2147483648
    %v1926 = vmul.f32 %v1925, 1.442695
    %v1927 = vpow.pop %v1926
    %v1928 = vadd.f32 %v1927, 1.0
    %v1929 = vrcp.pop %v1928
    %v1930 = vmul.f32 %v1928, %v1929
    %v1931 = vsub.f32 1.0, %v1930
    %v1932 = vmul.f32 %v1929, %v1931
    %v1933 = vadd.f32 %v1929, %v1932
    %vm1934 = vweird.f32 %v1928
    %vm1935 = vweird.f32 %v1929
    %vm1936 = vmor %vm1934, %vm1935
    %v1937 = vsel %vm1936, %v1929, %v1933
    %v1938 = vand.u32 2147483647, %v1928
    %vm1939 = vcmp.eq.f32.partialorder %v1938, 8.507059e+37
    %v1940 = vand.u32 %v1928, 2147483648
    %v1941 = vor.u32 1.1754944e-38, %v1940
    %v1942 = vsel %vm1939, %v1941, %v1937
    %v1943 = vmul.f32 1.0, %v1942
    %v1944 = vtanh.pop %v1924
    %v1946 = vrot.slane %v1817, 7
    %v1948 = vmul.f32 %v1943, %v1946
    %1950 = vrot.lane.b32.xlu0 %v1944, 64
    %v1951 = vpop.permute.xlu0 %1950
    %v1953 = vmul.f32 %v1943, %v1951
    %1955 = vrot.lane.b32.xlu0 %v1953, 32
    %v1956 = vpop.permute.xlu0 %1955
    %v1958 = vadd.f32 %v1948, %v1956
    %v1959 = vtanh.pop %v1958
    %1961 = vrot.lane.b32.xlu0 %v1959, 64
    %v1962 = vpop.permute.xlu0 %1961
    %v1964 = vmul.f32 %v1943, %v1962
    %1966 = vrot.lane.b32.xlu0 %v1964, 32
    %v1967 = vpop.permute.xlu0 %1966
    %1969 = vrot.lane.b32.xlu0 %v1893, 64
    %v1970 = vpop.permute.xlu0 %1969
    %v1972 = vsel %vm689, %v1967, %v1970
    %v1974 = vsel %vm827, %v1972, 0
    %1976 = vmatpush.msra.mxu0 0.0
    %1977 = vmatpush.msra.mxu0 0.0
    %1978 = vmatpush.msra.mxu0 0.0
    %1979 = vmatpush.msra.mxu0 0.0
    %1980 = vmatpush.msra.mxu0 0.0
    %1981 = vmatpush.msra.mxu0 0.0
    %1982 = vmatpush.msra.mxu0 0.0
    %1983 = vmatpush.msra.mxu0 0.0
    %1984 = vmatpush.msra.mxu0 %v679
    %1985 = vmatpush.msra.mxu0 %v678
    %1986 = vmatpush.msra.mxu0 %v677
    %1987 = vmatpush.msra.mxu0 %v676
    %1988 = vmatpush.msra.mxu0 %v675
    %1989 = vmatpush.msra.mxu0 %v674
    %1990 = vmatpush.msra.mxu0 %v673
    %1991 = vmatpush.msra.mxu0 %v672
    %1992 = vmatmul.f32.gmra.mxu0 %v1974
    %v1993 = vpop.f32.mrf.mxu0
    %v1994 = vadd.f32 %v680, %v1993
    %1995 = vdwg.mxu0
    %v1996 = vxor.u32 %v1994, 2147483648
    %v1997 = vmul.f32 %v1996, 1.442695
    %v1998 = vpow.pop %v1997
    %v1999 = vadd.f32 %v1998, 1.0
    %v2000 = vrcp.pop %v1999
    %v2001 = vmul.f32 %v1999, %v2000
    %v2002 = vsub.f32 1.0, %v2001
    %v2003 = vmul.f32 %v2000, %v2002
    %v2004 = vadd.f32 %v2000, %v2003
    %vm2005 = vweird.f32 %v1999
    %vm2006 = vweird.f32 %v2000
    %vm2007 = vmor %vm2005, %vm2006
    %v2008 = vsel %vm2007, %v2000, %v2004
    %v2009 = vand.u32 2147483647, %v1999
    %vm2010 = vcmp.eq.f32.partialorder %v2009, 8.507059e+37
    %v2011 = vand.u32 %v1999, 2147483648
    %v2012 = vor.u32 1.1754944e-38, %v2011
    %v2013 = vsel %vm2010, %v2012, %v2008
    %v2014 = vmul.f32 1.0, %v2013
    %v2015 = vtanh.pop %v1994
    %v2016 = vmul.f32 %v2014, %v1887
    %2018 = vrot.lane.b32.xlu0 %v2015, 64
    %v2019 = vpop.permute.xlu0 %2018
    %v2021 = vmul.f32 %v2014, %v2019
    %2023 = vrot.lane.b32.xlu0 %v2021, 32
    %v2024 = vpop.permute.xlu0 %2023
    %v2026 = vadd.f32 %v2016, %v2024
    %v2027 = vtanh.pop %v2026
    %2029 = vrot.lane.b32.xlu0 %v2027, 64
    %v2030 = vpop.permute.xlu0 %2029
    %v2032 = vmul.f32 %v2014, %v2030
    %2034 = vrot.lane.b32.xlu0 %v2032, 32
    %v2035 = vpop.permute.xlu0 %2034
    %2037 = vst.msk [vmem:[#allocation2 + $0x4] sm:$0x1] %vm892, %v2035
    %v2038 = vsel %vm689, %v1967, 0
    %2040 = vmatpush.msra.mxu0 0.0
    %2041 = vmatpush.msra.mxu0 0.0
    %2042 = vmatpush.msra.mxu0 0.0
    %2043 = vmatpush.msra.mxu0 0.0
    %2044 = vmatpush.msra.mxu0 0.0
    %2045 = vmatpush.msra.mxu0 0.0
    %2046 = vmatpush.msra.mxu0 0.0
    %2047 = vmatpush.msra.mxu0 0.0
    %2048 = vmatpush.msra.mxu0 0.0
    %2049 = vmatpush.msra.mxu0 0.0
    %2050 = vmatpush.msra.mxu0 0.0
    %2051 = vmatpush.msra.mxu0 0.0
    %2052 = vmatpush.msra.mxu0 %v671
    %2053 = vmatpush.msra.mxu0 %v670
    %2054 = vmatpush.msra.mxu0 %v669
    %2055 = vmatpush.msra.mxu0 %v668
    %2056 = vmatmul.f32.gmra.mxu0 %v2038
    %v2057 = vpop.f32.mrf.mxu0
    %v2058 = vadd.f32 0.0, %v2057
    %2059 = vdwg.mxu0
    %v2061 = vrot.slane %v2058, 7
    %v2063 = vadd.f32 %v759, %v2061
    %v2064 = vxor.u32 %v2063, 2147483648
    %v2065 = vmul.f32 %v2064, 1.442695
    %v2066 = vpow.pop %v2065
    %v2067 = vadd.f32 %v2066, 1.0
    %v2068 = vrcp.pop %v2067
    %v2069 = vmul.f32 %v2067, %v2068
    %v2070 = vsub.f32 1.0, %v2069
    %v2071 = vmul.f32 %v2068, %v2070
    %v2072 = vadd.f32 %v2068, %v2071
    %vm2073 = vweird.f32 %v2067
    %vm2074 = vweird.f32 %v2068
    %vm2075 = vmor %vm2073, %vm2074
    %v2076 = vsel %vm2075, %v2068, %v2072
    %v2077 = vand.u32 2147483647, %v2067
    %vm2078 = vcmp.eq.f32.partialorder %v2077, 8.507059e+37
    %v2079 = vand.u32 %v2067, 2147483648
    %v2080 = vor.u32 1.1754944e-38, %v2079
    %v2081 = vsel %vm2078, %v2080, %v2076
    %v2082 = vmul.f32 1.0, %v2081
    %v2083 = vtanh.pop %v2063
    %v2085 = vrot.slane %v1958, 7
    %v2087 = vmul.f32 %v2082, %v2085
    %2089 = vrot.lane.b32.xlu0 %v2083, 64
    %v2090 = vpop.permute.xlu0 %2089
    %v2092 = vmul.f32 %v2082, %v2090
    %2094 = vrot.lane.b32.xlu0 %v2092, 32
    %v2095 = vpop.permute.xlu0 %2094
    %v2097 = vadd.f32 %v2087, %v2095
    %v2098 = vtanh.pop %v2097
    %2100 = vrot.lane.b32.xlu0 %v2098, 64
    %v2101 = vpop.permute.xlu0 %2100
    %v2103 = vmul.f32 %v2082, %v2101
    %2105 = vrot.lane.b32.xlu0 %v2103, 32
    %v2106 = vpop.permute.xlu0 %2105
    %v2108 = vrot.slane %v2032, 7
    %2109 = vrot.lane.b32.xlu0 %v2108, 64
    %v2110 = vpop.permute.xlu0 %2109
    %v2112 = vsel %vm689, %v2106, %v2110
    %v2114 = vrot.slane %v2112, 1
    %v2115 = vsel %vm827, %v2114, 0
    %2117 = vmatpush.msra.mxu0 0.0
    %2118 = vmatpush.msra.mxu0 0.0
    %2119 = vmatpush.msra.mxu0 0.0
    %2120 = vmatpush.msra.mxu0 0.0
    %2121 = vmatpush.msra.mxu0 0.0
    %2122 = vmatpush.msra.mxu0 0.0
    %2123 = vmatpush.msra.mxu0 0.0
    %2124 = vmatpush.msra.mxu0 0.0
    %2125 = vmatpush.msra.mxu0 %v679
    %2126 = vmatpush.msra.mxu0 %v678
    %2127 = vmatpush.msra.mxu0 %v677
    %2128 = vmatpush.msra.mxu0 %v676
    %2129 = vmatpush.msra.mxu0 %v675
    %2130 = vmatpush.msra.mxu0 %v674
    %2131 = vmatpush.msra.mxu0 %v673
    %2132 = vmatpush.msra.mxu0 %v672
    %2133 = vmatmul.f32.gmra.mxu0 %v2115
    %v2134 = vpop.f32.mrf.mxu0
    %v2135 = vadd.f32 %v680, %v2134
    %2136 = vdwg.mxu0
    %v2137 = vxor.u32 %v2135, 2147483648
    %v2138 = vmul.f32 %v2137, 1.442695
    %v2139 = vpow.pop %v2138
    %v2140 = vadd.f32 %v2139, 1.0
    %v2141 = vrcp.pop %v2140
    %v2142 = vmul.f32 %v2140, %v2141
    %v2143 = vsub.f32 1.0, %v2142
    %v2144 = vmul.f32 %v2141, %v2143
    %v2145 = vadd.f32 %v2141, %v2144
    %vm2146 = vweird.f32 %v2140
    %vm2147 = vweird.f32 %v2141
    %vm2148 = vmor %vm2146, %vm2147
    %v2149 = vsel %vm2148, %v2141, %v2145
    %v2150 = vand.u32 2147483647, %v2140
    %vm2151 = vcmp.eq.f32.partialorder %v2150, 8.507059e+37
    %v2152 = vand.u32 %v2140, 2147483648
    %v2153 = vor.u32 1.1754944e-38, %v2152
    %v2154 = vsel %vm2151, %v2153, %v2149
    %v2155 = vmul.f32 1.0, %v2154
    %v2156 = vtanh.pop %v2135
    %v2157 = vmul.f32 %v2155, %v2026
    %2159 = vrot.lane.b32.xlu0 %v2156, 64
    %v2160 = vpop.permute.xlu0 %2159
    %v2162 = vmul.f32 %v2155, %v2160
    %2164 = vrot.lane.b32.xlu0 %v2162, 32
    %v2165 = vpop.permute.xlu0 %2164
    %v2167 = vadd.f32 %v2157, %v2165
    %v2168 = vtanh.pop %v2167
    %2170 = vrot.lane.b32.xlu0 %v2168, 64
    %v2171 = vpop.permute.xlu0 %2170
    %v2173 = vmul.f32 %v2155, %v2171
    %2175 = vrot.lane.b32.xlu0 %v2173, 32
    %v2176 = vpop.permute.xlu0 %2175
    %2178 = vst.msk [vmem:[#allocation2 + $0xc] sm:$0x1] %vm892, %v2176
    %v2179 = vrot.slane %v2103, 1
    %2180 = vrot.lane.b32.xlu0 %v2179, 32
    %v2181 = vpop.permute.xlu0 %2180
    %v2182 = vsel %vm689, %v2181, 0
    %2184 = vmatpush.msra.mxu0 0.0
    %2185 = vmatpush.msra.mxu0 0.0
    %2186 = vmatpush.msra.mxu0 0.0
    %2187 = vmatpush.msra.mxu0 0.0
    %2188 = vmatpush.msra.mxu0 0.0
    %2189 = vmatpush.msra.mxu0 0.0
    %2190 = vmatpush.msra.mxu0 0.0
    %2191 = vmatpush.msra.mxu0 0.0
    %2192 = vmatpush.msra.mxu0 0.0
    %2193 = vmatpush.msra.mxu0 0.0
    %2194 = vmatpush.msra.mxu0 0.0
    %2195 = vmatpush.msra.mxu0 0.0
    %2196 = vmatpush.msra.mxu0 %v671
    %2197 = vmatpush.msra.mxu0 %v670
    %2198 = vmatpush.msra.mxu0 %v669
    %2199 = vmatpush.msra.mxu0 %v668
    %2200 = vmatmul.f32.gmra.mxu0 %v2182
    %v2201 = vpop.f32.mrf.mxu0
    %v2202 = vadd.f32 0.0, %v2201
    %2203 = vdwg.mxu0
    %v2205 = vrot.slane %v2202, 6
    %v2207 = vadd.f32 %v759, %v2205
    %v2208 = vxor.u32 %v2207, 2147483648
    %v2209 = vmul.f32 %v2208, 1.442695
    %v2210 = vpow.pop %v2209
    %v2211 = vadd.f32 %v2210, 1.0
    %v2212 = vrcp.pop %v2211
    %v2213 = vmul.f32 %v2211, %v2212
    %v2214 = vsub.f32 1.0, %v2213
    %v2215 = vmul.f32 %v2212, %v2214
    %v2216 = vadd.f32 %v2212, %v2215
    %vm2217 = vweird.f32 %v2211
    %vm2218 = vweird.f32 %v2212
    %vm2219 = vmor %vm2217, %vm2218
    %v2220 = vsel %vm2219, %v2212, %v2216
    %v2221 = vand.u32 2147483647, %v2211
    %vm2222 = vcmp.eq.f32.partialorder %v2221, 8.507059e+37
    %v2223 = vand.u32 %v2211, 2147483648
    %v2224 = vor.u32 1.1754944e-38, %v2223
    %v2225 = vsel %vm2222, %v2224, %v2220
    %v2226 = vmul.f32 1.0, %v2225
    %v2227 = vtanh.pop %v2207
    %v2229 = vrot.slane %v2097, 7
    %v2231 = vmul.f32 %v2226, %v2229
    %2233 = vrot.lane.b32.xlu0 %v2227, 64
    %v2234 = vpop.permute.xlu0 %2233
    %v2236 = vmul.f32 %v2226, %v2234
    %2238 = vrot.lane.b32.xlu0 %v2236, 32
    %v2239 = vpop.permute.xlu0 %2238
    %v2241 = vadd.f32 %v2231, %v2239
    %v2242 = vtanh.pop %v2241
    %2244 = vrot.lane.b32.xlu0 %v2242, 64
    %v2245 = vpop.permute.xlu0 %2244
    %v2247 = vmul.f32 %v2226, %v2245
    %2249 = vrot.lane.b32.xlu0 %v2247, 32
    %v2250 = vpop.permute.xlu0 %2249
    %v2252 = vrot.slane %v2173, 6
    %2253 = vrot.lane.b32.xlu0 %v2252, 64
    %v2254 = vpop.permute.xlu0 %2253
    %v2256 = vsel %vm689, %v2250, %v2254
    %v2258 = vrot.slane %v2256, 2
    %v2259 = vsel %vm827, %v2258, 0
    %2261 = vmatpush.msra.mxu0 0.0
    %2262 = vmatpush.msra.mxu0 0.0
    %2263 = vmatpush.msra.mxu0 0.0
    %2264 = vmatpush.msra.mxu0 0.0
    %2265 = vmatpush.msra.mxu0 0.0
    %2266 = vmatpush.msra.mxu0 0.0
    %2267 = vmatpush.msra.mxu0 0.0
    %2268 = vmatpush.msra.mxu0 0.0
    %2269 = vmatpush.msra.mxu0 %v679
    %2270 = vmatpush.msra.mxu0 %v678
    %2271 = vmatpush.msra.mxu0 %v677
    %2272 = vmatpush.msra.mxu0 %v676
    %2273 = vmatpush.msra.mxu0 %v675
    %2274 = vmatpush.msra.mxu0 %v674
    %2275 = vmatpush.msra.mxu0 %v673
    %2276 = vmatpush.msra.mxu0 %v672
    %2277 = vmatmul.f32.gmra.mxu0 %v2259
    %v2278 = vpop.f32.mrf.mxu0
    %v2279 = vadd.f32 %v680, %v2278
    %2280 = vdwg.mxu0
    %v2281 = vxor.u32 %v2279, 2147483648
    %v2282 = vmul.f32 %v2281, 1.442695
    %v2283 = vpow.pop %v2282
    %v2284 = vadd.f32 %v2283, 1.0
    %v2285 = vrcp.pop %v2284
    %v2286 = vmul.f32 %v2284, %v2285
    %v2287 = vsub.f32 1.0, %v2286
    %v2288 = vmul.f32 %v2285, %v2287
    %v2289 = vadd.f32 %v2285, %v2288
    %vm2290 = vweird.f32 %v2284
    %vm2291 = vweird.f32 %v2285
    %vm2292 = vmor %vm2290, %vm2291
    %v2293 = vsel %vm2292, %v2285, %v2289
    %v2294 = vand.u32 2147483647, %v2284
    %vm2295 = vcmp.eq.f32.partialorder %v2294, 8.507059e+37
    %v2296 = vand.u32 %v2284, 2147483648
    %v2297 = vor.u32 1.1754944e-38, %v2296
    %v2298 = vsel %vm2295, %v2297, %v2293
    %v2299 = vmul.f32 1.0, %v2298
    %v2300 = vtanh.pop %v2279
    %v2301 = vmul.f32 %v2299, %v2167
    %2303 = vrot.lane.b32.xlu0 %v2300, 64
    %v2304 = vpop.permute.xlu0 %2303
    %v2306 = vmul.f32 %v2299, %v2304
    %2308 = vrot.lane.b32.xlu0 %v2306, 32
    %v2309 = vpop.permute.xlu0 %2308
    %v2311 = vadd.f32 %v2301, %v2309
    %v2312 = vtanh.pop %v2311
    %2314 = vrot.lane.b32.xlu0 %v2312, 64
    %v2315 = vpop.permute.xlu0 %2314
    %v2317 = vmul.f32 %v2299, %v2315
    %2319 = vrot.lane.b32.xlu0 %v2317, 32
    %v2320 = vpop.permute.xlu0 %2319
    %2322 = vst.msk [vmem:[#allocation2 + $0x5] sm:$0x1] %vm892, %v2320
    %v2323 = vrot.slane %v2247, 2
    %2324 = vrot.lane.b32.xlu0 %v2323, 32
    %v2325 = vpop.permute.xlu0 %2324
    %v2326 = vsel %vm689, %v2325, 0
    %2328 = vmatpush.msra.mxu0 0.0
    %2329 = vmatpush.msra.mxu0 0.0
    %2330 = vmatpush.msra.mxu0 0.0
    %2331 = vmatpush.msra.mxu0 0.0
    %2332 = vmatpush.msra.mxu0 0.0
    %2333 = vmatpush.msra.mxu0 0.0
    %2334 = vmatpush.msra.mxu0 0.0
    %2335 = vmatpush.msra.mxu0 0.0
    %2336 = vmatpush.msra.mxu0 0.0
    %2337 = vmatpush.msra.mxu0 0.0
    %2338 = vmatpush.msra.mxu0 0.0
    %2339 = vmatpush.msra.mxu0 0.0
    %2340 = vmatpush.msra.mxu0 %v671
    %2341 = vmatpush.msra.mxu0 %v670
    %2342 = vmatpush.msra.mxu0 %v669
    %2343 = vmatpush.msra.mxu0 %v668
    %2344 = vmatmul.f32.gmra.mxu0 %v2326
    %v2345 = vpop.f32.mrf.mxu0
    %v2346 = vadd.f32 0.0, %v2345
    %2347 = vdwg.mxu0
    %v2349 = vrot.slane %v2346, 5
    %v2351 = vadd.f32 %v759, %v2349
    %v2352 = vxor.u32 %v2351, 2147483648
    %v2353 = vmul.f32 %v2352, 1.442695
    %v2354 = vpow.pop %v2353
    %v2355 = vadd.f32 %v2354, 1.0
    %v2356 = vrcp.pop %v2355
    %v2357 = vmul.f32 %v2355, %v2356
    %v2358 = vsub.f32 1.0, %v2357
    %v2359 = vmul.f32 %v2356, %v2358
    %v2360 = vadd.f32 %v2356, %v2359
    %vm2361 = vweird.f32 %v2355
    %vm2362 = vweird.f32 %v2356
    %vm2363 = vmor %vm2361, %vm2362
    %v2364 = vsel %vm2363, %v2356, %v2360
    %v2365 = vand.u32 2147483647, %v2355
    %vm2366 = vcmp.eq.f32.partialorder %v2365, 8.507059e+37
    %v2367 = vand.u32 %v2355, 2147483648
    %v2368 = vor.u32 1.1754944e-38, %v2367
    %v2369 = vsel %vm2366, %v2368, %v2364
    %v2370 = vmul.f32 1.0, %v2369
    %v2371 = vtanh.pop %v2351
    %v2373 = vrot.slane %v2241, 7
    %v2375 = vmul.f32 %v2370, %v2373
    %2377 = vrot.lane.b32.xlu0 %v2371, 64
    %v2378 = vpop.permute.xlu0 %2377
    %v2380 = vmul.f32 %v2370, %v2378
    %2382 = vrot.lane.b32.xlu0 %v2380, 32
    %v2383 = vpop.permute.xlu0 %2382
    %v2385 = vadd.f32 %v2375, %v2383
    %v2386 = vtanh.pop %v2385
    %2388 = vrot.lane.b32.xlu0 %v2386, 64
    %v2389 = vpop.permute.xlu0 %2388
    %v2391 = vmul.f32 %v2370, %v2389
    %2393 = vrot.lane.b32.xlu0 %v2391, 32
    %v2394 = vpop.permute.xlu0 %2393
    %v2396 = vrot.slane %v2317, 5
    %2397 = vrot.lane.b32.xlu0 %v2396, 64
    %v2398 = vpop.permute.xlu0 %2397
    %v2400 = vsel %vm689, %v2394, %v2398
    %v2402 = vrot.slane %v2400, 3
    %v2403 = vsel %vm827, %v2402, 0
    %2405 = vmatpush.msra.mxu0 0.0
    %2406 = vmatpush.msra.mxu0 0.0
    %2407 = vmatpush.msra.mxu0 0.0
    %2408 = vmatpush.msra.mxu0 0.0
    %2409 = vmatpush.msra.mxu0 0.0
    %2410 = vmatpush.msra.mxu0 0.0
    %2411 = vmatpush.msra.mxu0 0.0
    %2412 = vmatpush.msra.mxu0 0.0
    %2413 = vmatpush.msra.mxu0 %v679
    %2414 = vmatpush.msra.mxu0 %v678
    %2415 = vmatpush.msra.mxu0 %v677
    %2416 = vmatpush.msra.mxu0 %v676
    %2417 = vmatpush.msra.mxu0 %v675
    %2418 = vmatpush.msra.mxu0 %v674
    %2419 = vmatpush.msra.mxu0 %v673
    %2420 = vmatpush.msra.mxu0 %v672
    %2421 = vmatmul.f32.gmra.mxu0 %v2403
    %v2422 = vpop.f32.mrf.mxu0
    %v2423 = vadd.f32 %v680, %v2422
    %2424 = vdwg.mxu0
    %v2425 = vxor.u32 %v2423, 2147483648
    %v2426 = vmul.f32 %v2425, 1.442695
    %v2427 = vpow.pop %v2426
    %v2428 = vadd.f32 %v2427, 1.0
    %v2429 = vrcp.pop %v2428
    %v2430 = vmul.f32 %v2428, %v2429
    %v2431 = vsub.f32 1.0, %v2430
    %v2432 = vmul.f32 %v2429, %v2431
    %v2433 = vadd.f32 %v2429, %v2432
    %vm2434 = vweird.f32 %v2428
    %vm2435 = vweird.f32 %v2429
    %vm2436 = vmor %vm2434, %vm2435
    %v2437 = vsel %vm2436, %v2429, %v2433
    %v2438 = vand.u32 2147483647, %v2428
    %vm2439 = vcmp.eq.f32.partialorder %v2438, 8.507059e+37
    %v2440 = vand.u32 %v2428, 2147483648
    %v2441 = vor.u32 1.1754944e-38, %v2440
    %v2442 = vsel %vm2439, %v2441, %v2437
    %v2443 = vmul.f32 1.0, %v2442
    %v2444 = vtanh.pop %v2423
    %v2445 = vmul.f32 %v2443, %v2311
    %2447 = vrot.lane.b32.xlu0 %v2444, 64
    %v2448 = vpop.permute.xlu0 %2447
    %v2450 = vmul.f32 %v2443, %v2448
    %2452 = vrot.lane.b32.xlu0 %v2450, 32
    %v2453 = vpop.permute.xlu0 %2452
    %v2455 = vadd.f32 %v2445, %v2453
    %v2456 = vtanh.pop %v2455
    %2458 = vrot.lane.b32.xlu0 %v2456, 64
    %v2459 = vpop.permute.xlu0 %2458
    %v2461 = vmul.f32 %v2443, %v2459
    %2463 = vrot.lane.b32.xlu0 %v2461, 32
    %v2464 = vpop.permute.xlu0 %2463
    %2466 = vst.msk [vmem:[#allocation2 + $0xd] sm:$0x1] %vm892, %v2464
    %v2467 = vrot.slane %v2391, 3
    %2468 = vrot.lane.b32.xlu0 %v2467, 32
    %v2469 = vpop.permute.xlu0 %2468
    %v2470 = vsel %vm689, %v2469, 0
    %2472 = vmatpush.msra.mxu0 0.0
    %2473 = vmatpush.msra.mxu0 0.0
    %2474 = vmatpush.msra.mxu0 0.0
    %2475 = vmatpush.msra.mxu0 0.0
    %2476 = vmatpush.msra.mxu0 0.0
    %2477 = vmatpush.msra.mxu0 0.0
    %2478 = vmatpush.msra.mxu0 0.0
    %2479 = vmatpush.msra.mxu0 0.0
    %2480 = vmatpush.msra.mxu0 0.0
    %2481 = vmatpush.msra.mxu0 0.0
    %2482 = vmatpush.msra.mxu0 0.0
    %2483 = vmatpush.msra.mxu0 0.0
    %2484 = vmatpush.msra.mxu0 %v671
    %2485 = vmatpush.msra.mxu0 %v670
    %2486 = vmatpush.msra.mxu0 %v669
    %2487 = vmatpush.msra.mxu0 %v668
    %2488 = vmatmul.f32.gmra.mxu0 %v2470
    %v2489 = vpop.f32.mrf.mxu0
    %v2490 = vadd.f32 0.0, %v2489
    %2491 = vdwg.mxu0
    %v2493 = vrot.slane %v2490, 4
    %v2495 = vadd.f32 %v759, %v2493
    %v2496 = vxor.u32 %v2495, 2147483648
    %v2497 = vmul.f32 %v2496, 1.442695
    %v2498 = vpow.pop %v2497
    %v2499 = vadd.f32 %v2498, 1.0
    %v2500 = vrcp.pop %v2499
    %v2501 = vmul.f32 %v2499, %v2500
    %v2502 = vsub.f32 1.0, %v2501
    %v2503 = vmul.f32 %v2500, %v2502
    %v2504 = vadd.f32 %v2500, %v2503
    %vm2505 = vweird.f32 %v2499
    %vm2506 = vweird.f32 %v2500
    %vm2507 = vmor %vm2505, %vm2506
    %v2508 = vsel %vm2507, %v2500, %v2504
    %v2509 = vand.u32 2147483647, %v2499
    %vm2510 = vcmp.eq.f32.partialorder %v2509, 8.507059e+37
    %v2511 = vand.u32 %v2499, 2147483648
    %v2512 = vor.u32 1.1754944e-38, %v2511
    %v2513 = vsel %vm2510, %v2512, %v2508
    %v2514 = vmul.f32 1.0, %v2513
    %v2515 = vtanh.pop %v2495
    %v2517 = vrot.slane %v2385, 7
    %v2519 = vmul.f32 %v2514, %v2517
    %2521 = vrot.lane.b32.xlu0 %v2515, 64
    %v2522 = vpop.permute.xlu0 %2521
    %v2524 = vmul.f32 %v2514, %v2522
    %2526 = vrot.lane.b32.xlu0 %v2524, 32
    %v2527 = vpop.permute.xlu0 %2526
    %v2529 = vadd.f32 %v2519, %v2527
    %v2530 = vtanh.pop %v2529
    %2532 = vrot.lane.b32.xlu0 %v2530, 64
    %v2533 = vpop.permute.xlu0 %2532
    %v2535 = vmul.f32 %v2514, %v2533
    %2537 = vrot.lane.b32.xlu0 %v2535, 32
    %v2538 = vpop.permute.xlu0 %2537
    %v2540 = vrot.slane %v2461, 4
    %2541 = vrot.lane.b32.xlu0 %v2540, 64
    %v2542 = vpop.permute.xlu0 %2541
    %v2544 = vsel %vm689, %v2538, %v2542
    %v2546 = vrot.slane %v2544, 4
    %v2547 = vsel %vm827, %v2546, 0
    %2549 = vmatpush.msra.mxu0 0.0
    %2550 = vmatpush.msra.mxu0 0.0
    %2551 = vmatpush.msra.mxu0 0.0
    %2552 = vmatpush.msra.mxu0 0.0
    %2553 = vmatpush.msra.mxu0 0.0
    %2554 = vmatpush.msra.mxu0 0.0
    %2555 = vmatpush.msra.mxu0 0.0
    %2556 = vmatpush.msra.mxu0 0.0
    %2557 = vmatpush.msra.mxu0 %v679
    %2558 = vmatpush.msra.mxu0 %v678
    %2559 = vmatpush.msra.mxu0 %v677
    %2560 = vmatpush.msra.mxu0 %v676
    %2561 = vmatpush.msra.mxu0 %v675
    %2562 = vmatpush.msra.mxu0 %v674
    %2563 = vmatpush.msra.mxu0 %v673
    %2564 = vmatpush.msra.mxu0 %v672
    %2565 = vmatmul.f32.gmra.mxu0 %v2547
    %v2566 = vpop.f32.mrf.mxu0
    %v2567 = vadd.f32 %v680, %v2566
    %2568 = vdwg.mxu0
    %v2569 = vxor.u32 %v2567, 2147483648
    %v2570 = vmul.f32 %v2569, 1.442695
    %v2571 = vpow.pop %v2570
    %v2572 = vadd.f32 %v2571, 1.0
    %v2573 = vrcp.pop %v2572
    %v2574 = vmul.f32 %v2572, %v2573
    %v2575 = vsub.f32 1.0, %v2574
    %v2576 = vmul.f32 %v2573, %v2575
    %v2577 = vadd.f32 %v2573, %v2576
    %vm2578 = vweird.f32 %v2572
    %vm2579 = vweird.f32 %v2573
    %vm2580 = vmor %vm2578, %vm2579
    %v2581 = vsel %vm2580, %v2573, %v2577
    %v2582 = vand.u32 2147483647, %v2572
    %vm2583 = vcmp.eq.f32.partialorder %v2582, 8.507059e+37
    %v2584 = vand.u32 %v2572, 2147483648
    %v2585 = vor.u32 1.1754944e-38, %v2584
    %v2586 = vsel %vm2583, %v2585, %v2581
    %v2587 = vmul.f32 1.0, %v2586
    %v2588 = vtanh.pop %v2567
    %v2589 = vmul.f32 %v2587, %v2455
    %2591 = vrot.lane.b32.xlu0 %v2588, 64
    %v2592 = vpop.permute.xlu0 %2591
    %v2594 = vmul.f32 %v2587, %v2592
    %2596 = vrot.lane.b32.xlu0 %v2594, 32
    %v2597 = vpop.permute.xlu0 %2596
    %v2599 = vadd.f32 %v2589, %v2597
    %v2600 = vtanh.pop %v2599
    %2602 = vrot.lane.b32.xlu0 %v2600, 64
    %v2603 = vpop.permute.xlu0 %2602
    %v2605 = vmul.f32 %v2587, %v2603
    %2607 = vrot.lane.b32.xlu0 %v2605, 32
    %v2608 = vpop.permute.xlu0 %2607
    %2610 = vst.msk [vmem:[#allocation2 + $0x6] sm:$0x1] %vm892, %v2608
    %v2611 = vrot.slane %v2535, 4
    %2612 = vrot.lane.b32.xlu0 %v2611, 32
    %v2613 = vpop.permute.xlu0 %2612
    %v2614 = vsel %vm689, %v2613, 0
    %2616 = vmatpush.msra.mxu0 0.0
    %2617 = vmatpush.msra.mxu0 0.0
    %2618 = vmatpush.msra.mxu0 0.0
    %2619 = vmatpush.msra.mxu0 0.0
    %2620 = vmatpush.msra.mxu0 0.0
    %2621 = vmatpush.msra.mxu0 0.0
    %2622 = vmatpush.msra.mxu0 0.0
    %2623 = vmatpush.msra.mxu0 0.0
    %2624 = vmatpush.msra.mxu0 0.0
    %2625 = vmatpush.msra.mxu0 0.0
    %2626 = vmatpush.msra.mxu0 0.0
    %2627 = vmatpush.msra.mxu0 0.0
    %2628 = vmatpush.msra.mxu0 %v671
    %2629 = vmatpush.msra.mxu0 %v670
    %2630 = vmatpush.msra.mxu0 %v669
    %2631 = vmatpush.msra.mxu0 %v668
    %2632 = vmatmul.f32.gmra.mxu0 %v2614
    %v2633 = vpop.f32.mrf.mxu0
    %v2634 = vadd.f32 0.0, %v2633
    %2635 = vdwg.mxu0
    %v2637 = vrot.slane %v2634, 3
    %v2639 = vadd.f32 %v759, %v2637
    %v2640 = vxor.u32 %v2639, 2147483648
    %v2641 = vmul.f32 %v2640, 1.442695
    %v2642 = vpow.pop %v2641
    %v2643 = vadd.f32 %v2642, 1.0
    %v2644 = vrcp.pop %v2643
    %v2645 = vmul.f32 %v2643, %v2644
    %v2646 = vsub.f32 1.0, %v2645
    %v2647 = vmul.f32 %v2644, %v2646
    %v2648 = vadd.f32 %v2644, %v2647
    %vm2649 = vweird.f32 %v2643
    %vm2650 = vweird.f32 %v2644
    %vm2651 = vmor %vm2649, %vm2650
    %v2652 = vsel %vm2651, %v2644, %v2648
    %v2653 = vand.u32 2147483647, %v2643
    %vm2654 = vcmp.eq.f32.partialorder %v2653, 8.507059e+37
    %v2655 = vand.u32 %v2643, 2147483648
    %v2656 = vor.u32 1.1754944e-38, %v2655
    %v2657 = vsel %vm2654, %v2656, %v2652
    %v2658 = vmul.f32 1.0, %v2657
    %v2659 = vtanh.pop %v2639
    %v2661 = vrot.slane %v2529, 7
    %v2663 = vmul.f32 %v2658, %v2661
    %2665 = vrot.lane.b32.xlu0 %v2659, 64
    %v2666 = vpop.permute.xlu0 %2665
    %v2668 = vmul.f32 %v2658, %v2666
    %2670 = vrot.lane.b32.xlu0 %v2668, 32
    %v2671 = vpop.permute.xlu0 %2670
    %v2673 = vadd.f32 %v2663, %v2671
    %v2674 = vtanh.pop %v2673
    %2676 = vrot.lane.b32.xlu0 %v2674, 64
    %v2677 = vpop.permute.xlu0 %2676
    %v2679 = vmul.f32 %v2658, %v2677
    %2681 = vrot.lane.b32.xlu0 %v2679, 32
    %v2682 = vpop.permute.xlu0 %2681
    %v2684 = vrot.slane %v2605, 3
    %2685 = vrot.lane.b32.xlu0 %v2684, 64
    %v2686 = vpop.permute.xlu0 %2685
    %v2688 = vsel %vm689, %v2682, %v2686
    %v2690 = vrot.slane %v2688, 5
    %v2691 = vsel %vm827, %v2690, 0
    %2693 = vmatpush.msra.mxu0 0.0
    %2694 = vmatpush.msra.mxu0 0.0
    %2695 = vmatpush.msra.mxu0 0.0
    %2696 = vmatpush.msra.mxu0 0.0
    %2697 = vmatpush.msra.mxu0 0.0
    %2698 = vmatpush.msra.mxu0 0.0
    %2699 = vmatpush.msra.mxu0 0.0
    %2700 = vmatpush.msra.mxu0 0.0
    %2701 = vmatpush.msra.mxu0 %v679
    %2702 = vmatpush.msra.mxu0 %v678
    %2703 = vmatpush.msra.mxu0 %v677
    %2704 = vmatpush.msra.mxu0 %v676
    %2705 = vmatpush.msra.mxu0 %v675
    %2706 = vmatpush.msra.mxu0 %v674
    %2707 = vmatpush.msra.mxu0 %v673
    %2708 = vmatpush.msra.mxu0 %v672
    %2709 = vmatmul.f32.gmra.mxu0 %v2691
    %v2710 = vpop.f32.mrf.mxu0
    %v2711 = vadd.f32 %v680, %v2710
    %2712 = vdwg.mxu0
    %v2713 = vxor.u32 %v2711, 2147483648
    %v2714 = vmul.f32 %v2713, 1.442695
    %v2715 = vpow.pop %v2714
    %v2716 = vadd.f32 %v2715, 1.0
    %v2717 = vrcp.pop %v2716
    %v2718 = vmul.f32 %v2716, %v2717
    %v2719 = vsub.f32 1.0, %v2718
    %v2720 = vmul.f32 %v2717, %v2719
    %v2721 = vadd.f32 %v2717, %v2720
    %vm2722 = vweird.f32 %v2716
    %vm2723 = vweird.f32 %v2717
    %vm2724 = vmor %vm2722, %vm2723
    %v2725 = vsel %vm2724, %v2717, %v2721
    %v2726 = vand.u32 2147483647, %v2716
    %vm2727 = vcmp.eq.f32.partialorder %v2726, 8.507059e+37
    %v2728 = vand.u32 %v2716, 2147483648
    %v2729 = vor.u32 1.1754944e-38, %v2728
    %v2730 = vsel %vm2727, %v2729, %v2725
    %v2731 = vmul.f32 1.0, %v2730
    %v2732 = vtanh.pop %v2711
    %v2733 = vmul.f32 %v2731, %v2599
    %2735 = vrot.lane.b32.xlu0 %v2732, 64
    %v2736 = vpop.permute.xlu0 %2735
    %v2738 = vmul.f32 %v2731, %v2736
    %2740 = vrot.lane.b32.xlu0 %v2738, 32
    %v2741 = vpop.permute.xlu0 %2740
    %v2743 = vadd.f32 %v2733, %v2741
    %v2744 = vtanh.pop %v2743
    %2746 = vrot.lane.b32.xlu0 %v2744, 64
    %v2747 = vpop.permute.xlu0 %2746
    %v2749 = vmul.f32 %v2731, %v2747
    %2751 = vrot.lane.b32.xlu0 %v2749, 32
    %v2752 = vpop.permute.xlu0 %2751
    %2754 = vst.msk [vmem:[#allocation2 + $0xe] sm:$0x1] %vm892, %v2752
    %v2755 = vrot.slane %v2679, 5
    %2756 = vrot.lane.b32.xlu0 %v2755, 32
    %v2757 = vpop.permute.xlu0 %2756
    %v2758 = vsel %vm689, %v2757, 0
    %2760 = vmatpush.msra.mxu0 0.0
    %2761 = vmatpush.msra.mxu0 0.0
    %2762 = vmatpush.msra.mxu0 0.0
    %2763 = vmatpush.msra.mxu0 0.0
    %2764 = vmatpush.msra.mxu0 0.0
    %2765 = vmatpush.msra.mxu0 0.0
    %2766 = vmatpush.msra.mxu0 0.0
    %2767 = vmatpush.msra.mxu0 0.0
    %2768 = vmatpush.msra.mxu0 0.0
    %2769 = vmatpush.msra.mxu0 0.0
    %2770 = vmatpush.msra.mxu0 0.0
    %2771 = vmatpush.msra.mxu0 0.0
    %2772 = vmatpush.msra.mxu0 %v671
    %2773 = vmatpush.msra.mxu0 %v670
    %2774 = vmatpush.msra.mxu0 %v669
    %2775 = vmatpush.msra.mxu0 %v668
    %2776 = vmatmul.f32.gmra.mxu0 %v2758
    %v2777 = vpop.f32.mrf.mxu0
    %v2778 = vadd.f32 0.0, %v2777
    %2779 = vdwg.mxu0
    %v2781 = vrot.slane %v2778, 2
    %v2783 = vadd.f32 %v759, %v2781
    %v2784 = vxor.u32 %v2783, 2147483648
    %v2785 = vmul.f32 %v2784, 1.442695
    %v2786 = vpow.pop %v2785
    %v2787 = vadd.f32 %v2786, 1.0
    %v2788 = vrcp.pop %v2787
    %v2789 = vmul.f32 %v2787, %v2788
    %v2790 = vsub.f32 1.0, %v2789
    %v2791 = vmul.f32 %v2788, %v2790
    %v2792 = vadd.f32 %v2788, %v2791
    %vm2793 = vweird.f32 %v2787
    %vm2794 = vweird.f32 %v2788
    %vm2795 = vmor %vm2793, %vm2794
    %v2796 = vsel %vm2795, %v2788, %v2792
    %v2797 = vand.u32 2147483647, %v2787
    %vm2798 = vcmp.eq.f32.partialorder %v2797, 8.507059e+37
    %v2799 = vand.u32 %v2787, 2147483648
    %v2800 = vor.u32 1.1754944e-38, %v2799
    %v2801 = vsel %vm2798, %v2800, %v2796
    %v2802 = vmul.f32 1.0, %v2801
    %v2803 = vtanh.pop %v2783
    %v2805 = vrot.slane %v2673, 7
    %v2807 = vmul.f32 %v2802, %v2805
    %2809 = vrot.lane.b32.xlu0 %v2803, 64
    %v2810 = vpop.permute.xlu0 %2809
    %v2812 = vmul.f32 %v2802, %v2810
    %2814 = vrot.lane.b32.xlu0 %v2812, 32
    %v2815 = vpop.permute.xlu0 %2814
    %v2817 = vadd.f32 %v2807, %v2815
    %v2818 = vtanh.pop %v2817
    %2820 = vrot.lane.b32.xlu0 %v2818, 64
    %v2821 = vpop.permute.xlu0 %2820
    %v2823 = vmul.f32 %v2802, %v2821
    %2825 = vrot.lane.b32.xlu0 %v2823, 32
    %v2826 = vpop.permute.xlu0 %2825
    %v2828 = vrot.slane %v2749, 2
    %2829 = vrot.lane.b32.xlu0 %v2828, 64
    %v2830 = vpop.permute.xlu0 %2829
    %v2832 = vsel %vm689, %v2826, %v2830
    %v2834 = vrot.slane %v2832, 6
    %v2835 = vsel %vm827, %v2834, 0
    %2837 = vmatpush.msra.mxu0 0.0
    %2838 = vmatpush.msra.mxu0 0.0
    %2839 = vmatpush.msra.mxu0 0.0
    %2840 = vmatpush.msra.mxu0 0.0
    %2841 = vmatpush.msra.mxu0 0.0
    %2842 = vmatpush.msra.mxu0 0.0
    %2843 = vmatpush.msra.mxu0 0.0
    %2844 = vmatpush.msra.mxu0 0.0
    %2845 = vmatpush.msra.mxu0 %v679
    %2846 = vmatpush.msra.mxu0 %v678
    %2847 = vmatpush.msra.mxu0 %v677
    %2848 = vmatpush.msra.mxu0 %v676
    %2849 = vmatpush.msra.mxu0 %v675
    %2850 = vmatpush.msra.mxu0 %v674
    %2851 = vmatpush.msra.mxu0 %v673
    %2852 = vmatpush.msra.mxu0 %v672
    %2853 = vmatmul.f32.gmra.mxu0 %v2835
    %v2854 = vpop.f32.mrf.mxu0
    %v2855 = vadd.f32 %v680, %v2854
    %2856 = vdwg.mxu0
    %v2857 = vxor.u32 %v2855, 2147483648
    %v2858 = vmul.f32 %v2857, 1.442695
    %v2859 = vpow.pop %v2858
    %v2860 = vadd.f32 %v2859, 1.0
    %v2861 = vrcp.pop %v2860
    %v2862 = vmul.f32 %v2860, %v2861
    %v2863 = vsub.f32 1.0, %v2862
    %v2864 = vmul.f32 %v2861, %v2863
    %v2865 = vadd.f32 %v2861, %v2864
    %vm2866 = vweird.f32 %v2860
    %vm2867 = vweird.f32 %v2861
    %vm2868 = vmor %vm2866, %vm2867
    %v2869 = vsel %vm2868, %v2861, %v2865
    %v2870 = vand.u32 2147483647, %v2860
    %vm2871 = vcmp.eq.f32.partialorder %v2870, 8.507059e+37
    %v2872 = vand.u32 %v2860, 2147483648
    %v2873 = vor.u32 1.1754944e-38, %v2872
    %v2874 = vsel %vm2871, %v2873, %v2869
    %v2875 = vmul.f32 1.0, %v2874
    %v2876 = vtanh.pop %v2855
    %v2877 = vmul.f32 %v2875, %v2743
    %2879 = vrot.lane.b32.xlu0 %v2876, 64
    %v2880 = vpop.permute.xlu0 %2879
    %v2882 = vmul.f32 %v2875, %v2880
    %2884 = vrot.lane.b32.xlu0 %v2882, 32
    %v2885 = vpop.permute.xlu0 %2884
    %v2887 = vadd.f32 %v2877, %v2885
    %v2888 = vtanh.pop %v2887
    %2890 = vrot.lane.b32.xlu0 %v2888, 64
    %v2891 = vpop.permute.xlu0 %2890
    %v2893 = vmul.f32 %v2875, %v2891
    %2895 = vrot.lane.b32.xlu0 %v2893, 32
    %v2896 = vpop.permute.xlu0 %2895
    %2898 = vst.msk [vmem:[#allocation2 + $0x7] sm:$0x1] %vm892, %v2896
    %v2899 = vrot.slane %v2823, 6
    %2900 = vrot.lane.b32.xlu0 %v2899, 32
    %v2901 = vpop.permute.xlu0 %2900
    %v2902 = vsel %vm689, %v2901, 0
    %2904 = vmatpush.msra.mxu0 0.0
    %2905 = vmatpush.msra.mxu0 0.0
    %2906 = vmatpush.msra.mxu0 0.0
    %2907 = vmatpush.msra.mxu0 0.0
    %2908 = vmatpush.msra.mxu0 0.0
    %2909 = vmatpush.msra.mxu0 0.0
    %2910 = vmatpush.msra.mxu0 0.0
    %2911 = vmatpush.msra.mxu0 0.0
    %2912 = vmatpush.msra.mxu0 0.0
    %2913 = vmatpush.msra.mxu0 0.0
    %2914 = vmatpush.msra.mxu0 0.0
    %2915 = vmatpush.msra.mxu0 0.0
    %2916 = vmatpush.msra.mxu0 %v671
    %2917 = vmatpush.msra.mxu0 %v670
    %2918 = vmatpush.msra.mxu0 %v669
    %2919 = vmatpush.msra.mxu0 %v668
    %2920 = vmatmul.f32.gmra.mxu0 %v2902
    %v2921 = vpop.f32.mrf.mxu0
    %v2922 = vadd.f32 0.0, %v2921
    %2923 = vdwg.mxu0
    %v2925 = vrot.slane %v2922, 1
    %v2927 = vadd.f32 %v759, %v2925
    %v2928 = vxor.u32 %v2927, 2147483648
    %v2929 = vmul.f32 %v2928, 1.442695
    %v2930 = vpow.pop %v2929
    %v2931 = vadd.f32 %v2930, 1.0
    %v2932 = vrcp.pop %v2931
    %v2933 = vmul.f32 %v2931, %v2932
    %v2934 = vsub.f32 1.0, %v2933
    %v2935 = vmul.f32 %v2932, %v2934
    %v2936 = vadd.f32 %v2932, %v2935
    %vm2937 = vweird.f32 %v2931
    %vm2938 = vweird.f32 %v2932
    %vm2939 = vmor %vm2937, %vm2938
    %v2940 = vsel %vm2939, %v2932, %v2936
    %v2941 = vand.u32 2147483647, %v2931
    %vm2942 = vcmp.eq.f32.partialorder %v2941, 8.507059e+37
    %v2943 = vand.u32 %v2931, 2147483648
    %v2944 = vor.u32 1.1754944e-38, %v2943
    %v2945 = vsel %vm2942, %v2944, %v2940
    %v2946 = vmul.f32 1.0, %v2945
    %v2947 = vtanh.pop %v2927
    %v2949 = vrot.slane %v2817, 7
    %v2951 = vmul.f32 %v2946, %v2949
    %2953 = vrot.lane.b32.xlu0 %v2947, 64
    %v2954 = vpop.permute.xlu0 %2953
    %v2956 = vmul.f32 %v2946, %v2954
    %2958 = vrot.lane.b32.xlu0 %v2956, 32
    %v2959 = vpop.permute.xlu0 %2958
    %v2961 = vadd.f32 %v2951, %v2959
    %v2962 = vtanh.pop %v2961
    %2964 = vrot.lane.b32.xlu0 %v2962, 64
    %v2965 = vpop.permute.xlu0 %2964
    %v2967 = vmul.f32 %v2946, %v2965
    %2969 = vrot.lane.b32.xlu0 %v2967, 32
    %v2970 = vpop.permute.xlu0 %2969
    %v2972 = vrot.slane %v2893, 1
    %2973 = vrot.lane.b32.xlu0 %v2972, 64
    %v2974 = vpop.permute.xlu0 %2973
    %v2976 = vsel %vm689, %v2970, %v2974
    %v2978 = vrot.slane %v2976, 7
    %v2979 = vsel %vm827, %v2978, 0
    %2981 = vmatpush.msra.mxu0 0.0
    %2982 = vmatpush.msra.mxu0 0.0
    %2983 = vmatpush.msra.mxu0 0.0
    %2984 = vmatpush.msra.mxu0 0.0
    %2985 = vmatpush.msra.mxu0 0.0
    %2986 = vmatpush.msra.mxu0 0.0
    %2987 = vmatpush.msra.mxu0 0.0
    %2988 = vmatpush.msra.mxu0 0.0
    %2989 = vmatpush.msra.mxu0 %v679
    %2990 = vmatpush.msra.mxu0 %v678
    %2991 = vmatpush.msra.mxu0 %v677
    %2992 = vmatpush.msra.mxu0 %v676
    %2993 = vmatpush.msra.mxu0 %v675
    %2994 = vmatpush.msra.mxu0 %v674
    %2995 = vmatpush.msra.mxu0 %v673
    %2996 = vmatpush.msra.mxu0 %v672
    %2997 = vmatmul.f32.gmra.mxu0 %v2979
    %v2998 = vpop.f32.mrf.mxu0
    %v2999 = vadd.f32 %v680, %v2998
    %3000 = vdwg.mxu0
    %v3001 = vxor.u32 %v2999, 2147483648
    %v3002 = vmul.f32 %v3001, 1.442695
    %v3003 = vpow.pop %v3002
    %v3004 = vadd.f32 %v3003, 1.0
    %v3005 = vrcp.pop %v3004
    %v3006 = vmul.f32 %v3004, %v3005
    %v3007 = vsub.f32 1.0, %v3006
    %v3008 = vmul.f32 %v3005, %v3007
    %v3009 = vadd.f32 %v3005, %v3008
    %vm3010 = vweird.f32 %v3004
    %vm3011 = vweird.f32 %v3005
    %vm3012 = vmor %vm3010, %vm3011
    %v3013 = vsel %vm3012, %v3005, %v3009
    %v3014 = vand.u32 2147483647, %v3004
    %vm3015 = vcmp.eq.f32.partialorder %v3014, 8.507059e+37
    %v3016 = vand.u32 %v3004, 2147483648
    %v3017 = vor.u32 1.1754944e-38, %v3016
    %v3018 = vsel %vm3015, %v3017, %v3013
    %v3019 = vmul.f32 1.0, %v3018
    %v3020 = vtanh.pop %v2999
    %v3021 = vmul.f32 %v3019, %v2887
    %3023 = vrot.lane.b32.xlu0 %v3020, 64
    %v3024 = vpop.permute.xlu0 %3023
    %v3026 = vmul.f32 %v3019, %v3024
    %3028 = vrot.lane.b32.xlu0 %v3026, 32
    %v3029 = vpop.permute.xlu0 %3028
    %v3031 = vadd.f32 %v3021, %v3029
    %v3032 = vtanh.pop %v3031
    %3034 = vrot.lane.b32.xlu0 %v3032, 64
    %v3035 = vpop.permute.xlu0 %3034
    %v3037 = vmul.f32 %v3019, %v3035
    %3039 = vrot.lane.b32.xlu0 %v3037, 32
    %v3040 = vpop.permute.xlu0 %3039
    %3042 = vst.msk [vmem:[#allocation2 + $0xf] sm:$0x1] %vm892, %v3040
    %v3043 = vld [vmem:[#allocation2] sm:$0xff]
    %v3044 = vld [vmem:[#allocation2 + $0x8] sm:$0xff]
    %v3045 = vld [vmem:[%s10] sm:$0xff]
    %v3046 = vld [vmem:[%s10 + $0x8] sm:$0xff]
    %v3047 = vld [vmem:[%s10 + $0x10] sm:$0xff]
    %v3048 = vld [vmem:[%s10 + $0x18] sm:$0xff]
    %v3049 = vld [vmem:[%s11] sm:$0x1]
    %v3051 = vperm.slane %v3049, 0
    %v3054 = vsel %vm689, %v3043, 0
    %v3057 = vsel %vm689, %v3044, 0
    %3059 = vmatpush.msra.mxu0 0.0
    %3060 = vmatpush.msra.mxu0 0.0
    %3061 = vmatpush.msra.mxu0 0.0
    %3062 = vmatpush.msra.mxu0 0.0
    %3063 = vmatpush.msra.mxu0 0.0
    %3064 = vmatpush.msra.mxu0 0.0
    %3065 = vmatpush.msra.mxu0 0.0
    %3066 = vmatpush.msra.mxu0 0.0
    %3067 = vmatpush.msra.mxu0 0.0
    %3068 = vmatpush.msra.mxu0 0.0
    %3069 = vmatpush.msra.mxu0 0.0
    %3070 = vmatpush.msra.mxu0 0.0
    %3071 = vmatpush.msra.mxu0 %v3048
    %3072 = vmatpush.msra.mxu0 %v3047
    %3073 = vmatpush.msra.mxu0 %v3046
    %3074 = vmatpush.msra.mxu0 %v3045
    %3075 = vmatmul.f32.gmra.mxu0 %v3054
    %v3076 = vpop.f32.mrf.mxu0
    %v3077 = vadd.f32 %v3051, %v3076
    %3078 = vmatmul.f32.gmra.mxu0 %v3057
    %v3079 = vpop.f32.mrf.mxu0
    %v3080 = vadd.f32 %v3051, %v3079
    %3081 = vdwg.mxu0
    %3082 = vst [vmem:[#allocation3] sm:$0xff] %v3077
    %3083 = vst [vmem:[#allocation3 + $0x8] sm:$0xff] %v3080
    // Predicated region
    $region50: #{tpu_custom_call.1} parent=1 // pred_check
      _
    $region51: #{tpu_custom_call.1} parent=1 // pred_check_branch
      %3085 = sbr.rel (0) target = $region53
    $region52: #{tpu_custom_call.1} parent=1 // pred_region
      %3087 = vsyncadd [#allocation4], 0
      %s3088 = sshll.u32 [#allocation3], 4
      %s3089 = int_to_ptr.vmem [resolvable:$true] %s3088
      %s3090 = sshll.u32 %s12, 4
      %s3091 = int_to_ptr.hbm [resolvable:$true] %s3090
      %3096 = dma.vmem_to_hbm [thread:$0]  %s3089, 256, %s3091, [#allocation4], 128, 128, 8
    $region53: #{tpu_custom_call.1} parent=1 // pred_fallthru
      _
    // Predicated region
    $region54: #{tpu_custom_call.1} parent=1 // pred_check
      _
    $region55: #{tpu_custom_call.1} parent=1 // pred_check_branch
      %3098 = sbr.rel (0) target = $region57
    $region56: #{tpu_custom_call.1} parent=1 // pred_region
      %3100 = dma.done [#allocation4], 256
    $region57: #{tpu_custom_call.1} parent=1 // pred_fallthru
      _
    %3101 = vsyncpa [#allocation4], 1

</llo_original>
